<compile_context>
chip_gen: v5e
topology: v5e:2x2
jax: 0.10.0
libtpu: 0.0.40
codegen_flags: <defaults>
</compile_context>

<pallas_src>
import functools
import math

import jax
import jax.numpy as jnp
from jax.experimental import pallas as pl
from jax.experimental.pallas import tpu as pltpu


_VMEM_LIMIT = 48 * 1024 * 1024  # fits within v7x's 64 MiB physical VMEM


# ---------------------------------------------------------------------------
# Pallas kernels
# ---------------------------------------------------------------------------

def _linear_kernel(x_ref, w_ref, b_ref, o_ref):
    # o = x @ w + b       x: (tm, K), w: (K, N), b: (1, N)
    o_ref[...] = (
        jnp.dot(x_ref[...], w_ref[...], preferred_element_type=jnp.float32)
        + b_ref[...]
    )


def _ffn_ln_kernel(x_ref, w1_ref, b1_ref, w2_ref, b2_ref, g_ref, b_ref, o_ref):
    # LayerNorm(x + fc2(relu(fc1(x))))   — residual + LN fused into the FFN epilogue.
    x = x_ref[...]
    h = jnp.dot(x, w1_ref[...], preferred_element_type=jnp.float32) + b1_ref[...]
    h = jnp.maximum(h, 0.0)
    y = jnp.dot(h, w2_ref[...], preferred_element_type=jnp.float32) + b2_ref[...]
    z = x + y
    mean = jnp.mean(z, axis=-1, keepdims=True)
    var = jnp.mean((z - mean) ** 2, axis=-1, keepdims=True)
    o_ref[...] = (z - mean) * jax.lax.rsqrt(var + 1e-5) * g_ref[...] + b_ref[...]


def _attn_core(q_all, k_all, v_all, keep_mask, res, wo_ref, bo, gamma, beta,
               o_ref, *, num_heads, d_k, scale):
    """All heads of one batch element + W_o projection + residual + LayerNorm.

    q_all: (Sq, D)   k_all/v_all: (Sk, D)   keep_mask: (Sq, Sk) bool (True = keep)
    res:   (Sq, D) residual input.  Writes (Sq, D) lane-dense output to o_ref[0].
    """
    qs = q_all * scale  # scale Q once (Sq*D muls) instead of the (Sq,Sk) scores

    y = None
    for h in range(num_heads):  # static unroll; heads selected via free static slices
        lo = h * d_k
        qh = qs[:, lo:lo + d_k]
        kh = k_all[:, lo:lo + d_k]
        vh = v_all[:, lo:lo + d_k]
        # scores = qh @ kh.T without an explicit transpose (contract last dims)
        s = jax.lax.dot_general(
            qh, kh, (((1,), (1,)), ((), ())), preferred_element_type=jnp.float32)
        s = jnp.where(keep_mask, s, -1e9)
        m = jnp.max(s, axis=-1, keepdims=True)
        p = jnp.exp(s - m)
        inv = pl.reciprocal(jnp.sum(p, axis=-1, keepdims=True), approx=True)
        ctx_h = jnp.dot(p * inv, vh, preferred_element_type=jnp.float32)  # (Sq, dk)
        # head-combine fused with W_o:  ctx @ W_o == sum_h ctx_h @ W_o[h*dk:(h+1)*dk, :]
        yh = jnp.dot(ctx_h, wo_ref[lo:lo + d_k, :],
                     preferred_element_type=jnp.float32)                  # (Sq, D)
        y = yh if y is None else y + yh

    z = res + y + bo
    mean = jnp.mean(z, axis=-1, keepdims=True)
    var = jnp.mean((z - mean) ** 2, axis=-1, keepdims=True)
    o_ref[0] = (z - mean) * jax.lax.rsqrt(var + 1e-5) * gamma + beta


def _self_attn_ln_kernel(qkv_ref, mask_ref, res_ref, wo_ref, bo_ref, g_ref, b_ref,
                         o_ref, *, num_heads, d_k, scale):
    D = num_heads * d_k
    _attn_core(
        qkv_ref[0, :, 0:D], qkv_ref[0, :, D:2 * D], qkv_ref[0, :, 2 * D:3 * D],
        mask_ref[0, 0] != 0.0, res_ref[0],
        wo_ref, bo_ref[...], g_ref[...], b_ref[...], o_ref,
        num_heads=num_heads, d_k=d_k, scale=scale)


def _cross_attn_ln_kernel(q_ref, kv_ref, mask_ref, res_ref, wo_ref, bo_ref, g_ref,
                          b_ref, o_ref, *, num_heads, d_k, scale):
    D = num_heads * d_k
    _attn_core(
        q_ref[0], kv_ref[0, :, 0:D], kv_ref[0, :, D:2 * D],
        mask_ref[0, 0] != 0.0, res_ref[0],
        wo_ref, bo_ref[...], g_ref[...], b_ref[...], o_ref,
        num_heads=num_heads, d_k=d_k, scale=scale)


# ---------------------------------------------------------------------------
# Pallas wrappers
# ---------------------------------------------------------------------------

def _compiler_params(n_parallel_axes):
    return pltpu.CompilerParams(
        dimension_semantics=("parallel",) * n_parallel_axes,
        vmem_limit_bytes=_VMEM_LIMIT,
    )


def tiled_linear(x2d, w, b, *, tm=256):
    """x2d @ w + b, tiled over rows; used for the fused QKV / Q / KV projections."""
    M, K = x2d.shape
    N = w.shape[1]
    if M % tm != 0:
        tm = M  # small / ragged M: single full block. TODO(synk): pad+mask for general M.
    return pl.pallas_call(
        _linear_kernel,
        out_shape=jax.ShapeDtypeStruct((M, N), jnp.float32),
        grid=(M // tm,),
        in_specs=[
            pl.BlockSpec((tm, K), lambda i: (i, 0)),
            pl.BlockSpec((K, N), lambda i: (0, 0)),
            pl.BlockSpec((1, N), lambda i: (0, 0)),
        ],
        out_specs=pl.BlockSpec((tm, N), lambda i: (i, 0)),
        compiler_params=_compiler_params(1),
    )(x2d, w, b.reshape(1, N))


def ffn_ln_block(x2d, w1, b1, w2, b2, gamma, beta, *, tm=256):
    """LayerNorm(x + fc2(relu(fc1(x)))) fused; tiled over rows."""
    M, D = x2d.shape
    F = w1.shape[1]
    if M % tm != 0:
        tm = M
    return pl.pallas_call(
        _ffn_ln_kernel,
        out_shape=jax.ShapeDtypeStruct((M, D), jnp.float32),
        grid=(M // tm,),
        in_specs=[
            pl.BlockSpec((tm, D), lambda i: (i, 0)),
            pl.BlockSpec((D, F), lambda i: (0, 0)),
            pl.BlockSpec((1, F), lambda i: (0, 0)),
            pl.BlockSpec((F, D), lambda i: (0, 0)),
            pl.BlockSpec((1, D), lambda i: (0, 0)),
            pl.BlockSpec((1, D), lambda i: (0, 0)),
            pl.BlockSpec((1, D), lambda i: (0, 0)),
        ],
        out_specs=pl.BlockSpec((tm, D), lambda i: (i, 0)),
        compiler_params=_compiler_params(1),
    )(x2d, w1, b1.reshape(1, F), w2, b2.reshape(1, D),
      gamma.reshape(1, D), beta.reshape(1, D))


def self_attention_ln_block(x, p, mask, gamma, beta, num_heads):
    """LayerNorm(x + MHA(x, x, x)) with fused QKV proj and fused W_o/add/LN epilogue."""
    B, Sq, D = x.shape
    d_k = D // num_heads
    qkv = tiled_linear(x.reshape(B * Sq, D), p["w_qkv"], p["b_qkv"])
    qkv = qkv.reshape(B, Sq, 3 * D)
    kernel = functools.partial(_self_attn_ln_kernel, num_heads=num_heads, d_k=d_k,
                               scale=1.0 / math.sqrt(d_k))
    return pl.pallas_call(
        kernel,
        out_shape=jax.ShapeDtypeStruct((B, Sq, D), jnp.float32),
        grid=(B,),
        in_specs=[
            pl.BlockSpec((1, Sq, 3 * D), lambda b: (b, 0, 0)),
            pl.BlockSpec((1, 1, Sq, Sq), lambda b: (b, 0, 0, 0)),
            pl.BlockSpec((1, Sq, D), lambda b: (b, 0, 0)),
            pl.BlockSpec((D, D), lambda b: (0, 0)),
            pl.BlockSpec((1, D), lambda b: (0, 0)),
            pl.BlockSpec((1, D), lambda b: (0, 0)),
            pl.BlockSpec((1, D), lambda b: (0, 0)),
        ],
        out_specs=pl.BlockSpec((1, Sq, D), lambda b: (b, 0, 0)),
        compiler_params=_compiler_params(1),
    )(qkv, mask, x, p["wo"], p["bo"].reshape(1, D),
      gamma.reshape(1, D), beta.reshape(1, D))


def cross_attention_ln_block(x, enc, p, mask, gamma, beta, num_heads):
    """LayerNorm(x + MHA(x, enc, enc)) with fused KV proj and fused W_o/add/LN epilogue."""
    B, Sq, D = x.shape
    Sk = enc.shape[1]
    d_k = D // num_heads
    q = tiled_linear(x.reshape(B * Sq, D), p["wq"], p["bq"]).reshape(B, Sq, D)
    kv = tiled_linear(enc.reshape(B * Sk, D), p["w_kv"], p["b_kv"]).reshape(B, Sk, 2 * D)
    kernel = functools.partial(_cross_attn_ln_kernel, num_heads=num_heads, d_k=d_k,
                               scale=1.0 / math.sqrt(d_k))
    return pl.pallas_call(
        kernel,
        out_shape=jax.ShapeDtypeStruct((B, Sq, D), jnp.float32),
        grid=(B,),
        in_specs=[
            pl.BlockSpec((1, Sq, D), lambda b: (b, 0, 0)),
            pl.BlockSpec((1, Sk, 2 * D), lambda b: (b, 0, 0)),
            pl.BlockSpec((1, 1, Sq, Sk), lambda b: (b, 0, 0, 0)),
            pl.BlockSpec((1, Sq, D), lambda b: (b, 0, 0)),
            pl.BlockSpec((D, D), lambda b: (0, 0)),
            pl.BlockSpec((1, D), lambda b: (0, 0)),
            pl.BlockSpec((1, D), lambda b: (0, 0)),
            pl.BlockSpec((1, D), lambda b: (0, 0)),
        ],
        out_specs=pl.BlockSpec((1, Sq, D), lambda b: (b, 0, 0)),
        compiler_params=_compiler_params(1),
    )(q, kv, mask, x, p["wo"], p["bo"].reshape(1, D),
      gamma.reshape(1, D), beta.reshape(1, D))


def decoder_layer(x, enc_output, src_mask, tgt_mask, params, num_heads):
    """Pallas implementation of DecoderLayer.forward (eval mode, dropout = identity)."""
    B, Sq, D = x.shape

    # self attention + add & norm (fused)
    x = self_attention_ln_block(x, params["self_attn"], tgt_mask,
                                params["norm1_g"], params["norm1_b"], num_heads)

    # cross attention + add & norm (fused)
    x = cross_attention_ln_block(x, enc_output, params["cross_attn"], src_mask,
                                 params["norm2_g"], params["norm2_b"], num_heads)

    # feed forward + add & norm (fused)
    x = ffn_ln_block(x.reshape(B * Sq, D),
                     params["ff_w1"], params["ff_b1"],
                     params["ff_w2"], params["ff_b2"],
                     params["norm3_g"], params["norm3_b"]).reshape(B, Sq, D)
    return x


def prepare_params(raw):
    """Build fused projection weights (Q|K|V and K|V concatenation) from raw params."""
    sa, ca = raw["self_attn"], raw["cross_attn"]
    p = dict(raw)
    p["self_attn"] = dict(
        w_qkv=jnp.concatenate([sa["wq"], sa["wk"], sa["wv"]], axis=1),
        b_qkv=jnp.concatenate([sa["bq"], sa["bk"], sa["bv"]]),
        wo=sa["wo"], bo=sa["bo"],
    )
    p["cross_attn"] = dict(
        wq=ca["wq"], bq=ca["bq"],
        w_kv=jnp.concatenate([ca["wk"], ca["wv"]], axis=1),
        b_kv=jnp.concatenate([ca["bk"], ca["bv"]]),
        wo=ca["wo"], bo=ca["bo"],
    )
    return p


# ---------------------------------------------------------------------------
# Pure-JAX reference (for correctness check)
# ---------------------------------------------------------------------------

def _ref_mha(x_q, x_kv, p, mask, num_heads):
    B, Sq, D = x_q.shape
    Sk = x_kv.shape[1]
    d_k = D // num_heads
    q = (x_q @ p["wq"] + p["bq"]).reshape(B, Sq, num_heads, d_k).transpose(0, 2, 1, 3)
    k = (x_kv @ p["wk"] + p["bk"]).reshape(B, Sk, num_heads, d_k).transpose(0, 2, 1, 3)
    v = (x_kv @ p["wv"] + p["bv"]).reshape(B, Sk, num_heads, d_k).transpose(0, 2, 1, 3)
    s = jnp.einsum("bhqd,bhkd->bhqk", q, k) / math.sqrt(d_k)
    s = jnp.where(mask == 0, -1e9, s)
    pr = jax.nn.softmax(s, axis=-1)
    o = jnp.einsum("bhqk,bhkd->bhqd", pr, v).transpose(0, 2, 1, 3).reshape(B, Sq, D)
    return o @ p["wo"] + p["bo"]


def _ref_ln(h, g, b):
    m = jnp.mean(h, axis=-1, keepdims=True)
    v = jnp.mean((h - m) ** 2, axis=-1, keepdims=True)
    return (h - m) * jax.lax.rsqrt(v + 1e-5) * g + b


def ref_decoder_layer(x, enc, src_mask, tgt_mask, params, num_heads):
    a = _ref_mha(x, x, params["self_attn"], tgt_mask, num_heads)
    x = _ref_ln(x + a, params["norm1_g"], params["norm1_b"])
    a = _ref_mha(x, enc, params["cross_attn"], src_mask, num_heads)
    x = _ref_ln(x + a, params["norm2_g"], params["norm2_b"])
    f = jnp.maximum(x @ params["ff_w1"] + params["ff_b1"], 0.0) @ params["ff_w2"] + params["ff_b2"]
    x = _ref_ln(x + f, params["norm3_g"], params["norm3_b"])
    return x


# ---------------------------------------------------------------------------
# main
# ---------------------------------------------------------------------------

if __name__ == "__main__":
    # small but TPU-friendly shapes (lane-dense d_model = 128)
    B, S_tgt, S_src = 2, 16, 16
    d_model, num_heads, d_ff = 128, 8, 256

    key = jax.random.PRNGKey(0)
    keys = jax.random.split(key, 24)

    def w(k, shape):
        return jax.random.normal(k, shape, jnp.float32) * 0.05

    def attn_raw(ks):
        return dict(
            wq=w(ks[0], (d_model, d_model)), bq=w(ks[1], (d_model,)),
            wk=w(ks[2], (d_model, d_model)), bk=w(ks[3], (d_model,)),
            wv=w(ks[4], (d_model, d_model)), bv=w(ks[5], (d_model,)),
            wo=w(ks[6], (d_model, d_model)), bo=w(ks[7], (d_model,)),
        )

    raw_params = dict(
        self_attn=attn_raw(keys[0:8]),
        cross_attn=attn_raw(keys[8:16]),
        ff_w1=w(keys[16], (d_model, d_ff)), ff_b1=w(keys[17], (d_ff,)),
        ff_w2=w(keys[18], (d_ff, d_model)), ff_b2=w(keys[19], (d_model,)),
        norm1_g=jnp.ones((d_model,), jnp.float32), norm1_b=jnp.zeros((d_model,), jnp.float32),
        norm2_g=jnp.ones((d_model,), jnp.float32), norm2_b=jnp.zeros((d_model,), jnp.float32),
        norm3_g=jnp.ones((d_model,), jnp.float32), norm3_b=jnp.zeros((d_model,), jnp.float32),
    )
    params = prepare_params(raw_params)

    x = jax.random.normal(keys[20], (B, S_tgt, d_model), jnp.float32)
    enc_output = jax.random.normal(keys[21], (B, S_src, d_model), jnp.float32)

    # masks: 1.0 = attend, 0.0 = masked (same convention as masked_fill(mask == 0, -1e9))
    causal = jnp.tril(jnp.ones((S_tgt, S_tgt), jnp.float32))
    tgt_mask = jnp.broadcast_to(causal[None, None], (B, 1, S_tgt, S_tgt))
    src_mask = jnp.ones((B, 1, S_tgt, S_src), jnp.float32)

    fwd = jax.jit(functools.partial(decoder_layer, num_heads=num_heads))
    out = fwd(x, enc_output, src_mask, tgt_mask, params)
    out = jax.block_until_ready(out)

    ref = ref_decoder_layer(x, enc_output, src_mask, tgt_mask, raw_params, num_heads)
    assert out.shape == (B, S_tgt, d_model)
    # tolerance covers pl.reciprocal(approx=True) in the softmax denominator
    assert jnp.max(jnp.abs(out - ref)) < 2e-3

    print("KERNEL_OK")
</pallas_src>

<mosaic_0001>
module attributes {stable_mosaic.version = 11 : i64} {
  func.func @_linear_kernel(%arg0: i32, %arg1: memref<32x128xf32, #tpu.memory_space<vmem>>, %arg2: memref<128x384xf32, #tpu.memory_space<vmem>>, %arg3: memref<1x384xf32, #tpu.memory_space<vmem>>, %arg4: memref<32x384xf32, #tpu.memory_space<vmem>>) attributes {dimension_semantics = [#tpu.dimension_semantics<parallel>], iteration_bounds = array<i64: 1>, scalar_prefetch = 0 : i64, scratch_operands = 0 : i64, tpu.core_type = #tpu.core_type<tc>, window_params = [{transform_indices = @transform_0, window_bounds = array<i64: 32, 128>}, {pipeline_mode = #tpu.pipeline_mode<synchronous>, transform_indices = @transform_1, window_bounds = array<i64: 128, 384>}, {pipeline_mode = #tpu.pipeline_mode<synchronous>, transform_indices = @transform_2, window_bounds = array<i64: 1, 384>}, {transform_indices = @transform_3, window_bounds = array<i64: 32, 384>}]} {
    %c0 = arith.constant 0 : index
    %c0_0 = arith.constant 0 : index
    %0 = vector.load %arg1[%c0, %c0_0] : memref<32x128xf32, #tpu.memory_space<vmem>>, vector<32x128xf32>
    %c0_1 = arith.constant 0 : index
    %c0_2 = arith.constant 0 : index
    %1 = vector.load %arg2[%c0_1, %c0_2] : memref<128x384xf32, #tpu.memory_space<vmem>>, vector<128x384xf32>
    %cst = arith.constant dense<0.000000e+00> : vector<32x384xf32>
    %2 = tpu.matmul %0, %1, %cst {dimension_numbers = #tpu.dot_dimension_numbers<[1], [0], [0], [1], [0, 0, 1, 1], [], []>} : vector<32x128xf32>, vector<128x384xf32>, vector<32x384xf32> -> vector<32x384xf32>
    %c0_3 = arith.constant 0 : index
    %c0_4 = arith.constant 0 : index
    %3 = vector.load %arg3[%c0_3, %c0_4] : memref<1x384xf32, #tpu.memory_space<vmem>>, vector<1x384xf32>
    %4 = vector.broadcast %3 : vector<1x384xf32> to vector<32x384xf32>
    %5 = arith.addf %2, %4 : vector<32x384xf32>
    %c0_5 = arith.constant 0 : index
    %c0_6 = arith.constant 0 : index
    %6 = vector.load %arg4[%c0_5, %c0_6] : memref<32x384xf32, #tpu.memory_space<vmem>>, vector<32x384xf32>
    tpu.vector_store %arg4[%c0_5, %c0_6], %5 {strides = array<i32>} : memref<32x384xf32, #tpu.memory_space<vmem>>, vector<32x384xf32>,
    return
  }
  func.func @transform_0(%arg0: i32) -> (i32, i32) {
    %c0_i32 = arith.constant 0 : i32
    %c0_i32_0 = arith.constant 0 : i32
    return %arg0, %c0_i32 : i32, i32
  }
  func.func @transform_1(%arg0: i32) -> (i32, i32) {
    %c0_i32 = arith.constant 0 : i32
    %c0_i32_0 = arith.constant 0 : i32
    %c0_i32_1 = arith.constant 0 : i32
    return %c0_i32, %c0_i32_0 : i32, i32
  }
  func.func @transform_2(%arg0: i32) -> (i32, i32) {
    %c0_i32 = arith.constant 0 : i32
    %c0_i32_0 = arith.constant 0 : i32
    %c0_i32_1 = arith.constant 0 : i32
    return %c0_i32, %c0_i32_0 : i32, i32
  }
  func.func @transform_3(%arg0: i32) -> (i32, i32) {
    %c0_i32 = arith.constant 0 : i32
    %c0_i32_0 = arith.constant 0 : i32
    return %arg0, %c0_i32 : i32, i32
  }
}

module attributes {stable_mosaic.version = 11 : i64} {
  func.func @_linear_kernel(%arg0: i32, %arg1: memref<32x128xf32, #tpu.memory_space<vmem>>, %arg2: memref<128x128xf32, #tpu.memory_space<vmem>>, %arg3: memref<1x128xf32, #tpu.memory_space<vmem>>, %arg4: memref<32x128xf32, #tpu.memory_space<vmem>>) attributes {dimension_semantics = [#tpu.dimension_semantics<parallel>], iteration_bounds = array<i64: 1>, scalar_prefetch = 0 : i64, scratch_operands = 0 : i64, tpu.core_type = #tpu.core_type<tc>, window_params = [{transform_indices = @transform_0, window_bounds = array<i64: 32, 128>}, {pipeline_mode = #tpu.pipeline_mode<synchronous>, transform_indices = @transform_1, window_bounds = array<i64: 128, 128>}, {pipeline_mode = #tpu.pipeline_mode<synchronous>, transform_indices = @transform_2, window_bounds = array<i64: 1, 128>}, {transform_indices = @transform_3, window_bounds = array<i64: 32, 128>}]} {
    %c0 = arith.constant 0 : index
    %c0_0 = arith.constant 0 : index
    %0 = vector.load %arg1[%c0, %c0_0] : memref<32x128xf32, #tpu.memory_space<vmem>>, vector<32x128xf32>
    %c0_1 = arith.constant 0 : index
    %c0_2 = arith.constant 0 : index
    %1 = vector.load %arg2[%c0_1, %c0_2] : memref<128x128xf32, #tpu.memory_space<vmem>>, vector<128x128xf32>
    %cst = arith.constant dense<0.000000e+00> : vector<32x128xf32>
    %2 = tpu.matmul %0, %1, %cst {dimension_numbers = #tpu.dot_dimension_numbers<[1], [0], [0], [1], [0, 0, 1, 1], [], []>} : vector<32x128xf32>, vector<128x128xf32>, vector<32x128xf32> -> vector<32x128xf32>
    %c0_3 = arith.constant 0 : index
    %c0_4 = arith.constant 0 : index
    %3 = vector.load %arg3[%c0_3, %c0_4] : memref<1x128xf32, #tpu.memory_space<vmem>>, vector<1x128xf32>
    %4 = vector.broadcast %3 : vector<1x128xf32> to vector<32x128xf32>
    %5 = arith.addf %2, %4 : vector<32x128xf32>
    %c0_5 = arith.constant 0 : index
    %c0_6 = arith.constant 0 : index
    %6 = vector.load %arg4[%c0_5, %c0_6] : memref<32x128xf32, #tpu.memory_space<vmem>>, vector<32x128xf32>
    tpu.vector_store %arg4[%c0_5, %c0_6], %5 {strides = array<i32>} : memref<32x128xf32, #tpu.memory_space<vmem>>, vector<32x128xf32>,
    return
  }
  func.func @transform_0(%arg0: i32) -> (i32, i32) {
    %c0_i32 = arith.constant 0 : i32
    %c0_i32_0 = arith.constant 0 : i32
    return %arg0, %c0_i32 : i32, i32
  }
  func.func @transform_1(%arg0: i32) -> (i32, i32) {
    %c0_i32 = arith.constant 0 : i32
    %c0_i32_0 = arith.constant 0 : i32
    %c0_i32_1 = arith.constant 0 : i32
    return %c0_i32, %c0_i32_0 : i32, i32
  }
  func.func @transform_2(%arg0: i32) -> (i32, i32) {
    %c0_i32 = arith.constant 0 : i32
    %c0_i32_0 = arith.constant 0 : i32
    %c0_i32_1 = arith.constant 0 : i32
    return %c0_i32, %c0_i32_0 : i32, i32
  }
  func.func @transform_3(%arg0: i32) -> (i32, i32) {
    %c0_i32 = arith.constant 0 : i32
    %c0_i32_0 = arith.constant 0 : i32
    return %arg0, %c0_i32 : i32, i32
  }
}

module attributes {stable_mosaic.version = 11 : i64} {
  func.func @_self_attn_ln_kernel(%arg0: i32, %arg1: memref<1x16x384xf32, #tpu.memory_space<vmem>>, %arg2: memref<1x1x16x16xf32, #tpu.memory_space<vmem>>, %arg3: memref<1x16x128xf32, #tpu.memory_space<vmem>>, %arg4: memref<128x128xf32, #tpu.memory_space<vmem>>, %arg5: memref<1x128xf32, #tpu.memory_space<vmem>>, %arg6: memref<1x128xf32, #tpu.memory_space<vmem>>, %arg7: memref<1x128xf32, #tpu.memory_space<vmem>>, %arg8: memref<1x16x128xf32, #tpu.memory_space<vmem>>) attributes {dimension_semantics = [#tpu.dimension_semantics<parallel>], iteration_bounds = array<i64: 2>, scalar_prefetch = 0 : i64, scratch_operands = 0 : i64, tpu.core_type = #tpu.core_type<tc>, window_params = [{transform_indices = @transform_0, window_bounds = array<i64: 1, 16, 384>}, {transform_indices = @transform_1, window_bounds = array<i64: 1, 1, 16, 16>}, {transform_indices = @transform_2, window_bounds = array<i64: 1, 16, 128>}, {pipeline_mode = #tpu.pipeline_mode<synchronous>, transform_indices = @transform_3, window_bounds = array<i64: 128, 128>}, {pipeline_mode = #tpu.pipeline_mode<synchronous>, transform_indices = @transform_4, window_bounds = array<i64: 1, 128>}, {pipeline_mode = #tpu.pipeline_mode<synchronous>, transform_indices = @transform_5, window_bounds = array<i64: 1, 128>}, {pipeline_mode = #tpu.pipeline_mode<synchronous>, transform_indices = @transform_6, window_bounds = array<i64: 1, 128>}, {transform_indices = @transform_7, window_bounds = array<i64: 1, 16, 128>}]} {
    %c0 = arith.constant 0 : index
    %c0_0 = arith.constant 0 : index
    %c0_1 = arith.constant 0 : index
    %0 = vector.load %arg1[%c0, %c0_0, %c0_1] : memref<1x16x384xf32, #tpu.memory_space<vmem>>, vector<1x16x128xf32>
    %1 = vector.shape_cast %0 : vector<1x16x128xf32> to vector<16x128xf32>
    %c0_2 = arith.constant 0 : index
    %c0_3 = arith.constant 0 : index
    %c128 = arith.constant 128 : index
    %2 = vector.load %arg1[%c0_2, %c0_3, %c128] : memref<1x16x384xf32, #tpu.memory_space<vmem>>, vector<1x16x128xf32>
    %3 = vector.shape_cast %2 : vector<1x16x128xf32> to vector<16x128xf32>
    %c0_4 = arith.constant 0 : index
    %c0_5 = arith.constant 0 : index
    %c256 = arith.constant 256 : index
    %4 = vector.load %arg1[%c0_4, %c0_5, %c256] : memref<1x16x384xf32, #tpu.memory_space<vmem>>, vector<1x16x128xf32>
    %5 = vector.shape_cast %4 : vector<1x16x128xf32> to vector<16x128xf32>
    %c0_6 = arith.constant 0 : index
    %c0_7 = arith.constant 0 : index
    %c0_8 = arith.constant 0 : index
    %c0_9 = arith.constant 0 : index
    %6 = vector.load %arg2[%c0_6, %c0_7, %c0_8, %c0_9] : memref<1x1x16x16xf32, #tpu.memory_space<vmem>>, vector<1x1x16x16xf32>
    %7 = vector.shape_cast %6 : vector<1x1x16x16xf32> to vector<16x16xf32>
    %cst = arith.constant 0.000000e+00 : f32
    %8 = vector.broadcast %cst : f32 to vector<16x16xf32>
    %9 = arith.cmpf one, %7, %8 : vector<16x16xf32>
    %c0_10 = arith.constant 0 : index
    %c0_11 = arith.constant 0 : index
    %c0_12 = arith.constant 0 : index
    %10 = vector.load %arg3[%c0_10, %c0_11, %c0_12] : memref<1x16x128xf32, #tpu.memory_space<vmem>>, vector<1x16x128xf32>
    %11 = vector.shape_cast %10 : vector<1x16x128xf32> to vector<16x128xf32>
    %c0_13 = arith.constant 0 : index
    %c0_14 = arith.constant 0 : index
    %12 = vector.load %arg5[%c0_13, %c0_14] : memref<1x128xf32, #tpu.memory_space<vmem>>, vector<1x128xf32>
    %c0_15 = arith.constant 0 : index
    %c0_16 = arith.constant 0 : index
    %13 = vector.load %arg6[%c0_15, %c0_16] : memref<1x128xf32, #tpu.memory_space<vmem>>, vector<1x128xf32>
    %c0_17 = arith.constant 0 : index
    %c0_18 = arith.constant 0 : index
    %14 = vector.load %arg7[%c0_17, %c0_18] : memref<1x128xf32, #tpu.memory_space<vmem>>, vector<1x128xf32>
    %cst_19 = arith.constant 2.500000e-01 : f32
    %15 = vector.broadcast %cst_19 : f32 to vector<16x128xf32>
    %16 = arith.mulf %1, %15 : vector<16x128xf32>
    %17 = vector.extract_strided_slice %16 {offsets = [0, 0], sizes = [16, 16], strides = [1, 1]} : vector<16x128xf32> to vector<16x16xf32>
    %18 = vector.extract_strided_slice %3 {offsets = [0, 0], sizes = [16, 16], strides = [1, 1]} : vector<16x128xf32> to vector<16x16xf32>
    %19 = vector.extract_strided_slice %5 {offsets = [0, 0], sizes = [16, 16], strides = [1, 1]} : vector<16x128xf32> to vector<16x16xf32>
    %cst_20 = arith.constant dense<0.000000e+00> : vector<16x16xf32>
    %20 = tpu.matmul %17, %18, %cst_20 {dimension_numbers = #tpu.dot_dimension_numbers<[1], [1], [0], [0], [0, 0, 1, 0], [], []>} : vector<16x16xf32>, vector<16x16xf32>, vector<16x16xf32> -> vector<16x16xf32>
    %cst_21 = arith.constant -1.000000e+09 : f32
    %21 = vector.broadcast %cst_21 : f32 to vector<16x16xf32>
    %22 = arith.select %9, %20, %21 : vector<16x16xi1>, vector<16x16xf32>
    %cst_22 = arith.constant dense<0xFF800000> : vector<16xf32>
    %23 = vector.multi_reduction <maximumf>, %22, %cst_22 [1] : vector<16x16xf32> to vector<16xf32>
    %24 = vector.shape_cast %23 : vector<16xf32> to vector<16x1xf32>
    %25 = vector.broadcast %24 : vector<16x1xf32> to vector<16x16xf32>
    %26 = arith.subf %22, %25 : vector<16x16xf32>
    %27 = math.exp %26 : vector<16x16xf32>
    %cst_23 = arith.constant dense<0.000000e+00> : vector<16xf32>
    %28 = vector.multi_reduction <add>, %27, %cst_23 [1] : vector<16x16xf32> to vector<16xf32>
    %29 = vector.shape_cast %28 : vector<16xf32> to vector<16x1xf32>
    %30 = tpu.reciprocal %29 {approx = true} : vector<16x1xf32> -> vector<16x1xf32>
    %31 = vector.broadcast %30 : vector<16x1xf32> to vector<16x16xf32>
    %32 = arith.mulf %27, %31 : vector<16x16xf32>
    %cst_24 = arith.constant dense<0.000000e+00> : vector<16x16xf32>
    %33 = tpu.matmul %32, %19, %cst_24 {dimension_numbers = #tpu.dot_dimension_numbers<[1], [0], [0], [1], [0, 0, 1, 1], [], []>} : vector<16x16xf32>, vector<16x16xf32>, vector<16x16xf32> -> vector<16x16xf32>
    %c0_25 = arith.constant 0 : index
    %c0_26 = arith.constant 0 : index
    %34 = vector.load %arg4[%c0_25, %c0_26] : memref<128x128xf32, #tpu.memory_space<vmem>>, vector<16x128xf32>
    %cst_27 = arith.constant dense<0.000000e+00> : vector<16x128xf32>
    %35 = tpu.matmul %33, %34, %cst_27 {dimension_numbers = #tpu.dot_dimension_numbers<[1], [0], [0], [1], [0, 0, 1, 1], [], []>} : vector<16x16xf32>, vector<16x128xf32>, vector<16x128xf32> -> vector<16x128xf32>
    %36 = vector.extract_strided_slice %16 {offsets = [0, 16], sizes = [16, 16], strides = [1, 1]} : vector<16x128xf32> to vector<16x16xf32>
    %37 = vector.extract_strided_slice %3 {offsets = [0, 16], sizes = [16, 16], strides = [1, 1]} : vector<16x128xf32> to vector<16x16xf32>
    %38 = vector.extract_strided_slice %5 {offsets = [0, 16], sizes = [16, 16], strides = [1, 1]} : vector<16x128xf32> to vector<16x16xf32>
    %cst_28 = arith.constant dense<0.000000e+00> : vector<16x16xf32>
    %39 = tpu.matmul %36, %37, %cst_28 {dimension_numbers = #tpu.dot_dimension_numbers<[1], [1], [0], [0], [0, 0, 1, 0], [], []>} : vector<16x16xf32>, vector<16x16xf32>, vector<16x16xf32> -> vector<16x16xf32>
    %cst_29 = arith.constant -1.000000e+09 : f32
    %40 = vector.broadcast %cst_29 : f32 to vector<16x16xf32>
    %41 = arith.select %9, %39, %40 : vector<16x16xi1>, vector<16x16xf32>
    %cst_30 = arith.constant dense<0xFF800000> : vector<16xf32>
    %42 = vector.multi_reduction <maximumf>, %41, %cst_30 [1] : vector<16x16xf32> to vector<16xf32>
    %43 = vector.shape_cast %42 : vector<16xf32> to vector<16x1xf32>
    %44 = vector.broadcast %43 : vector<16x1xf32> to vector<16x16xf32>
    %45 = arith.subf %41, %44 : vector<16x16xf32>
    %46 = math.exp %45 : vector<16x16xf32>
    %cst_31 = arith.constant dense<0.000000e+00> : vector<16xf32>
    %47 = vector.multi_reduction <add>, %46, %cst_31 [1] : vector<16x16xf32> to vector<16xf32>
    %48 = vector.shape_cast %47 : vector<16xf32> to vector<16x1xf32>
    %49 = tpu.reciprocal %48 {approx = true} : vector<16x1xf32> -> vector<16x1xf32>
    %50 = vector.broadcast %49 : vector<16x1xf32> to vector<16x16xf32>
    %51 = arith.mulf %46, %50 : vector<16x16xf32>
    %cst_32 = arith.constant dense<0.000000e+00> : vector<16x16xf32>
    %52 = tpu.matmul %51, %38, %cst_32 {dimension_numbers = #tpu.dot_dimension_numbers<[1], [0], [0], [1], [0, 0, 1, 1], [], []>} : vector<16x16xf32>, vector<16x16xf32>, vector<16x16xf32> -> vector<16x16xf32>
    %c16 = arith.constant 16 : index
    %c0_33 = arith.constant 0 : index
    %53 = vector.load %arg4[%c16, %c0_33] : memref<128x128xf32, #tpu.memory_space<vmem>>, vector<16x128xf32>
    %cst_34 = arith.constant dense<0.000000e+00> : vector<16x128xf32>
    %54 = tpu.matmul %52, %53, %cst_34 {dimension_numbers = #tpu.dot_dimension_numbers<[1], [0], [0], [1], [0, 0, 1, 1], [], []>} : vector<16x16xf32>, vector<16x128xf32>, vector<16x128xf32> -> vector<16x128xf32>
    %55 = arith.addf %35, %54 : vector<16x128xf32>
    %56 = vector.extract_strided_slice %16 {offsets = [0, 32], sizes = [16, 16], strides = [1, 1]} : vector<16x128xf32> to vector<16x16xf32>
    %57 = vector.extract_strided_slice %3 {offsets = [0, 32], sizes = [16, 16], strides = [1, 1]} : vector<16x128xf32> to vector<16x16xf32>
    %58 = vector.extract_strided_slice %5 {offsets = [0, 32], sizes = [16, 16], strides = [1, 1]} : vector<16x128xf32> to vector<16x16xf32>
    %cst_35 = arith.constant dense<0.000000e+00> : vector<16x16xf32>
    %59 = tpu.matmul %56, %57, %cst_35 {dimension_numbers = #tpu.dot_dimension_numbers<[1], [1], [0], [0], [0, 0, 1, 0], [], []>} : vector<16x16xf32>, vector<16x16xf32>, vector<16x16xf32> -> vector<16x16xf32>
    %cst_36 = arith.constant -1.000000e+09 : f32
    %60 = vector.broadcast %cst_36 : f32 to vector<16x16xf32>
    %61 = arith.select %9, %59, %60 : vector<16x16xi1>, vector<16x16xf32>
    %cst_37 = arith.constant dense<0xFF800000> : vector<16xf32>
    %62 = vector.multi_reduction <maximumf>, %61, %cst_37 [1] : vector<16x16xf32> to vector<16xf32>
    %63 = vector.shape_cast %62 : vector<16xf32> to vector<16x1xf32>
    %64 = vector.broadcast %63 : vector<16x1xf32> to vector<16x16xf32>
    %65 = arith.subf %61, %64 : vector<16x16xf32>
    %66 = math.exp %65 : vector<16x16xf32>
    %cst_38 = arith.constant dense<0.000000e+00> : vector<16xf32>
    %67 = vector.multi_reduction <add>, %66, %cst_38 [1] : vector<16x16xf32> to vector<16xf32>
    %68 = vector.shape_cast %67 : vector<16xf32> to vector<16x1xf32>
    %69 = tpu.reciprocal %68 {approx = true} : vector<16x1xf32> -> vector<16x1xf32>
    %70 = vector.broadcast %69 : vector<16x1xf32> to vector<16x16xf32>
    %71 = arith.mulf %66, %70 : vector<16x16xf32>
    %cst_39 = arith.constant dense<0.000000e+00> : vector<16x16xf32>
    %72 = tpu.matmul %71, %58, %cst_39 {dimension_numbers = #tpu.dot_dimension_numbers<[1], [0], [0], [1], [0, 0, 1, 1], [], []>} : vector<16x16xf32>, vector<16x16xf32>, vector<16x16xf32> -> vector<16x16xf32>
    %c32 = arith.constant 32 : index
    %c0_40 = arith.constant 0 : index
    %73 = vector.load %arg4[%c32, %c0_40] : memref<128x128xf32, #tpu.memory_space<vmem>>, vector<16x128xf32>
    %cst_41 = arith.constant dense<0.000000e+00> : vector<16x128xf32>
    %74 = tpu.matmul %72, %73, %cst_41 {dimension_numbers = #tpu.dot_dimension_numbers<[1], [0], [0], [1], [0, 0, 1, 1], [], []>} : vector<16x16xf32>, vector<16x128xf32>, vector<16x128xf32> -> vector<16x128xf32>
    %75 = arith.addf %55, %74 : vector<16x128xf32>
    %76 = vector.extract_strided_slice %16 {offsets = [0, 48], sizes = [16, 16], strides = [1, 1]} : vector<16x128xf32> to vector<16x16xf32>
    %77 = vector.extract_strided_slice %3 {offsets = [0, 48], sizes = [16, 16], strides = [1, 1]} : vector<16x128xf32> to vector<16x16xf32>
    %78 = vector.extract_strided_slice %5 {offsets = [0, 48], sizes = [16, 16], strides = [1, 1]} : vector<16x128xf32> to vector<16x16xf32>
    %cst_42 = arith.constant dense<0.000000e+00> : vector<16x16xf32>
    %79 = tpu.matmul %76, %77, %cst_42 {dimension_numbers = #tpu.dot_dimension_numbers<[1], [1], [0], [0], [0, 0, 1, 0], [], []>} : vector<16x16xf32>, vector<16x16xf32>, vector<16x16xf32> -> vector<16x16xf32>
    %cst_43 = arith.constant -1.000000e+09 : f32
    %80 = vector.broadcast %cst_43 : f32 to vector<16x16xf32>
    %81 = arith.select %9, %79, %80 : vector<16x16xi1>, vector<16x16xf32>
    %cst_44 = arith.constant dense<0xFF800000> : vector<16xf32>
    %82 = vector.multi_reduction <maximumf>, %81, %cst_44 [1] : vector<16x16xf32> to vector<16xf32>
    %83 = vector.shape_cast %82 : vector<16xf32> to vector<16x1xf32>
    %84 = vector.broadcast %83 : vector<16x1xf32> to vector<16x16xf32>
    %85 = arith.subf %81, %84 : vector<16x16xf32>
    %86 = math.exp %85 : vector<16x16xf32>
    %cst_45 = arith.constant dense<0.000000e+00> : vector<16xf32>
    %87 = vector.multi_reduction <add>, %86, %cst_45 [1] : vector<16x16xf32> to vector<16xf32>
    %88 = vector.shape_cast %87 : vector<16xf32> to vector<16x1xf32>
    %89 = tpu.reciprocal %88 {approx = true} : vector<16x1xf32> -> vector<16x1xf32>
    %90 = vector.broadcast %89 : vector<16x1xf32> to vector<16x16xf32>
    %91 = arith.mulf %86, %90 : vector<16x16xf32>
    %cst_46 = arith.constant dense<0.000000e+00> : vector<16x16xf32>
    %92 = tpu.matmul %91, %78, %cst_46 {dimension_numbers = #tpu.dot_dimension_numbers<[1], [0], [0], [1], [0, 0, 1, 1], [], []>} : vector<16x16xf32>, vector<16x16xf32>, vector<16x16xf32> -> vector<16x16xf32>
    %c48 = arith.constant 48 : index
    %c0_47 = arith.constant 0 : index
    %93 = vector.load %arg4[%c48, %c0_47] : memref<128x128xf32, #tpu.memory_space<vmem>>, vector<16x128xf32>
    %cst_48 = arith.constant dense<0.000000e+00> : vector<16x128xf32>
    %94 = tpu.matmul %92, %93, %cst_48 {dimension_numbers = #tpu.dot_dimension_numbers<[1], [0], [0], [1], [0, 0, 1, 1], [], []>} : vector<16x16xf32>, vector<16x128xf32>, vector<16x128xf32> -> vector<16x128xf32>
    %95 = arith.addf %75, %94 : vector<16x128xf32>
    %96 = vector.extract_strided_slice %16 {offsets = [0, 64], sizes = [16, 16], strides = [1, 1]} : vector<16x128xf32> to vector<16x16xf32>
    %97 = vector.extract_strided_slice %3 {offsets = [0, 64], sizes = [16, 16], strides = [1, 1]} : vector<16x128xf32> to vector<16x16xf32>
    %98 = vector.extract_strided_slice %5 {offsets = [0, 64], sizes = [16, 16], strides = [1, 1]} : vector<16x128xf32> to vector<16x16xf32>
    %cst_49 = arith.constant dense<0.000000e+00> : vector<16x16xf32>
    %99 = tpu.matmul %96, %97, %cst_49 {dimension_numbers = #tpu.dot_dimension_numbers<[1], [1], [0], [0], [0, 0, 1, 0], [], []>} : vector<16x16xf32>, vector<16x16xf32>, vector<16x16xf32> -> vector<16x16xf32>
    %cst_50 = arith.constant -1.000000e+09 : f32
    %100 = vector.broadcast %cst_50 : f32 to vector<16x16xf32>
    %101 = arith.select %9, %99, %100 : vector<16x16xi1>, vector<16x16xf32>
    %cst_51 = arith.constant dense<0xFF800000> : vector<16xf32>
    %102 = vector.multi_reduction <maximumf>, %101, %cst_51 [1] : vector<16x16xf32> to vector<16xf32>
    %103 = vector.shape_cast %102 : vector<16xf32> to vector<16x1xf32>
    %104 = vector.broadcast %103 : vector<16x1xf32> to vector<16x16xf32>
    %105 = arith.subf %101, %104 : vector<16x16xf32>
    %106 = math.exp %105 : vector<16x16xf32>
    %cst_52 = arith.constant dense<0.000000e+00> : vector<16xf32>
    %107 = vector.multi_reduction <add>, %106, %cst_52 [1] : vector<16x16xf32> to vector<16xf32>
    %108 = vector.shape_cast %107 : vector<16xf32> to vector<16x1xf32>
    %109 = tpu.reciprocal %108 {approx = true} : vector<16x1xf32> -> vector<16x1xf32>
    %110 = vector.broadcast %109 : vector<16x1xf32> to vector<16x16xf32>
    %111 = arith.mulf %106, %110 : vector<16x16xf32>
    %cst_53 = arith.constant dense<0.000000e+00> : vector<16x16xf32>
    %112 = tpu.matmul %111, %98, %cst_53 {dimension_numbers = #tpu.dot_dimension_numbers<[1], [0], [0], [1], [0, 0, 1, 1], [], []>} : vector<16x16xf32>, vector<16x16xf32>, vector<16x16xf32> -> vector<16x16xf32>
    %c64 = arith.constant 64 : index
    %c0_54 = arith.constant 0 : index
    %113 = vector.load %arg4[%c64, %c0_54] : memref<128x128xf32, #tpu.memory_space<vmem>>, vector<16x128xf32>
    %cst_55 = arith.constant dense<0.000000e+00> : vector<16x128xf32>
    %114 = tpu.matmul %112, %113, %cst_55 {dimension_numbers = #tpu.dot_dimension_numbers<[1], [0], [0], [1], [0, 0, 1, 1], [], []>} : vector<16x16xf32>, vector<16x128xf32>, vector<16x128xf32> -> vector<16x128xf32>
    %115 = arith.addf %95, %114 : vector<16x128xf32>
    %116 = vector.extract_strided_slice %16 {offsets = [0, 80], sizes = [16, 16], strides = [1, 1]} : vector<16x128xf32> to vector<16x16xf32>
    %117 = vector.extract_strided_slice %3 {offsets = [0, 80], sizes = [16, 16], strides = [1, 1]} : vector<16x128xf32> to vector<16x16xf32>
    %118 = vector.extract_strided_slice %5 {offsets = [0, 80], sizes = [16, 16], strides = [1, 1]} : vector<16x128xf32> to vector<16x16xf32>
    %cst_56 = arith.constant dense<0.000000e+00> : vector<16x16xf32>
    %119 = tpu.matmul %116, %117, %cst_56 {dimension_numbers = #tpu.dot_dimension_numbers<[1], [1], [0], [0], [0, 0, 1, 0], [], []>} : vector<16x16xf32>, vector<16x16xf32>, vector<16x16xf32> -> vector<16x16xf32>
    %cst_57 = arith.constant -1.000000e+09 : f32
    %120 = vector.broadcast %cst_57 : f32 to vector<16x16xf32>
    %121 = arith.select %9, %119, %120 : vector<16x16xi1>, vector<16x16xf32>
    %cst_58 = arith.constant dense<0xFF800000> : vector<16xf32>
    %122 = vector.multi_reduction <maximumf>, %121, %cst_58 [1] : vector<16x16xf32> to vector<16xf32>
    %123 = vector.shape_cast %122 : vector<16xf32> to vector<16x1xf32>
    %124 = vector.broadcast %123 : vector<16x1xf32> to vector<16x16xf32>
    %125 = arith.subf %121, %124 : vector<16x16xf32>
    %126 = math.exp %125 : vector<16x16xf32>
    %cst_59 = arith.constant dense<0.000000e+00> : vector<16xf32>
    %127 = vector.multi_reduction <add>, %126, %cst_59 [1] : vector<16x16xf32> to vector<16xf32>
    %128 = vector.shape_cast %127 : vector<16xf32> to vector<16x1xf32>
    %129 = tpu.reciprocal %128 {approx = true} : vector<16x1xf32> -> vector<16x1xf32>
    %130 = vector.broadcast %129 : vector<16x1xf32> to vector<16x16xf32>
    %131 = arith.mulf %126, %130 : vector<16x16xf32>
    %cst_60 = arith.constant dense<0.000000e+00> : vector<16x16xf32>
    %132 = tpu.matmul %131, %118, %cst_60 {dimension_numbers = #tpu.dot_dimension_numbers<[1], [0], [0], [1], [0, 0, 1, 1], [], []>} : vector<16x16xf32>, vector<16x16xf32>, vector<16x16xf32> -> vector<16x16xf32>
    %c80 = arith.constant 80 : index
    %c0_61 = arith.constant 0 : index
    %133 = vector.load %arg4[%c80, %c0_61] : memref<128x128xf32, #tpu.memory_space<vmem>>, vector<16x128xf32>
    %cst_62 = arith.constant dense<0.000000e+00> : vector<16x128xf32>
    %134 = tpu.matmul %132, %133, %cst_62 {dimension_numbers = #tpu.dot_dimension_numbers<[1], [0], [0], [1], [0, 0, 1, 1], [], []>} : vector<16x16xf32>, vector<16x128xf32>, vector<16x128xf32> -> vector<16x128xf32>
    %135 = arith.addf %115, %134 : vector<16x128xf32>
    %136 = vector.extract_strided_slice %16 {offsets = [0, 96], sizes = [16, 16], strides = [1, 1]} : vector<16x128xf32> to vector<16x16xf32>
    %137 = vector.extract_strided_slice %3 {offsets = [0, 96], sizes = [16, 16], strides = [1, 1]} : vector<16x128xf32> to vector<16x16xf32>
    %138 = vector.extract_strided_slice %5 {offsets = [0, 96], sizes = [16, 16], strides = [1, 1]} : vector<16x128xf32> to vector<16x16xf32>
    %cst_63 = arith.constant dense<0.000000e+00> : vector<16x16xf32>
    %139 = tpu.matmul %136, %137, %cst_63 {dimension_numbers = #tpu.dot_dimension_numbers<[1], [1], [0], [0], [0, 0, 1, 0], [], []>} : vector<16x16xf32>, vector<16x16xf32>, vector<16x16xf32> -> vector<16x16xf32>
    %cst_64 = arith.constant -1.000000e+09 : f32
    %140 = vector.broadcast %cst_64 : f32 to vector<16x16xf32>
    %141 = arith.select %9, %139, %140 : vector<16x16xi1>, vector<16x16xf32>
    %cst_65 = arith.constant dense<0xFF800000> : vector<16xf32>
    %142 = vector.multi_reduction <maximumf>, %141, %cst_65 [1] : vector<16x16xf32> to vector<16xf32>
    %143 = vector.shape_cast %142 : vector<16xf32> to vector<16x1xf32>
    %144 = vector.broadcast %143 : vector<16x1xf32> to vector<16x16xf32>
    %145 = arith.subf %141, %144 : vector<16x16xf32>
    %146 = math.exp %145 : vector<16x16xf32>
    %cst_66 = arith.constant dense<0.000000e+00> : vector<16xf32>
    %147 = vector.multi_reduction <add>, %146, %cst_66 [1] : vector<16x16xf32> to vector<16xf32>
    %148 = vector.shape_cast %147 : vector<16xf32> to vector<16x1xf32>
    %149 = tpu.reciprocal %148 {approx = true} : vector<16x1xf32> -> vector<16x1xf32>
    %150 = vector.broadcast %149 : vector<16x1xf32> to vector<16x16xf32>
    %151 = arith.mulf %146, %150 : vector<16x16xf32>
    %cst_67 = arith.constant dense<0.000000e+00> : vector<16x16xf32>
    %152 = tpu.matmul %151, %138, %cst_67 {dimension_numbers = #tpu.dot_dimension_numbers<[1], [0], [0], [1], [0, 0, 1, 1], [], []>} : vector<16x16xf32>, vector<16x16xf32>, vector<16x16xf32> -> vector<16x16xf32>
    %c96 = arith.constant 96 : index
    %c0_68 = arith.constant 0 : index
    %153 = vector.load %arg4[%c96, %c0_68] : memref<128x128xf32, #tpu.memory_space<vmem>>, vector<16x128xf32>
    %cst_69 = arith.constant dense<0.000000e+00> : vector<16x128xf32>
    %154 = tpu.matmul %152, %153, %cst_69 {dimension_numbers = #tpu.dot_dimension_numbers<[1], [0], [0], [1], [0, 0, 1, 1], [], []>} : vector<16x16xf32>, vector<16x128xf32>, vector<16x128xf32> -> vector<16x128xf32>
    %155 = arith.addf %135, %154 : vector<16x128xf32>
    %156 = vector.extract_strided_slice %16 {offsets = [0, 112], sizes = [16, 16], strides = [1, 1]} : vector<16x128xf32> to vector<16x16xf32>
    %157 = vector.extract_strided_slice %3 {offsets = [0, 112], sizes = [16, 16], strides = [1, 1]} : vector<16x128xf32> to vector<16x16xf32>
    %158 = vector.extract_strided_slice %5 {offsets = [0, 112], sizes = [16, 16], strides = [1, 1]} : vector<16x128xf32> to vector<16x16xf32>
    %cst_70 = arith.constant dense<0.000000e+00> : vector<16x16xf32>
    %159 = tpu.matmul %156, %157, %cst_70 {dimension_numbers = #tpu.dot_dimension_numbers<[1], [1], [0], [0], [0, 0, 1, 0], [], []>} : vector<16x16xf32>, vector<16x16xf32>, vector<16x16xf32> -> vector<16x16xf32>
    %cst_71 = arith.constant -1.000000e+09 : f32
    %160 = vector.broadcast %cst_71 : f32 to vector<16x16xf32>
    %161 = arith.select %9, %159, %160 : vector<16x16xi1>, vector<16x16xf32>
    %cst_72 = arith.constant dense<0xFF800000> : vector<16xf32>
    %162 = vector.multi_reduction <maximumf>, %161, %cst_72 [1] : vector<16x16xf32> to vector<16xf32>
    %163 = vector.shape_cast %162 : vector<16xf32> to vector<16x1xf32>
    %164 = vector.broadcast %163 : vector<16x1xf32> to vector<16x16xf32>
    %165 = arith.subf %161, %164 : vector<16x16xf32>
    %166 = math.exp %165 : vector<16x16xf32>
    %cst_73 = arith.constant dense<0.000000e+00> : vector<16xf32>
    %167 = vector.multi_reduction <add>, %166, %cst_73 [1] : vector<16x16xf32> to vector<16xf32>
    %168 = vector.shape_cast %167 : vector<16xf32> to vector<16x1xf32>
    %169 = tpu.reciprocal %168 {approx = true} : vector<16x1xf32> -> vector<16x1xf32>
    %170 = vector.broadcast %169 : vector<16x1xf32> to vector<16x16xf32>
    %171 = arith.mulf %166, %170 : vector<16x16xf32>
    %cst_74 = arith.constant dense<0.000000e+00> : vector<16x16xf32>
    %172 = tpu.matmul %171, %158, %cst_74 {dimension_numbers = #tpu.dot_dimension_numbers<[1], [0], [0], [1], [0, 0, 1, 1], [], []>} : vector<16x16xf32>, vector<16x16xf32>, vector<16x16xf32> -> vector<16x16xf32>
    %c112 = arith.constant 112 : index
    %c0_75 = arith.constant 0 : index
    %173 = vector.load %arg4[%c112, %c0_75] : memref<128x128xf32, #tpu.memory_space<vmem>>, vector<16x128xf32>
    %cst_76 = arith.constant dense<0.000000e+00> : vector<16x128xf32>
    %174 = tpu.matmul %172, %173, %cst_76 {dimension_numbers = #tpu.dot_dimension_numbers<[1], [0], [0], [1], [0, 0, 1, 1], [], []>} : vector<16x16xf32>, vector<16x128xf32>, vector<16x128xf32> -> vector<16x128xf32>
    %175 = arith.addf %155, %174 : vector<16x128xf32>
    %176 = arith.addf %11, %175 : vector<16x128xf32>
    %177 = vector.broadcast %12 : vector<1x128xf32> to vector<16x128xf32>
    %178 = arith.addf %176, %177 : vector<16x128xf32>
    %cst_77 = arith.constant dense<0.000000e+00> : vector<16xf32>
    %179 = vector.multi_reduction <add>, %178, %cst_77 [1] : vector<16x128xf32> to vector<16xf32>
    %180 = vector.shape_cast %179 : vector<16xf32> to vector<16x1xf32>
    %cst_78 = arith.constant 1.280000e+02 : f32
    %181 = vector.broadcast %cst_78 : f32 to vector<16x1xf32>
    %182 = arith.divf %180, %181 : vector<16x1xf32>
    %183 = vector.broadcast %182 : vector<16x1xf32> to vector<16x128xf32>
    %184 = arith.subf %178, %183 : vector<16x128xf32>
    %185 = arith.mulf %184, %184 : vector<16x128xf32>
    %cst_79 = arith.constant dense<0.000000e+00> : vector<16xf32>
    %186 = vector.multi_reduction <add>, %185, %cst_79 [1] : vector<16x128xf32> to vector<16xf32>
    %187 = vector.shape_cast %186 : vector<16xf32> to vector<16x1xf32>
    %cst_80 = arith.constant 1.280000e+02 : f32
    %188 = vector.broadcast %cst_80 : f32 to vector<16x1xf32>
    %189 = arith.divf %187, %188 : vector<16x1xf32>
    %190 = vector.broadcast %182 : vector<16x1xf32> to vector<16x128xf32>
    %191 = arith.subf %178, %190 : vector<16x128xf32>
    %cst_81 = arith.constant 9.99999974E-6 : f32
    %192 = vector.broadcast %cst_81 : f32 to vector<16x1xf32>
    %193 = arith.addf %189, %192 : vector<16x1xf32>
    %194 = math.rsqrt %193 : vector<16x1xf32>
    %195 = vector.broadcast %194 : vector<16x1xf32> to vector<16x128xf32>
    %196 = arith.mulf %191, %195 : vector<16x128xf32>
    %197 = vector.broadcast %13 : vector<1x128xf32> to vector<16x128xf32>
    %198 = arith.mulf %196, %197 : vector<16x128xf32>
    %199 = vector.broadcast %14 : vector<1x128xf32> to vector<16x128xf32>
    %200 = arith.addf %198, %199 : vector<16x128xf32>
    %c0_82 = arith.constant 0 : index
    %c0_83 = arith.constant 0 : index
    %c0_84 = arith.constant 0 : index
    %201 = vector.load %arg8[%c0_82, %c0_83, %c0_84] : memref<1x16x128xf32, #tpu.memory_space<vmem>>, vector<1x16x128xf32>
    %202 = vector.shape_cast %201 : vector<1x16x128xf32> to vector<16x128xf32>
    %203 = vector.shape_cast %200 : vector<16x128xf32> to vector<1x16x128xf32>
    tpu.vector_store %arg8[%c0_82, %c0_83, %c0_84], %203 {strides = array<i32>} : memref<1x16x128xf32, #tpu.memory_space<vmem>>, vector<1x16x128xf32>,
    return
  }
  func.func @transform_0(%arg0: i32) -> (i32, i32, i32) {
    %c0_i32 = arith.constant 0 : i32
    %c0_i32_0 = arith.constant 0 : i32
    %c0_i32_1 = arith.constant 0 : i32
    return %arg0, %c0_i32, %c0_i32_0 : i32, i32, i32
  }
  func.func @transform_1(%arg0: i32) -> (i32, i32, i32, i32) {
    %c0_i32 = arith.constant 0 : i32
    %c0_i32_0 = arith.constant 0 : i32
    %c0_i32_1 = arith.constant 0 : i32
    %c0_i32_2 = arith.constant 0 : i32
    return %arg0, %c0_i32, %c0_i32_0, %c0_i32_1 : i32, i32, i32, i32
  }
  func.func @transform_2(%arg0: i32) -> (i32, i32, i32) {
    %c0_i32 = arith.constant 0 : i32
    %c0_i32_0 = arith.constant 0 : i32
    %c0_i32_1 = arith.constant 0 : i32
    return %arg0, %c0_i32, %c0_i32_0 : i32, i32, i32
  }
  func.func @transform_3(%arg0: i32) -> (i32, i32) {
    %c0_i32 = arith.constant 0 : i32
    %c0_i32_0 = arith.constant 0 : i32
    %c0_i32_1 = arith.constant 0 : i32
    return %c0_i32, %c0_i32_0 : i32, i32
  }
  func.func @transform_4(%arg0: i32) -> (i32, i32) {
    %c0_i32 = arith.constant 0 : i32
    %c0_i32_0 = arith.constant 0 : i32
    %c0_i32_1 = arith.constant 0 : i32
    return %c0_i32, %c0_i32_0 : i32, i32
  }
  func.func @transform_5(%arg0: i32) -> (i32, i32) {
    %c0_i32 = arith.constant 0 : i32
    %c0_i32_0 = arith.constant 0 : i32
    %c0_i32_1 = arith.constant 0 : i32
    return %c0_i32, %c0_i32_0 : i32, i32
  }
  func.func @transform_6(%arg0: i32) -> (i32, i32) {
    %c0_i32 = arith.constant 0 : i32
    %c0_i32_0 = arith.constant 0 : i32
    %c0_i32_1 = arith.constant 0 : i32
    return %c0_i32, %c0_i32_0 : i32, i32
  }
  func.func @transform_7(%arg0: i32) -> (i32, i32, i32) {
    %c0_i32 = arith.constant 0 : i32
    %c0_i32_0 = arith.constant 0 : i32
    %c0_i32_1 = arith.constant 0 : i32
    return %arg0, %c0_i32, %c0_i32_0 : i32, i32, i32
  }
}

module attributes {stable_mosaic.version = 11 : i64} {
  func.func @_linear_kernel(%arg0: i32, %arg1: memref<32x128xf32, #tpu.memory_space<vmem>>, %arg2: memref<128x256xf32, #tpu.memory_space<vmem>>, %arg3: memref<1x256xf32, #tpu.memory_space<vmem>>, %arg4: memref<32x256xf32, #tpu.memory_space<vmem>>) attributes {dimension_semantics = [#tpu.dimension_semantics<parallel>], iteration_bounds = array<i64: 1>, scalar_prefetch = 0 : i64, scratch_operands = 0 : i64, tpu.core_type = #tpu.core_type<tc>, window_params = [{transform_indices = @transform_0, window_bounds = array<i64: 32, 128>}, {pipeline_mode = #tpu.pipeline_mode<synchronous>, transform_indices = @transform_1, window_bounds = array<i64: 128, 256>}, {pipeline_mode = #tpu.pipeline_mode<synchronous>, transform_indices = @transform_2, window_bounds = array<i64: 1, 256>}, {transform_indices = @transform_3, window_bounds = array<i64: 32, 256>}]} {
    %c0 = arith.constant 0 : index
    %c0_0 = arith.constant 0 : index
    %0 = vector.load %arg1[%c0, %c0_0] : memref<32x128xf32, #tpu.memory_space<vmem>>, vector<32x128xf32>
    %c0_1 = arith.constant 0 : index
    %c0_2 = arith.constant 0 : index
    %1 = vector.load %arg2[%c0_1, %c0_2] : memref<128x256xf32, #tpu.memory_space<vmem>>, vector<128x256xf32>
    %cst = arith.constant dense<0.000000e+00> : vector<32x256xf32>
    %2 = tpu.matmul %0, %1, %cst {dimension_numbers = #tpu.dot_dimension_numbers<[1], [0], [0], [1], [0, 0, 1, 1], [], []>} : vector<32x128xf32>, vector<128x256xf32>, vector<32x256xf32> -> vector<32x256xf32>
    %c0_3 = arith.constant 0 : index
    %c0_4 = arith.constant 0 : index
    %3 = vector.load %arg3[%c0_3, %c0_4] : memref<1x256xf32, #tpu.memory_space<vmem>>, vector<1x256xf32>
    %4 = vector.broadcast %3 : vector<1x256xf32> to vector<32x256xf32>
    %5 = arith.addf %2, %4 : vector<32x256xf32>
    %c0_5 = arith.constant 0 : index
    %c0_6 = arith.constant 0 : index
    %6 = vector.load %arg4[%c0_5, %c0_6] : memref<32x256xf32, #tpu.memory_space<vmem>>, vector<32x256xf32>
    tpu.vector_store %arg4[%c0_5, %c0_6], %5 {strides = array<i32>} : memref<32x256xf32, #tpu.memory_space<vmem>>, vector<32x256xf32>,
    return
  }
  func.func @transform_0(%arg0: i32) -> (i32, i32) {
    %c0_i32 = arith.constant 0 : i32
    %c0_i32_0 = arith.constant 0 : i32
    return %arg0, %c0_i32 : i32, i32
  }
  func.func @transform_1(%arg0: i32) -> (i32, i32) {
    %c0_i32 = arith.constant 0 : i32
    %c0_i32_0 = arith.constant 0 : i32
    %c0_i32_1 = arith.constant 0 : i32
    return %c0_i32, %c0_i32_0 : i32, i32
  }
  func.func @transform_2(%arg0: i32) -> (i32, i32) {
    %c0_i32 = arith.constant 0 : i32
    %c0_i32_0 = arith.constant 0 : i32
    %c0_i32_1 = arith.constant 0 : i32
    return %c0_i32, %c0_i32_0 : i32, i32
  }
  func.func @transform_3(%arg0: i32) -> (i32, i32) {
    %c0_i32 = arith.constant 0 : i32
    %c0_i32_0 = arith.constant 0 : i32
    return %arg0, %c0_i32 : i32, i32
  }
}

module attributes {stable_mosaic.version = 11 : i64} {
  func.func @_ffn_ln_kernel(%arg0: i32, %arg1: memref<32x128xf32, #tpu.memory_space<vmem>>, %arg2: memref<128x256xf32, #tpu.memory_space<vmem>>, %arg3: memref<1x256xf32, #tpu.memory_space<vmem>>, %arg4: memref<256x128xf32, #tpu.memory_space<vmem>>, %arg5: memref<1x128xf32, #tpu.memory_space<vmem>>, %arg6: memref<1x128xf32, #tpu.memory_space<vmem>>, %arg7: memref<1x128xf32, #tpu.memory_space<vmem>>, %arg8: memref<32x128xf32, #tpu.memory_space<vmem>>) attributes {dimension_semantics = [#tpu.dimension_semantics<parallel>], iteration_bounds = array<i64: 1>, scalar_prefetch = 0 : i64, scratch_operands = 0 : i64, tpu.core_type = #tpu.core_type<tc>, window_params = [{transform_indices = @transform_0, window_bounds = array<i64: 32, 128>}, {pipeline_mode = #tpu.pipeline_mode<synchronous>, transform_indices = @transform_1, window_bounds = array<i64: 128, 256>}, {pipeline_mode = #tpu.pipeline_mode<synchronous>, transform_indices = @transform_2, window_bounds = array<i64: 1, 256>}, {pipeline_mode = #tpu.pipeline_mode<synchronous>, transform_indices = @transform_3, window_bounds = array<i64: 256, 128>}, {pipeline_mode = #tpu.pipeline_mode<synchronous>, transform_indices = @transform_4, window_bounds = array<i64: 1, 128>}, {pipeline_mode = #tpu.pipeline_mode<synchronous>, transform_indices = @transform_5, window_bounds = array<i64: 1, 128>}, {pipeline_mode = #tpu.pipeline_mode<synchronous>, transform_indices = @transform_6, window_bounds = array<i64: 1, 128>}, {transform_indices = @transform_7, window_bounds = array<i64: 32, 128>}]} {
    %c0 = arith.constant 0 : index
    %c0_0 = arith.constant 0 : index
    %0 = vector.load %arg1[%c0, %c0_0] : memref<32x128xf32, #tpu.memory_space<vmem>>, vector<32x128xf32>
    %c0_1 = arith.constant 0 : index
    %c0_2 = arith.constant 0 : index
    %1 = vector.load %arg2[%c0_1, %c0_2] : memref<128x256xf32, #tpu.memory_space<vmem>>, vector<128x256xf32>
    %cst = arith.constant dense<0.000000e+00> : vector<32x256xf32>
    %2 = tpu.matmul %0, %1, %cst {dimension_numbers = #tpu.dot_dimension_numbers<[1], [0], [0], [1], [0, 0, 1, 1], [], []>} : vector<32x128xf32>, vector<128x256xf32>, vector<32x256xf32> -> vector<32x256xf32>
    %c0_3 = arith.constant 0 : index
    %c0_4 = arith.constant 0 : index
    %3 = vector.load %arg3[%c0_3, %c0_4] : memref<1x256xf32, #tpu.memory_space<vmem>>, vector<1x256xf32>
    %4 = vector.broadcast %3 : vector<1x256xf32> to vector<32x256xf32>
    %5 = arith.addf %2, %4 : vector<32x256xf32>
    %cst_5 = arith.constant 0.000000e+00 : f32
    %6 = vector.broadcast %cst_5 : f32 to vector<32x256xf32>
    %7 = arith.maximumf %5, %6 : vector<32x256xf32>
    %c0_6 = arith.constant 0 : index
    %c0_7 = arith.constant 0 : index
    %8 = vector.load %arg4[%c0_6, %c0_7] : memref<256x128xf32, #tpu.memory_space<vmem>>, vector<256x128xf32>
    %cst_8 = arith.constant dense<0.000000e+00> : vector<32x128xf32>
    %9 = tpu.matmul %7, %8, %cst_8 {dimension_numbers = #tpu.dot_dimension_numbers<[1], [0], [0], [1], [0, 0, 1, 1], [], []>} : vector<32x256xf32>, vector<256x128xf32>, vector<32x128xf32> -> vector<32x128xf32>
    %c0_9 = arith.constant 0 : index
    %c0_10 = arith.constant 0 : index
    %10 = vector.load %arg5[%c0_9, %c0_10] : memref<1x128xf32, #tpu.memory_space<vmem>>, vector<1x128xf32>
    %11 = vector.broadcast %10 : vector<1x128xf32> to vector<32x128xf32>
    %12 = arith.addf %9, %11 : vector<32x128xf32>
    %13 = arith.addf %0, %12 : vector<32x128xf32>
    %cst_11 = arith.constant dense<0.000000e+00> : vector<32xf32>
    %14 = vector.multi_reduction <add>, %13, %cst_11 [1] : vector<32x128xf32> to vector<32xf32>
    %15 = vector.shape_cast %14 : vector<32xf32> to vector<32x1xf32>
    %cst_12 = arith.constant 1.280000e+02 : f32
    %16 = vector.broadcast %cst_12 : f32 to vector<32x1xf32>
    %17 = arith.divf %15, %16 : vector<32x1xf32>
    %18 = vector.broadcast %17 : vector<32x1xf32> to vector<32x128xf32>
    %19 = arith.subf %13, %18 : vector<32x128xf32>
    %20 = arith.mulf %19, %19 : vector<32x128xf32>
    %cst_13 = arith.constant dense<0.000000e+00> : vector<32xf32>
    %21 = vector.multi_reduction <add>, %20, %cst_13 [1] : vector<32x128xf32> to vector<32xf32>
    %22 = vector.shape_cast %21 : vector<32xf32> to vector<32x1xf32>
    %cst_14 = arith.constant 1.280000e+02 : f32
    %23 = vector.broadcast %cst_14 : f32 to vector<32x1xf32>
    %24 = arith.divf %22, %23 : vector<32x1xf32>
    %25 = vector.broadcast %17 : vector<32x1xf32> to vector<32x128xf32>
    %26 = arith.subf %13, %25 : vector<32x128xf32>
    %cst_15 = arith.constant 9.99999974E-6 : f32
    %27 = vector.broadcast %cst_15 : f32 to vector<32x1xf32>
    %28 = arith.addf %24, %27 : vector<32x1xf32>
    %29 = math.rsqrt %28 : vector<32x1xf32>
    %30 = vector.broadcast %29 : vector<32x1xf32> to vector<32x128xf32>
    %31 = arith.mulf %26, %30 : vector<32x128xf32>
    %c0_16 = arith.constant 0 : index
    %c0_17 = arith.constant 0 : index
    %32 = vector.load %arg6[%c0_16, %c0_17] : memref<1x128xf32, #tpu.memory_space<vmem>>, vector<1x128xf32>
    %33 = vector.broadcast %32 : vector<1x128xf32> to vector<32x128xf32>
    %34 = arith.mulf %31, %33 : vector<32x128xf32>
    %c0_18 = arith.constant 0 : index
    %c0_19 = arith.constant 0 : index
    %35 = vector.load %arg7[%c0_18, %c0_19] : memref<1x128xf32, #tpu.memory_space<vmem>>, vector<1x128xf32>
    %36 = vector.broadcast %35 : vector<1x128xf32> to vector<32x128xf32>
    %37 = arith.addf %34, %36 : vector<32x128xf32>
    %c0_20 = arith.constant 0 : index
    %c0_21 = arith.constant 0 : index
    %38 = vector.load %arg8[%c0_20, %c0_21] : memref<32x128xf32, #tpu.memory_space<vmem>>, vector<32x128xf32>
    tpu.vector_store %arg8[%c0_20, %c0_21], %37 {strides = array<i32>} : memref<32x128xf32, #tpu.memory_space<vmem>>, vector<32x128xf32>,
    return
  }
  func.func @transform_0(%arg0: i32) -> (i32, i32) {
    %c0_i32 = arith.constant 0 : i32
    %c0_i32_0 = arith.constant 0 : i32
    return %arg0, %c0_i32 : i32, i32
  }
  func.func @transform_1(%arg0: i32) -> (i32, i32) {
    %c0_i32 = arith.constant 0 : i32
    %c0_i32_0 = arith.constant 0 : i32
    %c0_i32_1 = arith.constant 0 : i32
    return %c0_i32, %c0_i32_0 : i32, i32
  }
  func.func @transform_2(%arg0: i32) -> (i32, i32) {
    %c0_i32 = arith.constant 0 : i32
    %c0_i32_0 = arith.constant 0 : i32
    %c0_i32_1 = arith.constant 0 : i32
    return %c0_i32, %c0_i32_0 : i32, i32
  }
  func.func @transform_3(%arg0: i32) -> (i32, i32) {
    %c0_i32 = arith.constant 0 : i32
    %c0_i32_0 = arith.constant 0 : i32
    %c0_i32_1 = arith.constant 0 : i32
    return %c0_i32, %c0_i32_0 : i32, i32
  }
  func.func @transform_4(%arg0: i32) -> (i32, i32) {
    %c0_i32 = arith.constant 0 : i32
    %c0_i32_0 = arith.constant 0 : i32
    %c0_i32_1 = arith.constant 0 : i32
    return %c0_i32, %c0_i32_0 : i32, i32
  }
  func.func @transform_5(%arg0: i32) -> (i32, i32) {
    %c0_i32 = arith.constant 0 : i32
    %c0_i32_0 = arith.constant 0 : i32
    %c0_i32_1 = arith.constant 0 : i32
    return %c0_i32, %c0_i32_0 : i32, i32
  }
  func.func @transform_6(%arg0: i32) -> (i32, i32) {
    %c0_i32 = arith.constant 0 : i32
    %c0_i32_0 = arith.constant 0 : i32
    %c0_i32_1 = arith.constant 0 : i32
    return %c0_i32, %c0_i32_0 : i32, i32
  }
  func.func @transform_7(%arg0: i32) -> (i32, i32) {
    %c0_i32 = arith.constant 0 : i32
    %c0_i32_0 = arith.constant 0 : i32
    return %arg0, %c0_i32 : i32, i32
  }
}

module attributes {stable_mosaic.version = 11 : i64} {
  func.func @_cross_attn_ln_kernel(%arg0: i32, %arg1: memref<1x16x128xf32, #tpu.memory_space<vmem>>, %arg2: memref<1x16x256xf32, #tpu.memory_space<vmem>>, %arg3: memref<1x1x16x16xf32, #tpu.memory_space<vmem>>, %arg4: memref<1x16x128xf32, #tpu.memory_space<vmem>>, %arg5: memref<128x128xf32, #tpu.memory_space<vmem>>, %arg6: memref<1x128xf32, #tpu.memory_space<vmem>>, %arg7: memref<1x128xf32, #tpu.memory_space<vmem>>, %arg8: memref<1x128xf32, #tpu.memory_space<vmem>>, %arg9: memref<1x16x128xf32, #tpu.memory_space<vmem>>) attributes {dimension_semantics = [#tpu.dimension_semantics<parallel>], iteration_bounds = array<i64: 2>, scalar_prefetch = 0 : i64, scratch_operands = 0 : i64, tpu.core_type = #tpu.core_type<tc>, window_params = [{transform_indices = @transform_0, window_bounds = array<i64: 1, 16, 128>}, {transform_indices = @transform_1, window_bounds = array<i64: 1, 16, 256>}, {transform_indices = @transform_2, window_bounds = array<i64: 1, 1, 16, 16>}, {transform_indices = @transform_3, window_bounds = array<i64: 1, 16, 128>}, {pipeline_mode = #tpu.pipeline_mode<synchronous>, transform_indices = @transform_4, window_bounds = array<i64: 128, 128>}, {pipeline_mode = #tpu.pipeline_mode<synchronous>, transform_indices = @transform_5, window_bounds = array<i64: 1, 128>}, {pipeline_mode = #tpu.pipeline_mode<synchronous>, transform_indices = @transform_6, window_bounds = array<i64: 1, 128>}, {pipeline_mode = #tpu.pipeline_mode<synchronous>, transform_indices = @transform_7, window_bounds = array<i64: 1, 128>}, {transform_indices = @transform_8, window_bounds = array<i64: 1, 16, 128>}]} {
    %c0 = arith.constant 0 : index
    %c0_0 = arith.constant 0 : index
    %c0_1 = arith.constant 0 : index
    %0 = vector.load %arg1[%c0, %c0_0, %c0_1] : memref<1x16x128xf32, #tpu.memory_space<vmem>>, vector<1x16x128xf32>
    %1 = vector.shape_cast %0 : vector<1x16x128xf32> to vector<16x128xf32>
    %c0_2 = arith.constant 0 : index
    %c0_3 = arith.constant 0 : index
    %c0_4 = arith.constant 0 : index
    %2 = vector.load %arg2[%c0_2, %c0_3, %c0_4] : memref<1x16x256xf32, #tpu.memory_space<vmem>>, vector<1x16x128xf32>
    %3 = vector.shape_cast %2 : vector<1x16x128xf32> to vector<16x128xf32>
    %c0_5 = arith.constant 0 : index
    %c0_6 = arith.constant 0 : index
    %c128 = arith.constant 128 : index
    %4 = vector.load %arg2[%c0_5, %c0_6, %c128] : memref<1x16x256xf32, #tpu.memory_space<vmem>>, vector<1x16x128xf32>
    %5 = vector.shape_cast %4 : vector<1x16x128xf32> to vector<16x128xf32>
    %c0_7 = arith.constant 0 : index
    %c0_8 = arith.constant 0 : index
    %c0_9 = arith.constant 0 : index
    %c0_10 = arith.constant 0 : index
    %6 = vector.load %arg3[%c0_7, %c0_8, %c0_9, %c0_10] : memref<1x1x16x16xf32, #tpu.memory_space<vmem>>, vector<1x1x16x16xf32>
    %7 = vector.shape_cast %6 : vector<1x1x16x16xf32> to vector<16x16xf32>
    %cst = arith.constant 0.000000e+00 : f32
    %8 = vector.broadcast %cst : f32 to vector<16x16xf32>
    %9 = arith.cmpf one, %7, %8 : vector<16x16xf32>
    %c0_11 = arith.constant 0 : index
    %c0_12 = arith.constant 0 : index
    %c0_13 = arith.constant 0 : index
    %10 = vector.load %arg4[%c0_11, %c0_12, %c0_13] : memref<1x16x128xf32, #tpu.memory_space<vmem>>, vector<1x16x128xf32>
    %11 = vector.shape_cast %10 : vector<1x16x128xf32> to vector<16x128xf32>
    %c0_14 = arith.constant 0 : index
    %c0_15 = arith.constant 0 : index
    %12 = vector.load %arg6[%c0_14, %c0_15] : memref<1x128xf32, #tpu.memory_space<vmem>>, vector<1x128xf32>
    %c0_16 = arith.constant 0 : index
    %c0_17 = arith.constant 0 : index
    %13 = vector.load %arg7[%c0_16, %c0_17] : memref<1x128xf32, #tpu.memory_space<vmem>>, vector<1x128xf32>
    %c0_18 = arith.constant 0 : index
    %c0_19 = arith.constant 0 : index
    %14 = vector.load %arg8[%c0_18, %c0_19] : memref<1x128xf32, #tpu.memory_space<vmem>>, vector<1x128xf32>
    %cst_20 = arith.constant 2.500000e-01 : f32
    %15 = vector.broadcast %cst_20 : f32 to vector<16x128xf32>
    %16 = arith.mulf %1, %15 : vector<16x128xf32>
    %17 = vector.extract_strided_slice %16 {offsets = [0, 0], sizes = [16, 16], strides = [1, 1]} : vector<16x128xf32> to vector<16x16xf32>
    %18 = vector.extract_strided_slice %3 {offsets = [0, 0], sizes = [16, 16], strides = [1, 1]} : vector<16x128xf32> to vector<16x16xf32>
    %19 = vector.extract_strided_slice %5 {offsets = [0, 0], sizes = [16, 16], strides = [1, 1]} : vector<16x128xf32> to vector<16x16xf32>
    %cst_21 = arith.constant dense<0.000000e+00> : vector<16x16xf32>
    %20 = tpu.matmul %17, %18, %cst_21 {dimension_numbers = #tpu.dot_dimension_numbers<[1], [1], [0], [0], [0, 0, 1, 0], [], []>} : vector<16x16xf32>, vector<16x16xf32>, vector<16x16xf32> -> vector<16x16xf32>
    %cst_22 = arith.constant -1.000000e+09 : f32
    %21 = vector.broadcast %cst_22 : f32 to vector<16x16xf32>
    %22 = arith.select %9, %20, %21 : vector<16x16xi1>, vector<16x16xf32>
    %cst_23 = arith.constant dense<0xFF800000> : vector<16xf32>
    %23 = vector.multi_reduction <maximumf>, %22, %cst_23 [1] : vector<16x16xf32> to vector<16xf32>
    %24 = vector.shape_cast %23 : vector<16xf32> to vector<16x1xf32>
    %25 = vector.broadcast %24 : vector<16x1xf32> to vector<16x16xf32>
    %26 = arith.subf %22, %25 : vector<16x16xf32>
    %27 = math.exp %26 : vector<16x16xf32>
    %cst_24 = arith.constant dense<0.000000e+00> : vector<16xf32>
    %28 = vector.multi_reduction <add>, %27, %cst_24 [1] : vector<16x16xf32> to vector<16xf32>
    %29 = vector.shape_cast %28 : vector<16xf32> to vector<16x1xf32>
    %30 = tpu.reciprocal %29 {approx = true} : vector<16x1xf32> -> vector<16x1xf32>
    %31 = vector.broadcast %30 : vector<16x1xf32> to vector<16x16xf32>
    %32 = arith.mulf %27, %31 : vector<16x16xf32>
    %cst_25 = arith.constant dense<0.000000e+00> : vector<16x16xf32>
    %33 = tpu.matmul %32, %19, %cst_25 {dimension_numbers = #tpu.dot_dimension_numbers<[1], [0], [0], [1], [0, 0, 1, 1], [], []>} : vector<16x16xf32>, vector<16x16xf32>, vector<16x16xf32> -> vector<16x16xf32>
    %c0_26 = arith.constant 0 : index
    %c0_27 = arith.constant 0 : index
    %34 = vector.load %arg5[%c0_26, %c0_27] : memref<128x128xf32, #tpu.memory_space<vmem>>, vector<16x128xf32>
    %cst_28 = arith.constant dense<0.000000e+00> : vector<16x128xf32>
    %35 = tpu.matmul %33, %34, %cst_28 {dimension_numbers = #tpu.dot_dimension_numbers<[1], [0], [0], [1], [0, 0, 1, 1], [], []>} : vector<16x16xf32>, vector<16x128xf32>, vector<16x128xf32> -> vector<16x128xf32>
    %36 = vector.extract_strided_slice %16 {offsets = [0, 16], sizes = [16, 16], strides = [1, 1]} : vector<16x128xf32> to vector<16x16xf32>
    %37 = vector.extract_strided_slice %3 {offsets = [0, 16], sizes = [16, 16], strides = [1, 1]} : vector<16x128xf32> to vector<16x16xf32>
    %38 = vector.extract_strided_slice %5 {offsets = [0, 16], sizes = [16, 16], strides = [1, 1]} : vector<16x128xf32> to vector<16x16xf32>
    %cst_29 = arith.constant dense<0.000000e+00> : vector<16x16xf32>
    %39 = tpu.matmul %36, %37, %cst_29 {dimension_numbers = #tpu.dot_dimension_numbers<[1], [1], [0], [0], [0, 0, 1, 0], [], []>} : vector<16x16xf32>, vector<16x16xf32>, vector<16x16xf32> -> vector<16x16xf32>
    %cst_30 = arith.constant -1.000000e+09 : f32
    %40 = vector.broadcast %cst_30 : f32 to vector<16x16xf32>
    %41 = arith.select %9, %39, %40 : vector<16x16xi1>, vector<16x16xf32>
    %cst_31 = arith.constant dense<0xFF800000> : vector<16xf32>
    %42 = vector.multi_reduction <maximumf>, %41, %cst_31 [1] : vector<16x16xf32> to vector<16xf32>
    %43 = vector.shape_cast %42 : vector<16xf32> to vector<16x1xf32>
    %44 = vector.broadcast %43 : vector<16x1xf32> to vector<16x16xf32>
    %45 = arith.subf %41, %44 : vector<16x16xf32>
    %46 = math.exp %45 : vector<16x16xf32>
    %cst_32 = arith.constant dense<0.000000e+00> : vector<16xf32>
    %47 = vector.multi_reduction <add>, %46, %cst_32 [1] : vector<16x16xf32> to vector<16xf32>
    %48 = vector.shape_cast %47 : vector<16xf32> to vector<16x1xf32>
    %49 = tpu.reciprocal %48 {approx = true} : vector<16x1xf32> -> vector<16x1xf32>
    %50 = vector.broadcast %49 : vector<16x1xf32> to vector<16x16xf32>
    %51 = arith.mulf %46, %50 : vector<16x16xf32>
    %cst_33 = arith.constant dense<0.000000e+00> : vector<16x16xf32>
    %52 = tpu.matmul %51, %38, %cst_33 {dimension_numbers = #tpu.dot_dimension_numbers<[1], [0], [0], [1], [0, 0, 1, 1], [], []>} : vector<16x16xf32>, vector<16x16xf32>, vector<16x16xf32> -> vector<16x16xf32>
    %c16 = arith.constant 16 : index
    %c0_34 = arith.constant 0 : index
    %53 = vector.load %arg5[%c16, %c0_34] : memref<128x128xf32, #tpu.memory_space<vmem>>, vector<16x128xf32>
    %cst_35 = arith.constant dense<0.000000e+00> : vector<16x128xf32>
    %54 = tpu.matmul %52, %53, %cst_35 {dimension_numbers = #tpu.dot_dimension_numbers<[1], [0], [0], [1], [0, 0, 1, 1], [], []>} : vector<16x16xf32>, vector<16x128xf32>, vector<16x128xf32> -> vector<16x128xf32>
    %55 = arith.addf %35, %54 : vector<16x128xf32>
    %56 = vector.extract_strided_slice %16 {offsets = [0, 32], sizes = [16, 16], strides = [1, 1]} : vector<16x128xf32> to vector<16x16xf32>
    %57 = vector.extract_strided_slice %3 {offsets = [0, 32], sizes = [16, 16], strides = [1, 1]} : vector<16x128xf32> to vector<16x16xf32>
    %58 = vector.extract_strided_slice %5 {offsets = [0, 32], sizes = [16, 16], strides = [1, 1]} : vector<16x128xf32> to vector<16x16xf32>
    %cst_36 = arith.constant dense<0.000000e+00> : vector<16x16xf32>
    %59 = tpu.matmul %56, %57, %cst_36 {dimension_numbers = #tpu.dot_dimension_numbers<[1], [1], [0], [0], [0, 0, 1, 0], [], []>} : vector<16x16xf32>, vector<16x16xf32>, vector<16x16xf32> -> vector<16x16xf32>
    %cst_37 = arith.constant -1.000000e+09 : f32
    %60 = vector.broadcast %cst_37 : f32 to vector<16x16xf32>
    %61 = arith.select %9, %59, %60 : vector<16x16xi1>, vector<16x16xf32>
    %cst_38 = arith.constant dense<0xFF800000> : vector<16xf32>
    %62 = vector.multi_reduction <maximumf>, %61, %cst_38 [1] : vector<16x16xf32> to vector<16xf32>
    %63 = vector.shape_cast %62 : vector<16xf32> to vector<16x1xf32>
    %64 = vector.broadcast %63 : vector<16x1xf32> to vector<16x16xf32>
    %65 = arith.subf %61, %64 : vector<16x16xf32>
    %66 = math.exp %65 : vector<16x16xf32>
    %cst_39 = arith.constant dense<0.000000e+00> : vector<16xf32>
    %67 = vector.multi_reduction <add>, %66, %cst_39 [1] : vector<16x16xf32> to vector<16xf32>
    %68 = vector.shape_cast %67 : vector<16xf32> to vector<16x1xf32>
    %69 = tpu.reciprocal %68 {approx = true} : vector<16x1xf32> -> vector<16x1xf32>
    %70 = vector.broadcast %69 : vector<16x1xf32> to vector<16x16xf32>
    %71 = arith.mulf %66, %70 : vector<16x16xf32>
    %cst_40 = arith.constant dense<0.000000e+00> : vector<16x16xf32>
    %72 = tpu.matmul %71, %58, %cst_40 {dimension_numbers = #tpu.dot_dimension_numbers<[1], [0], [0], [1], [0, 0, 1, 1], [], []>} : vector<16x16xf32>, vector<16x16xf32>, vector<16x16xf32> -> vector<16x16xf32>
    %c32 = arith.constant 32 : index
    %c0_41 = arith.constant 0 : index
    %73 = vector.load %arg5[%c32, %c0_41] : memref<128x128xf32, #tpu.memory_space<vmem>>, vector<16x128xf32>
    %cst_42 = arith.constant dense<0.000000e+00> : vector<16x128xf32>
    %74 = tpu.matmul %72, %73, %cst_42 {dimension_numbers = #tpu.dot_dimension_numbers<[1], [0], [0], [1], [0, 0, 1, 1], [], []>} : vector<16x16xf32>, vector<16x128xf32>, vector<16x128xf32> -> vector<16x128xf32>
    %75 = arith.addf %55, %74 : vector<16x128xf32>
    %76 = vector.extract_strided_slice %16 {offsets = [0, 48], sizes = [16, 16], strides = [1, 1]} : vector<16x128xf32> to vector<16x16xf32>
    %77 = vector.extract_strided_slice %3 {offsets = [0, 48], sizes = [16, 16], strides = [1, 1]} : vector<16x128xf32> to vector<16x16xf32>
    %78 = vector.extract_strided_slice %5 {offsets = [0, 48], sizes = [16, 16], strides = [1, 1]} : vector<16x128xf32> to vector<16x16xf32>
    %cst_43 = arith.constant dense<0.000000e+00> : vector<16x16xf32>
    %79 = tpu.matmul %76, %77, %cst_43 {dimension_numbers = #tpu.dot_dimension_numbers<[1], [1], [0], [0], [0, 0, 1, 0], [], []>} : vector<16x16xf32>, vector<16x16xf32>, vector<16x16xf32> -> vector<16x16xf32>
    %cst_44 = arith.constant -1.000000e+09 : f32
    %80 = vector.broadcast %cst_44 : f32 to vector<16x16xf32>
    %81 = arith.select %9, %79, %80 : vector<16x16xi1>, vector<16x16xf32>
    %cst_45 = arith.constant dense<0xFF800000> : vector<16xf32>
    %82 = vector.multi_reduction <maximumf>, %81, %cst_45 [1] : vector<16x16xf32> to vector<16xf32>
    %83 = vector.shape_cast %82 : vector<16xf32> to vector<16x1xf32>
    %84 = vector.broadcast %83 : vector<16x1xf32> to vector<16x16xf32>
    %85 = arith.subf %81, %84 : vector<16x16xf32>
    %86 = math.exp %85 : vector<16x16xf32>
    %cst_46 = arith.constant dense<0.000000e+00> : vector<16xf32>
    %87 = vector.multi_reduction <add>, %86, %cst_46 [1] : vector<16x16xf32> to vector<16xf32>
    %88 = vector.shape_cast %87 : vector<16xf32> to vector<16x1xf32>
    %89 = tpu.reciprocal %88 {approx = true} : vector<16x1xf32> -> vector<16x1xf32>
    %90 = vector.broadcast %89 : vector<16x1xf32> to vector<16x16xf32>
    %91 = arith.mulf %86, %90 : vector<16x16xf32>
    %cst_47 = arith.constant dense<0.000000e+00> : vector<16x16xf32>
    %92 = tpu.matmul %91, %78, %cst_47 {dimension_numbers = #tpu.dot_dimension_numbers<[1], [0], [0], [1], [0, 0, 1, 1], [], []>} : vector<16x16xf32>, vector<16x16xf32>, vector<16x16xf32> -> vector<16x16xf32>
    %c48 = arith.constant 48 : index
    %c0_48 = arith.constant 0 : index
    %93 = vector.load %arg5[%c48, %c0_48] : memref<128x128xf32, #tpu.memory_space<vmem>>, vector<16x128xf32>
    %cst_49 = arith.constant dense<0.000000e+00> : vector<16x128xf32>
    %94 = tpu.matmul %92, %93, %cst_49 {dimension_numbers = #tpu.dot_dimension_numbers<[1], [0], [0], [1], [0, 0, 1, 1], [], []>} : vector<16x16xf32>, vector<16x128xf32>, vector<16x128xf32> -> vector<16x128xf32>
    %95 = arith.addf %75, %94 : vector<16x128xf32>
    %96 = vector.extract_strided_slice %16 {offsets = [0, 64], sizes = [16, 16], strides = [1, 1]} : vector<16x128xf32> to vector<16x16xf32>
    %97 = vector.extract_strided_slice %3 {offsets = [0, 64], sizes = [16, 16], strides = [1, 1]} : vector<16x128xf32> to vector<16x16xf32>
    %98 = vector.extract_strided_slice %5 {offsets = [0, 64], sizes = [16, 16], strides = [1, 1]} : vector<16x128xf32> to vector<16x16xf32>
    %cst_50 = arith.constant dense<0.000000e+00> : vector<16x16xf32>
    %99 = tpu.matmul %96, %97, %cst_50 {dimension_numbers = #tpu.dot_dimension_numbers<[1], [1], [0], [0], [0, 0, 1, 0], [], []>} : vector<16x16xf32>, vector<16x16xf32>, vector<16x16xf32> -> vector<16x16xf32>
    %cst_51 = arith.constant -1.000000e+09 : f32
    %100 = vector.broadcast %cst_51 : f32 to vector<16x16xf32>
    %101 = arith.select %9, %99, %100 : vector<16x16xi1>, vector<16x16xf32>
    %cst_52 = arith.constant dense<0xFF800000> : vector<16xf32>
    %102 = vector.multi_reduction <maximumf>, %101, %cst_52 [1] : vector<16x16xf32> to vector<16xf32>
    %103 = vector.shape_cast %102 : vector<16xf32> to vector<16x1xf32>
    %104 = vector.broadcast %103 : vector<16x1xf32> to vector<16x16xf32>
    %105 = arith.subf %101, %104 : vector<16x16xf32>
    %106 = math.exp %105 : vector<16x16xf32>
    %cst_53 = arith.constant dense<0.000000e+00> : vector<16xf32>
    %107 = vector.multi_reduction <add>, %106, %cst_53 [1] : vector<16x16xf32> to vector<16xf32>
    %108 = vector.shape_cast %107 : vector<16xf32> to vector<16x1xf32>
    %109 = tpu.reciprocal %108 {approx = true} : vector<16x1xf32> -> vector<16x1xf32>
    %110 = vector.broadcast %109 : vector<16x1xf32> to vector<16x16xf32>
    %111 = arith.mulf %106, %110 : vector<16x16xf32>
    %cst_54 = arith.constant dense<0.000000e+00> : vector<16x16xf32>
    %112 = tpu.matmul %111, %98, %cst_54 {dimension_numbers = #tpu.dot_dimension_numbers<[1], [0], [0], [1], [0, 0, 1, 1], [], []>} : vector<16x16xf32>, vector<16x16xf32>, vector<16x16xf32> -> vector<16x16xf32>
    %c64 = arith.constant 64 : index
    %c0_55 = arith.constant 0 : index
    %113 = vector.load %arg5[%c64, %c0_55] : memref<128x128xf32, #tpu.memory_space<vmem>>, vector<16x128xf32>
    %cst_56 = arith.constant dense<0.000000e+00> : vector<16x128xf32>
    %114 = tpu.matmul %112, %113, %cst_56 {dimension_numbers = #tpu.dot_dimension_numbers<[1], [0], [0], [1], [0, 0, 1, 1], [], []>} : vector<16x16xf32>, vector<16x128xf32>, vector<16x128xf32> -> vector<16x128xf32>
    %115 = arith.addf %95, %114 : vector<16x128xf32>
    %116 = vector.extract_strided_slice %16 {offsets = [0, 80], sizes = [16, 16], strides = [1, 1]} : vector<16x128xf32> to vector<16x16xf32>
    %117 = vector.extract_strided_slice %3 {offsets = [0, 80], sizes = [16, 16], strides = [1, 1]} : vector<16x128xf32> to vector<16x16xf32>
    %118 = vector.extract_strided_slice %5 {offsets = [0, 80], sizes = [16, 16], strides = [1, 1]} : vector<16x128xf32> to vector<16x16xf32>
    %cst_57 = arith.constant dense<0.000000e+00> : vector<16x16xf32>
    %119 = tpu.matmul %116, %117, %cst_57 {dimension_numbers = #tpu.dot_dimension_numbers<[1], [1], [0], [0], [0, 0, 1, 0], [], []>} : vector<16x16xf32>, vector<16x16xf32>, vector<16x16xf32> -> vector<16x16xf32>
    %cst_58 = arith.constant -1.000000e+09 : f32
    %120 = vector.broadcast %cst_58 : f32 to vector<16x16xf32>
    %121 = arith.select %9, %119, %120 : vector<16x16xi1>, vector<16x16xf32>
    %cst_59 = arith.constant dense<0xFF800000> : vector<16xf32>
    %122 = vector.multi_reduction <maximumf>, %121, %cst_59 [1] : vector<16x16xf32> to vector<16xf32>
    %123 = vector.shape_cast %122 : vector<16xf32> to vector<16x1xf32>
    %124 = vector.broadcast %123 : vector<16x1xf32> to vector<16x16xf32>
    %125 = arith.subf %121, %124 : vector<16x16xf32>
    %126 = math.exp %125 : vector<16x16xf32>
    %cst_60 = arith.constant dense<0.000000e+00> : vector<16xf32>
    %127 = vector.multi_reduction <add>, %126, %cst_60 [1] : vector<16x16xf32> to vector<16xf32>
    %128 = vector.shape_cast %127 : vector<16xf32> to vector<16x1xf32>
    %129 = tpu.reciprocal %128 {approx = true} : vector<16x1xf32> -> vector<16x1xf32>
    %130 = vector.broadcast %129 : vector<16x1xf32> to vector<16x16xf32>
    %131 = arith.mulf %126, %130 : vector<16x16xf32>
    %cst_61 = arith.constant dense<0.000000e+00> : vector<16x16xf32>
    %132 = tpu.matmul %131, %118, %cst_61 {dimension_numbers = #tpu.dot_dimension_numbers<[1], [0], [0], [1], [0, 0, 1, 1], [], []>} : vector<16x16xf32>, vector<16x16xf32>, vector<16x16xf32> -> vector<16x16xf32>
    %c80 = arith.constant 80 : index
    %c0_62 = arith.constant 0 : index
    %133 = vector.load %arg5[%c80, %c0_62] : memref<128x128xf32, #tpu.memory_space<vmem>>, vector<16x128xf32>
    %cst_63 = arith.constant dense<0.000000e+00> : vector<16x128xf32>
    %134 = tpu.matmul %132, %133, %cst_63 {dimension_numbers = #tpu.dot_dimension_numbers<[1], [0], [0], [1], [0, 0, 1, 1], [], []>} : vector<16x16xf32>, vector<16x128xf32>, vector<16x128xf32> -> vector<16x128xf32>
    %135 = arith.addf %115, %134 : vector<16x128xf32>
    %136 = vector.extract_strided_slice %16 {offsets = [0, 96], sizes = [16, 16], strides = [1, 1]} : vector<16x128xf32> to vector<16x16xf32>
    %137 = vector.extract_strided_slice %3 {offsets = [0, 96], sizes = [16, 16], strides = [1, 1]} : vector<16x128xf32> to vector<16x16xf32>
    %138 = vector.extract_strided_slice %5 {offsets = [0, 96], sizes = [16, 16], strides = [1, 1]} : vector<16x128xf32> to vector<16x16xf32>
    %cst_64 = arith.constant dense<0.000000e+00> : vector<16x16xf32>
    %139 = tpu.matmul %136, %137, %cst_64 {dimension_numbers = #tpu.dot_dimension_numbers<[1], [1], [0], [0], [0, 0, 1, 0], [], []>} : vector<16x16xf32>, vector<16x16xf32>, vector<16x16xf32> -> vector<16x16xf32>
    %cst_65 = arith.constant -1.000000e+09 : f32
    %140 = vector.broadcast %cst_65 : f32 to vector<16x16xf32>
    %141 = arith.select %9, %139, %140 : vector<16x16xi1>, vector<16x16xf32>
    %cst_66 = arith.constant dense<0xFF800000> : vector<16xf32>
    %142 = vector.multi_reduction <maximumf>, %141, %cst_66 [1] : vector<16x16xf32> to vector<16xf32>
    %143 = vector.shape_cast %142 : vector<16xf32> to vector<16x1xf32>
    %144 = vector.broadcast %143 : vector<16x1xf32> to vector<16x16xf32>
    %145 = arith.subf %141, %144 : vector<16x16xf32>
    %146 = math.exp %145 : vector<16x16xf32>
    %cst_67 = arith.constant dense<0.000000e+00> : vector<16xf32>
    %147 = vector.multi_reduction <add>, %146, %cst_67 [1] : vector<16x16xf32> to vector<16xf32>
    %148 = vector.shape_cast %147 : vector<16xf32> to vector<16x1xf32>
    %149 = tpu.reciprocal %148 {approx = true} : vector<16x1xf32> -> vector<16x1xf32>
    %150 = vector.broadcast %149 : vector<16x1xf32> to vector<16x16xf32>
    %151 = arith.mulf %146, %150 : vector<16x16xf32>
    %cst_68 = arith.constant dense<0.000000e+00> : vector<16x16xf32>
    %152 = tpu.matmul %151, %138, %cst_68 {dimension_numbers = #tpu.dot_dimension_numbers<[1], [0], [0], [1], [0, 0, 1, 1], [], []>} : vector<16x16xf32>, vector<16x16xf32>, vector<16x16xf32> -> vector<16x16xf32>
    %c96 = arith.constant 96 : index
    %c0_69 = arith.constant 0 : index
    %153 = vector.load %arg5[%c96, %c0_69] : memref<128x128xf32, #tpu.memory_space<vmem>>, vector<16x128xf32>
    %cst_70 = arith.constant dense<0.000000e+00> : vector<16x128xf32>
    %154 = tpu.matmul %152, %153, %cst_70 {dimension_numbers = #tpu.dot_dimension_numbers<[1], [0], [0], [1], [0, 0, 1, 1], [], []>} : vector<16x16xf32>, vector<16x128xf32>, vector<16x128xf32> -> vector<16x128xf32>
    %155 = arith.addf %135, %154 : vector<16x128xf32>
    %156 = vector.extract_strided_slice %16 {offsets = [0, 112], sizes = [16, 16], strides = [1, 1]} : vector<16x128xf32> to vector<16x16xf32>
    %157 = vector.extract_strided_slice %3 {offsets = [0, 112], sizes = [16, 16], strides = [1, 1]} : vector<16x128xf32> to vector<16x16xf32>
    %158 = vector.extract_strided_slice %5 {offsets = [0, 112], sizes = [16, 16], strides = [1, 1]} : vector<16x128xf32> to vector<16x16xf32>
    %cst_71 = arith.constant dense<0.000000e+00> : vector<16x16xf32>
    %159 = tpu.matmul %156, %157, %cst_71 {dimension_numbers = #tpu.dot_dimension_numbers<[1], [1], [0], [0], [0, 0, 1, 0], [], []>} : vector<16x16xf32>, vector<16x16xf32>, vector<16x16xf32> -> vector<16x16xf32>
    %cst_72 = arith.constant -1.000000e+09 : f32
    %160 = vector.broadcast %cst_72 : f32 to vector<16x16xf32>
    %161 = arith.select %9, %159, %160 : vector<16x16xi1>, vector<16x16xf32>
    %cst_73 = arith.constant dense<0xFF800000> : vector<16xf32>
    %162 = vector.multi_reduction <maximumf>, %161, %cst_73 [1] : vector<16x16xf32> to vector<16xf32>
    %163 = vector.shape_cast %162 : vector<16xf32> to vector<16x1xf32>
    %164 = vector.broadcast %163 : vector<16x1xf32> to vector<16x16xf32>
    %165 = arith.subf %161, %164 : vector<16x16xf32>
    %166 = math.exp %165 : vector<16x16xf32>
    %cst_74 = arith.constant dense<0.000000e+00> : vector<16xf32>
    %167 = vector.multi_reduction <add>, %166, %cst_74 [1] : vector<16x16xf32> to vector<16xf32>
    %168 = vector.shape_cast %167 : vector<16xf32> to vector<16x1xf32>
    %169 = tpu.reciprocal %168 {approx = true} : vector<16x1xf32> -> vector<16x1xf32>
    %170 = vector.broadcast %169 : vector<16x1xf32> to vector<16x16xf32>
    %171 = arith.mulf %166, %170 : vector<16x16xf32>
    %cst_75 = arith.constant dense<0.000000e+00> : vector<16x16xf32>
    %172 = tpu.matmul %171, %158, %cst_75 {dimension_numbers = #tpu.dot_dimension_numbers<[1], [0], [0], [1], [0, 0, 1, 1], [], []>} : vector<16x16xf32>, vector<16x16xf32>, vector<16x16xf32> -> vector<16x16xf32>
    %c112 = arith.constant 112 : index
    %c0_76 = arith.constant 0 : index
    %173 = vector.load %arg5[%c112, %c0_76] : memref<128x128xf32, #tpu.memory_space<vmem>>, vector<16x128xf32>
    %cst_77 = arith.constant dense<0.000000e+00> : vector<16x128xf32>
    %174 = tpu.matmul %172, %173, %cst_77 {dimension_numbers = #tpu.dot_dimension_numbers<[1], [0], [0], [1], [0, 0, 1, 1], [], []>} : vector<16x16xf32>, vector<16x128xf32>, vector<16x128xf32> -> vector<16x128xf32>
    %175 = arith.addf %155, %174 : vector<16x128xf32>
    %176 = arith.addf %11, %175 : vector<16x128xf32>
    %177 = vector.broadcast %12 : vector<1x128xf32> to vector<16x128xf32>
    %178 = arith.addf %176, %177 : vector<16x128xf32>
    %cst_78 = arith.constant dense<0.000000e+00> : vector<16xf32>
    %179 = vector.multi_reduction <add>, %178, %cst_78 [1] : vector<16x128xf32> to vector<16xf32>
    %180 = vector.shape_cast %179 : vector<16xf32> to vector<16x1xf32>
    %cst_79 = arith.constant 1.280000e+02 : f32
    %181 = vector.broadcast %cst_79 : f32 to vector<16x1xf32>
    %182 = arith.divf %180, %181 : vector<16x1xf32>
    %183 = vector.broadcast %182 : vector<16x1xf32> to vector<16x128xf32>
    %184 = arith.subf %178, %183 : vector<16x128xf32>
    %185 = arith.mulf %184, %184 : vector<16x128xf32>
    %cst_80 = arith.constant dense<0.000000e+00> : vector<16xf32>
    %186 = vector.multi_reduction <add>, %185, %cst_80 [1] : vector<16x128xf32> to vector<16xf32>
    %187 = vector.shape_cast %186 : vector<16xf32> to vector<16x1xf32>
    %cst_81 = arith.constant 1.280000e+02 : f32
    %188 = vector.broadcast %cst_81 : f32 to vector<16x1xf32>
    %189 = arith.divf %187, %188 : vector<16x1xf32>
    %190 = vector.broadcast %182 : vector<16x1xf32> to vector<16x128xf32>
    %191 = arith.subf %178, %190 : vector<16x128xf32>
    %cst_82 = arith.constant 9.99999974E-6 : f32
    %192 = vector.broadcast %cst_82 : f32 to vector<16x1xf32>
    %193 = arith.addf %189, %192 : vector<16x1xf32>
    %194 = math.rsqrt %193 : vector<16x1xf32>
    %195 = vector.broadcast %194 : vector<16x1xf32> to vector<16x128xf32>
    %196 = arith.mulf %191, %195 : vector<16x128xf32>
    %197 = vector.broadcast %13 : vector<1x128xf32> to vector<16x128xf32>
    %198 = arith.mulf %196, %197 : vector<16x128xf32>
    %199 = vector.broadcast %14 : vector<1x128xf32> to vector<16x128xf32>
    %200 = arith.addf %198, %199 : vector<16x128xf32>
    %c0_83 = arith.constant 0 : index
    %c0_84 = arith.constant 0 : index
    %c0_85 = arith.constant 0 : index
    %201 = vector.load %arg9[%c0_83, %c0_84, %c0_85] : memref<1x16x128xf32, #tpu.memory_space<vmem>>, vector<1x16x128xf32>
    %202 = vector.shape_cast %201 : vector<1x16x128xf32> to vector<16x128xf32>
    %203 = vector.shape_cast %200 : vector<16x128xf32> to vector<1x16x128xf32>
    tpu.vector_store %arg9[%c0_83, %c0_84, %c0_85], %203 {strides = array<i32>} : memref<1x16x128xf32, #tpu.memory_space<vmem>>, vector<1x16x128xf32>,
    return
  }
  func.func @transform_0(%arg0: i32) -> (i32, i32, i32) {
    %c0_i32 = arith.constant 0 : i32
    %c0_i32_0 = arith.constant 0 : i32
    %c0_i32_1 = arith.constant 0 : i32
    return %arg0, %c0_i32, %c0_i32_0 : i32, i32, i32
  }
  func.func @transform_1(%arg0: i32) -> (i32, i32, i32) {
    %c0_i32 = arith.constant 0 : i32
    %c0_i32_0 = arith.constant 0 : i32
    %c0_i32_1 = arith.constant 0 : i32
    return %arg0, %c0_i32, %c0_i32_0 : i32, i32, i32
  }
  func.func @transform_2(%arg0: i32) -> (i32, i32, i32, i32) {
    %c0_i32 = arith.constant 0 : i32
    %c0_i32_0 = arith.constant 0 : i32
    %c0_i32_1 = arith.constant 0 : i32
    %c0_i32_2 = arith.constant 0 : i32
    return %arg0, %c0_i32, %c0_i32_0, %c0_i32_1 : i32, i32, i32, i32
  }
  func.func @transform_3(%arg0: i32) -> (i32, i32, i32) {
    %c0_i32 = arith.constant 0 : i32
    %c0_i32_0 = arith.constant 0 : i32
    %c0_i32_1 = arith.constant 0 : i32
    return %arg0, %c0_i32, %c0_i32_0 : i32, i32, i32
  }
  func.func @transform_4(%arg0: i32) -> (i32, i32) {
    %c0_i32 = arith.constant 0 : i32
    %c0_i32_0 = arith.constant 0 : i32
    %c0_i32_1 = arith.constant 0 : i32
    return %c0_i32, %c0_i32_0 : i32, i32
  }
  func.func @transform_5(%arg0: i32) -> (i32, i32) {
    %c0_i32 = arith.constant 0 : i32
    %c0_i32_0 = arith.constant 0 : i32
    %c0_i32_1 = arith.constant 0 : i32
    return %c0_i32, %c0_i32_0 : i32, i32
  }
  func.func @transform_6(%arg0: i32) -> (i32, i32) {
    %c0_i32 = arith.constant 0 : i32
    %c0_i32_0 = arith.constant 0 : i32
    %c0_i32_1 = arith.constant 0 : i32
    return %c0_i32, %c0_i32_0 : i32, i32
  }
  func.func @transform_7(%arg0: i32) -> (i32, i32) {
    %c0_i32 = arith.constant 0 : i32
    %c0_i32_0 = arith.constant 0 : i32
    %c0_i32_1 = arith.constant 0 : i32
    return %c0_i32, %c0_i32_0 : i32, i32
  }
  func.func @transform_8(%arg0: i32) -> (i32, i32, i32) {
    %c0_i32 = arith.constant 0 : i32
    %c0_i32_0 = arith.constant 0 : i32
    %c0_i32_1 = arith.constant 0 : i32
    return %arg0, %c0_i32, %c0_i32_0 : i32, i32, i32
  }
}

</mosaic_0001>

<llo_original>
// kernel: decoder_layer.8
$region0: #{decoder_layer.8}
  #allocation0 [shape = 'u32[]', space=smem, size = 0x4, offset = 0x4, fixed_abs, tag = 'smem constant byte address 0x4 - core index']
  #allocation1 [shape = 'u32[72,128]{1,0:T(1,128)}', space=vmem, size = 0x9000, scoped, tag = 'internal scratch']
  %s0 = inlined_call_operand.vmem [shape: f32[32,128], index: 0, kind: input, shape index: {}]
  %s1 = inlined_call_operand.hbm [shape: f32[128,128], index: 1, kind: input, shape index: {}]
  %s2 = inlined_call_operand.vmem [shape: f32[1,128], index: 2, kind: input, shape index: {}]
  %s3 = inlined_call_operand.vmem [shape: f32[32,128], index: 3, kind: output, shape index: {}]
  %s4 = sld [smem:[#allocation0]]
  $region26: #{decoder_layer.8} parent=0
    _
  %s6 = ssub.s32 1, %s4
  %s7 = scalar_select 0, %s6, %s4
  $region1: #{decoder_layer.8} parent=0
    #allocation2 [shape = 'u8[65536]{0}', space=vmem, size = 0x10000, scoped, tag = 'input window, operand 1, single buffered']
    #allocation3 [shape = 's32[1]{0}', space=sflag, size = 0x4, scoped, tag = 'scoped memory for decoder_layer.8']
    %8 = vsyncpa [#allocation3], 0
    // Predicated region
    $region2: #{decoder_layer.8} parent=1 // pred_check
      _
    $region3: #{decoder_layer.8} parent=1 // pred_check_branch
      %10 = sbr.rel (0) target = $region5
    $region4: #{decoder_layer.8} parent=1 // pred_region
      _
    $region5: #{decoder_layer.8} parent=1 // pred_fallthru
      _
    // Predicated region
    $region6: #{decoder_layer.8} parent=1 // pred_check
      _
    $region7: #{decoder_layer.8} parent=1 // pred_check_branch
      %12 = sbr.rel (0) target = $region9
    $region8: #{decoder_layer.8} parent=1 // pred_region
      %14 = vsyncadd [#allocation3], 0
      %s15 = sshll.u32 %s1, 4
      %s16 = int_to_ptr.hbm [resolvable:$true] %s15
      %s17 = sshll.u32 [#allocation2], 4
      %s18 = int_to_ptr.vmem [resolvable:$true] %s17
      %23 = dma.hbm_to_vmem [thread:$0]  %s16, 2048, %s18, [#allocation3], 128, 128, 8
    $region9: #{decoder_layer.8} parent=1 // pred_fallthru
      _
    // Predicated region
    $region10: #{decoder_layer.8} parent=1 // pred_check
      _
    $region11: #{decoder_layer.8} parent=1 // pred_check_branch
      %25 = sbr.rel (0) target = $region13
    $region12: #{decoder_layer.8} parent=1 // pred_region
      _
    $region13: #{decoder_layer.8} parent=1 // pred_fallthru
      _
    // Predicated region
    $region14: #{decoder_layer.8} parent=1 // pred_check
      _
    $region15: #{decoder_layer.8} parent=1 // pred_check_branch
      %27 = sbr.rel (0) target = $region17
    $region16: #{decoder_layer.8} parent=1 // pred_region
      %29 = dma.done [#allocation3], 2048
    $region17: #{decoder_layer.8} parent=1 // pred_fallthru
      _
    %v30 = vld [vmem:[%s0] sm:$0xff]
    %v31 = vld [vmem:[%s0 + $0x8] sm:$0xff]
    %v32 = vld [vmem:[%s0 + $0x10] sm:$0xff]
    %v33 = vld [vmem:[%s0 + $0x18] sm:$0xff]
    %v34 = vld [vmem:[#allocation2] sm:$0xff]
    %v35 = vld [vmem:[#allocation2 + $0x8] sm:$0xff]
    %v36 = vld [vmem:[#allocation2 + $0x10] sm:$0xff]
    %v37 = vld [vmem:[#allocation2 + $0x18] sm:$0xff]
    %v38 = vld [vmem:[#allocation2 + $0x20] sm:$0xff]
    %v39 = vld [vmem:[#allocation2 + $0x28] sm:$0xff]
    %v40 = vld [vmem:[#allocation2 + $0x30] sm:$0xff]
    %v41 = vld [vmem:[#allocation2 + $0x38] sm:$0xff]
    %v42 = vld [vmem:[#allocation2 + $0x40] sm:$0xff]
    %v43 = vld [vmem:[#allocation2 + $0x48] sm:$0xff]
    %v44 = vld [vmem:[#allocation2 + $0x50] sm:$0xff]
    %v45 = vld [vmem:[#allocation2 + $0x58] sm:$0xff]
    %v46 = vld [vmem:[#allocation2 + $0x60] sm:$0xff]
    %v47 = vld [vmem:[#allocation2 + $0x68] sm:$0xff]
    %v48 = vld [vmem:[#allocation2 + $0x70] sm:$0xff]
    %v49 = vld [vmem:[#allocation2 + $0x78] sm:$0xff]
    %v50 = vld [vmem:[%s2] sm:$0x1]
    %v52 = vperm.slane %v50, 0
    %54 = vmatpush.msra.mxu0 %v49
    %55 = vmatpush.msra.mxu0 %v48
    %56 = vmatpush.msra.mxu0 %v47
    %57 = vmatpush.msra.mxu0 %v46
    %58 = vmatpush.msra.mxu0 %v45
    %59 = vmatpush.msra.mxu0 %v44
    %60 = vmatpush.msra.mxu0 %v43
    %61 = vmatpush.msra.mxu0 %v42
    %62 = vmatpush.msra.mxu0 %v41
    %63 = vmatpush.msra.mxu0 %v40
    %64 = vmatpush.msra.mxu0 %v39
    %65 = vmatpush.msra.mxu0 %v38
    %66 = vmatpush.msra.mxu0 %v37
    %67 = vmatpush.msra.mxu0 %v36
    %68 = vmatpush.msra.mxu0 %v35
    %69 = vmatpush.msra.mxu0 %v34
    %70 = vmatmul.f32.gmra.mxu0 %v30
    %v71 = vpop.f32.mrf.mxu0
    %v72 = vadd.f32 %v52, %v71
    %73 = vmatmul.f32.gmra.mxu0 %v31
    %v74 = vpop.f32.mrf.mxu0
    %v75 = vadd.f32 %v52, %v74
    %76 = vmatmul.f32.gmra.mxu0 %v32
    %v77 = vpop.f32.mrf.mxu0
    %v78 = vadd.f32 %v52, %v77
    %79 = vmatmul.f32.gmra.mxu0 %v33
    %v80 = vpop.f32.mrf.mxu0
    %v81 = vadd.f32 %v52, %v80
    %82 = vdwg.mxu0
    %83 = vst [vmem:[%s3] sm:$0xff] %v72
    %84 = vst [vmem:[%s3 + $0x8] sm:$0xff] %v75
    %85 = vst [vmem:[%s3 + $0x10] sm:$0xff] %v78
    %86 = vst [vmem:[%s3 + $0x18] sm:$0xff] %v81
    // Predicated region
    $region18: #{decoder_layer.8} parent=1 // pred_check
      _
    $region19: #{decoder_layer.8} parent=1 // pred_check_branch
      %88 = sbr.rel (0) target = $region21
    $region20: #{decoder_layer.8} parent=1 // pred_region
      _
    $region21: #{decoder_layer.8} parent=1 // pred_fallthru
      _
    // Predicated region
    $region22: #{decoder_layer.8} parent=1 // pred_check
      _
    $region23: #{decoder_layer.8} parent=1 // pred_check_branch
      %90 = sbr.rel (0) target = $region25
    $region24: #{decoder_layer.8} parent=1 // pred_region
      _
    $region25: #{decoder_layer.8} parent=1 // pred_fallthru
      _
    %91 = vsyncpa [#allocation3], 1

// kernel: decoder_layer.6
$region0: #{decoder_layer.6}
  #allocation0 [shape = 'u32[]', space=smem, size = 0x4, offset = 0x4, fixed_abs, tag = 'smem constant byte address 0x4 - core index']
  #allocation1 [shape = 'u32[72,128]{1,0:T(1,128)}', space=vmem, size = 0x9000, scoped, tag = 'internal scratch']
  %s0 = inlined_call_operand.hbm [shape: f32[32,128], index: 0, kind: input, shape index: {}]
  %s1 = inlined_call_operand.hbm [shape: f32[128,384], index: 1, kind: input, shape index: {}]
  %s2 = inlined_call_operand.vmem [shape: f32[1,384], index: 2, kind: input, shape index: {}]
  %s3 = inlined_call_operand.vmem [shape: f32[32,384], index: 3, kind: output, shape index: {}]
  %s4 = sld [smem:[#allocation0]]
  $region30: #{decoder_layer.6} parent=0
    _
  %s6 = ssub.s32 1, %s4
  %s7 = scalar_select 0, %s6, %s4
  $region1: #{decoder_layer.6} parent=0
    #allocation2 [shape = 'u8[16384]{0}', space=vmem, size = 0x4000, scoped, tag = 'input window, operand 0, single buffered']
    #allocation3 [shape = 's32[1]{0}', space=sflag, size = 0x4, scoped, tag = 'scoped memory for decoder_layer.6']
    #allocation4 [shape = 'u8[196608]{0}', space=vmem, size = 0x30000, scoped, tag = 'input window, operand 1, single buffered']
    #allocation5 [shape = 's32[1]{0}', space=sflag, size = 0x4, scoped, tag = 'scoped memory for decoder_layer.6']
    %8 = vsyncpa [#allocation3], 0
    %9 = vsyncpa [#allocation5], 0
    // Predicated region
    $region2: #{decoder_layer.6} parent=1 // pred_check
      _
    $region3: #{decoder_layer.6} parent=1 // pred_check_branch
      %11 = sbr.rel (0) target = $region5
    $region4: #{decoder_layer.6} parent=1 // pred_region
      %13 = vsyncadd [#allocation3], 0
      %s14 = sshll.u32 %s0, 4
      %s15 = int_to_ptr.hbm [resolvable:$true] %s14
      %s16 = sshll.u32 [#allocation2], 4
      %s17 = int_to_ptr.vmem [resolvable:$true] %s16
      %22 = dma.hbm_to_vmem [thread:$0]  %s15, 512, %s17, [#allocation3], 128, 128, 8
    $region5: #{decoder_layer.6} parent=1 // pred_fallthru
      _
    // Predicated region
    $region6: #{decoder_layer.6} parent=1 // pred_check
      _
    $region7: #{decoder_layer.6} parent=1 // pred_check_branch
      %24 = sbr.rel (0) target = $region9
    $region8: #{decoder_layer.6} parent=1 // pred_region
      %26 = vsyncadd [#allocation5], 0
      %s27 = sshll.u32 %s1, 4
      %s28 = int_to_ptr.hbm [resolvable:$true] %s27
      %s29 = sshll.u32 [#allocation4], 4
      %s30 = int_to_ptr.vmem [resolvable:$true] %s29
      %35 = dma.hbm_to_vmem [thread:$0]  %s28, 6144, %s30, [#allocation5], 384, 384, 24
    $region9: #{decoder_layer.6} parent=1 // pred_fallthru
      _
    // Predicated region
    $region10: #{decoder_layer.6} parent=1 // pred_check
      _
    $region11: #{decoder_layer.6} parent=1 // pred_check_branch
      %37 = sbr.rel (0) target = $region13
    $region12: #{decoder_layer.6} parent=1 // pred_region
      _
    $region13: #{decoder_layer.6} parent=1 // pred_fallthru
      _
    // Predicated region
    $region14: #{decoder_layer.6} parent=1 // pred_check
      _
    $region15: #{decoder_layer.6} parent=1 // pred_check_branch
      %39 = sbr.rel (0) target = $region17
    $region16: #{decoder_layer.6} parent=1 // pred_region
      %41 = dma.done [#allocation3], 512
    $region17: #{decoder_layer.6} parent=1 // pred_fallthru
      _
    // Predicated region
    $region18: #{decoder_layer.6} parent=1 // pred_check
      _
    $region19: #{decoder_layer.6} parent=1 // pred_check_branch
      %43 = sbr.rel (0) target = $region21
    $region20: #{decoder_layer.6} parent=1 // pred_region
      %45 = dma.done [#allocation5], 6144
    $region21: #{decoder_layer.6} parent=1 // pred_fallthru
      _
    %v46 = vld [vmem:[#allocation2] sm:$0xff]
    %v47 = vld [vmem:[#allocation2 + $0x8] sm:$0xff]
    %v48 = vld [vmem:[#allocation2 + $0x10] sm:$0xff]
    %v49 = vld [vmem:[#allocation2 + $0x18] sm:$0xff]
    %v50 = vld [vmem:[#allocation4] sm:$0xff]
    %v51 = vld [vmem:[#allocation4 + $0x8] sm:$0xff]
    %v52 = vld [vmem:[#allocation4 + $0x10] sm:$0xff]
    %v53 = vld [vmem:[#allocation4 + $0x18] sm:$0xff]
    %v54 = vld [vmem:[#allocation4 + $0x20] sm:$0xff]
    %v55 = vld [vmem:[#allocation4 + $0x28] sm:$0xff]
    %v56 = vld [vmem:[#allocation4 + $0x30] sm:$0xff]
    %v57 = vld [vmem:[#allocation4 + $0x38] sm:$0xff]
    %v58 = vld [vmem:[#allocation4 + $0x40] sm:$0xff]
    %v59 = vld [vmem:[#allocation4 + $0x48] sm:$0xff]
    %v60 = vld [vmem:[#allocation4 + $0x50] sm:$0xff]
    %v61 = vld [vmem:[#allocation4 + $0x58] sm:$0xff]
    %v62 = vld [vmem:[#allocation4 + $0x60] sm:$0xff]
    %v63 = vld [vmem:[#allocation4 + $0x68] sm:$0xff]
    %v64 = vld [vmem:[#allocation4 + $0x70] sm:$0xff]
    %v65 = vld [vmem:[#allocation4 + $0x78] sm:$0xff]
    %v66 = vld [vmem:[#allocation4 + $0x80] sm:$0xff]
    %v67 = vld [vmem:[#allocation4 + $0x88] sm:$0xff]
    %v68 = vld [vmem:[#allocation4 + $0x90] sm:$0xff]
    %v69 = vld [vmem:[#allocation4 + $0x98] sm:$0xff]
    %v70 = vld [vmem:[#allocation4 + $0xa0] sm:$0xff]
    %v71 = vld [vmem:[#allocation4 + $0xa8] sm:$0xff]
    %v72 = vld [vmem:[#allocation4 + $0xb0] sm:$0xff]
    %v73 = vld [vmem:[#allocation4 + $0xb8] sm:$0xff]
    %v74 = vld [vmem:[#allocation4 + $0xc0] sm:$0xff]
    %v75 = vld [vmem:[#allocation4 + $0xc8] sm:$0xff]
    %v76 = vld [vmem:[#allocation4 + $0xd0] sm:$0xff]
    %v77 = vld [vmem:[#allocation4 + $0xd8] sm:$0xff]
    %v78 = vld [vmem:[#allocation4 + $0xe0] sm:$0xff]
    %v79 = vld [vmem:[#allocation4 + $0xe8] sm:$0xff]
    %v80 = vld [vmem:[#allocation4 + $0xf0] sm:$0xff]
    %v81 = vld [vmem:[#allocation4 + $0xf8] sm:$0xff]
    %v82 = vld [vmem:[#allocation4 + $0x100] sm:$0xff]
    %v83 = vld [vmem:[#allocation4 + $0x108] sm:$0xff]
    %v84 = vld [vmem:[#allocation4 + $0x110] sm:$0xff]
    %v85 = vld [vmem:[#allocation4 + $0x118] sm:$0xff]
    %v86 = vld [vmem:[#allocation4 + $0x120] sm:$0xff]
    %v87 = vld [vmem:[#allocation4 + $0x128] sm:$0xff]
    %v88 = vld [vmem:[#allocation4 + $0x130] sm:$0xff]
    %v89 = vld [vmem:[#allocation4 + $0x138] sm:$0xff]
    %v90 = vld [vmem:[#allocation4 + $0x140] sm:$0xff]
    %v91 = vld [vmem:[#allocation4 + $0x148] sm:$0xff]
    %v92 = vld [vmem:[#allocation4 + $0x150] sm:$0xff]
    %v93 = vld [vmem:[#allocation4 + $0x158] sm:$0xff]
    %v94 = vld [vmem:[#allocation4 + $0x160] sm:$0xff]
    %v95 = vld [vmem:[#allocation4 + $0x168] sm:$0xff]
    %v96 = vld [vmem:[#allocation4 + $0x170] sm:$0xff]
    %v97 = vld [vmem:[#allocation4 + $0x178] sm:$0xff]
    %v98 = vld [vmem:[%s2] sm:$0x7]
    %v100 = vperm.slane %v98, 0
    %v101 = vperm.slane %v98, 1
    %v102 = vperm.slane %v98, 2
    %106 = vmatpush.msra.mxu0 %v95
    %107 = vmatpush.msra.mxu0 %v92
    %108 = vmatpush.msra.mxu0 %v89
    %109 = vmatpush.msra.mxu0 %v86
    %110 = vmatpush.msra.mxu0 %v83
    %111 = vmatpush.msra.mxu0 %v80
    %112 = vmatpush.msra.mxu0 %v77
    %113 = vmatpush.msra.mxu0 %v74
    %114 = vmatpush.msra.mxu0 %v71
    %115 = vmatpush.msra.mxu0 %v68
    %116 = vmatpush.msra.mxu0 %v65
    %117 = vmatpush.msra.mxu0 %v62
    %118 = vmatpush.msra.mxu0 %v59
    %119 = vmatpush.msra.mxu0 %v56
    %120 = vmatpush.msra.mxu0 %v53
    %121 = vmatpush.msra.mxu0 %v50
    %122 = vmatmul.f32.gmra.mxu0 %v46
    %v123 = vpop.f32.mrf.mxu0
    %v124 = vadd.f32 %v100, %v123
    %125 = vmatmul.f32.gmra.mxu0 %v47
    %v126 = vpop.f32.mrf.mxu0
    %v127 = vadd.f32 %v100, %v126
    %128 = vmatmul.f32.gmra.mxu0 %v48
    %v129 = vpop.f32.mrf.mxu0
    %v130 = vadd.f32 %v100, %v129
    %131 = vmatmul.f32.gmra.mxu0 %v49
    %v132 = vpop.f32.mrf.mxu0
    %v133 = vadd.f32 %v100, %v132
    %134 = vdwg.mxu0
    %135 = vmatpush.msra.mxu0 %v96
    %136 = vmatpush.msra.mxu0 %v93
    %137 = vmatpush.msra.mxu0 %v90
    %138 = vmatpush.msra.mxu0 %v87
    %139 = vmatpush.msra.mxu0 %v84
    %140 = vmatpush.msra.mxu0 %v81
    %141 = vmatpush.msra.mxu0 %v78
    %142 = vmatpush.msra.mxu0 %v75
    %143 = vmatpush.msra.mxu0 %v72
    %144 = vmatpush.msra.mxu0 %v69
    %145 = vmatpush.msra.mxu0 %v66
    %146 = vmatpush.msra.mxu0 %v63
    %147 = vmatpush.msra.mxu0 %v60
    %148 = vmatpush.msra.mxu0 %v57
    %149 = vmatpush.msra.mxu0 %v54
    %150 = vmatpush.msra.mxu0 %v51
    %151 = vmatmul.f32.gmra.mxu0 %v46
    %v152 = vpop.f32.mrf.mxu0
    %v153 = vadd.f32 %v101, %v152
    %154 = vmatmul.f32.gmra.mxu0 %v47
    %v155 = vpop.f32.mrf.mxu0
    %v156 = vadd.f32 %v101, %v155
    %157 = vmatmul.f32.gmra.mxu0 %v48
    %v158 = vpop.f32.mrf.mxu0
    %v159 = vadd.f32 %v101, %v158
    %160 = vmatmul.f32.gmra.mxu0 %v49
    %v161 = vpop.f32.mrf.mxu0
    %v162 = vadd.f32 %v101, %v161
    %163 = vdwg.mxu0
    %164 = vmatpush.msra.mxu0 %v97
    %165 = vmatpush.msra.mxu0 %v94
    %166 = vmatpush.msra.mxu0 %v91
    %167 = vmatpush.msra.mxu0 %v88
    %168 = vmatpush.msra.mxu0 %v85
    %169 = vmatpush.msra.mxu0 %v82
    %170 = vmatpush.msra.mxu0 %v79
    %171 = vmatpush.msra.mxu0 %v76
    %172 = vmatpush.msra.mxu0 %v73
    %173 = vmatpush.msra.mxu0 %v70
    %174 = vmatpush.msra.mxu0 %v67
    %175 = vmatpush.msra.mxu0 %v64
    %176 = vmatpush.msra.mxu0 %v61
    %177 = vmatpush.msra.mxu0 %v58
    %178 = vmatpush.msra.mxu0 %v55
    %179 = vmatpush.msra.mxu0 %v52
    %180 = vmatmul.f32.gmra.mxu0 %v46
    %v181 = vpop.f32.mrf.mxu0
    %v182 = vadd.f32 %v102, %v181
    %183 = vmatmul.f32.gmra.mxu0 %v47
    %v184 = vpop.f32.mrf.mxu0
    %v185 = vadd.f32 %v102, %v184
    %186 = vmatmul.f32.gmra.mxu0 %v48
    %v187 = vpop.f32.mrf.mxu0
    %v188 = vadd.f32 %v102, %v187
    %189 = vmatmul.f32.gmra.mxu0 %v49
    %v190 = vpop.f32.mrf.mxu0
    %v191 = vadd.f32 %v102, %v190
    %192 = vdwg.mxu0
    %193 = vst [vmem:[%s3] sm:$0xff] %v124
    %194 = vst [vmem:[%s3 + $0x8] sm:$0xff] %v153
    %195 = vst [vmem:[%s3 + $0x10] sm:$0xff] %v182
    %196 = vst [vmem:[%s3 + $0x18] sm:$0xff] %v127
    %197 = vst [vmem:[%s3 + $0x20] sm:$0xff] %v156
    %198 = vst [vmem:[%s3 + $0x28] sm:$0xff] %v185
    %199 = vst [vmem:[%s3 + $0x30] sm:$0xff] %v130
    %200 = vst [vmem:[%s3 + $0x38] sm:$0xff] %v159
    %201 = vst [vmem:[%s3 + $0x40] sm:$0xff] %v188
    %202 = vst [vmem:[%s3 + $0x48] sm:$0xff] %v133
    %203 = vst [vmem:[%s3 + $0x50] sm:$0xff] %v162
    %204 = vst [vmem:[%s3 + $0x58] sm:$0xff] %v191
    // Predicated region
    $region22: #{decoder_layer.6} parent=1 // pred_check
      _
    $region23: #{decoder_layer.6} parent=1 // pred_check_branch
      %206 = sbr.rel (0) target = $region25
    $region24: #{decoder_layer.6} parent=1 // pred_region
      _
    $region25: #{decoder_layer.6} parent=1 // pred_fallthru
      _
    // Predicated region
    $region26: #{decoder_layer.6} parent=1 // pred_check
      _
    $region27: #{decoder_layer.6} parent=1 // pred_check_branch
      %208 = sbr.rel (0) target = $region29
    $region28: #{decoder_layer.6} parent=1 // pred_region
      _
    $region29: #{decoder_layer.6} parent=1 // pred_fallthru
      _
    %209 = vsyncpa [#allocation3], 1
    %210 = vsyncpa [#allocation5], 1

// kernel: decoder_layer.9
$region0: #{decoder_layer.9}
  #allocation0 [shape = 'u32[]', space=smem, size = 0x4, offset = 0x4, fixed_abs, tag = 'smem constant byte address 0x4 - core index']
  #allocation1 [shape = 'u32[72,128]{1,0:T(1,128)}', space=vmem, size = 0x9000, scoped, tag = 'internal scratch']
  %s0 = inlined_call_operand.hbm [shape: f32[32,128], index: 0, kind: input, shape index: {}]
  %s1 = inlined_call_operand.hbm [shape: f32[128,256], index: 1, kind: input, shape index: {}]
  %s2 = inlined_call_operand.vmem [shape: f32[1,256], index: 2, kind: input, shape index: {}]
  %s3 = inlined_call_operand.vmem [shape: f32[32,256], index: 3, kind: output, shape index: {}]
  %s4 = sld [smem:[#allocation0]]
  $region30: #{decoder_layer.9} parent=0
    _
  %s6 = ssub.s32 1, %s4
  %s7 = scalar_select 0, %s6, %s4
  $region1: #{decoder_layer.9} parent=0
    #allocation2 [shape = 'u8[16384]{0}', space=vmem, size = 0x4000, scoped, tag = 'input window, operand 0, single buffered']
    #allocation3 [shape = 's32[1]{0}', space=sflag, size = 0x4, scoped, tag = 'scoped memory for decoder_layer.9']
    #allocation4 [shape = 'u8[131072]{0}', space=vmem, size = 0x20000, scoped, tag = 'input window, operand 1, single buffered']
    #allocation5 [shape = 's32[1]{0}', space=sflag, size = 0x4, scoped, tag = 'scoped memory for decoder_layer.9']
    %8 = vsyncpa [#allocation3], 0
    %9 = vsyncpa [#allocation5], 0
    // Predicated region
    $region2: #{decoder_layer.9} parent=1 // pred_check
      _
    $region3: #{decoder_layer.9} parent=1 // pred_check_branch
      %11 = sbr.rel (0) target = $region5
    $region4: #{decoder_layer.9} parent=1 // pred_region
      %13 = vsyncadd [#allocation3], 0
      %s14 = sshll.u32 %s0, 4
      %s15 = int_to_ptr.hbm [resolvable:$true] %s14
      %s16 = sshll.u32 [#allocation2], 4
      %s17 = int_to_ptr.vmem [resolvable:$true] %s16
      %22 = dma.hbm_to_vmem [thread:$0]  %s15, 512, %s17, [#allocation3], 128, 128, 8
    $region5: #{decoder_layer.9} parent=1 // pred_fallthru
      _
    // Predicated region
    $region6: #{decoder_layer.9} parent=1 // pred_check
      _
    $region7: #{decoder_layer.9} parent=1 // pred_check_branch
      %24 = sbr.rel (0) target = $region9
    $region8: #{decoder_layer.9} parent=1 // pred_region
      %26 = vsyncadd [#allocation5], 0
      %s27 = sshll.u32 %s1, 4
      %s28 = int_to_ptr.hbm [resolvable:$true] %s27
      %s29 = sshll.u32 [#allocation4], 4
      %s30 = int_to_ptr.vmem [resolvable:$true] %s29
      %35 = dma.hbm_to_vmem [thread:$0]  %s28, 4096, %s30, [#allocation5], 256, 256, 16
    $region9: #{decoder_layer.9} parent=1 // pred_fallthru
      _
    // Predicated region
    $region10: #{decoder_layer.9} parent=1 // pred_check
      _
    $region11: #{decoder_layer.9} parent=1 // pred_check_branch
      %37 = sbr.rel (0) target = $region13
    $region12: #{decoder_layer.9} parent=1 // pred_region
      _
    $region13: #{decoder_layer.9} parent=1 // pred_fallthru
      _
    // Predicated region
    $region14: #{decoder_layer.9} parent=1 // pred_check
      _
    $region15: #{decoder_layer.9} parent=1 // pred_check_branch
      %39 = sbr.rel (0) target = $region17
    $region16: #{decoder_layer.9} parent=1 // pred_region
      %41 = dma.done [#allocation3], 512
    $region17: #{decoder_layer.9} parent=1 // pred_fallthru
      _
    // Predicated region
    $region18: #{decoder_layer.9} parent=1 // pred_check
      _
    $region19: #{decoder_layer.9} parent=1 // pred_check_branch
      %43 = sbr.rel (0) target = $region21
    $region20: #{decoder_layer.9} parent=1 // pred_region
      %45 = dma.done [#allocation5], 4096
    $region21: #{decoder_layer.9} parent=1 // pred_fallthru
      _
    %v46 = vld [vmem:[#allocation2] sm:$0xff]
    %v47 = vld [vmem:[#allocation2 + $0x8] sm:$0xff]
    %v48 = vld [vmem:[#allocation2 + $0x10] sm:$0xff]
    %v49 = vld [vmem:[#allocation2 + $0x18] sm:$0xff]
    %v50 = vld [vmem:[#allocation4] sm:$0xff]
    %v51 = vld [vmem:[#allocation4 + $0x8] sm:$0xff]
    %v52 = vld [vmem:[#allocation4 + $0x10] sm:$0xff]
    %v53 = vld [vmem:[#allocation4 + $0x18] sm:$0xff]
    %v54 = vld [vmem:[#allocation4 + $0x20] sm:$0xff]
    %v55 = vld [vmem:[#allocation4 + $0x28] sm:$0xff]
    %v56 = vld [vmem:[#allocation4 + $0x30] sm:$0xff]
    %v57 = vld [vmem:[#allocation4 + $0x38] sm:$0xff]
    %v58 = vld [vmem:[#allocation4 + $0x40] sm:$0xff]
    %v59 = vld [vmem:[#allocation4 + $0x48] sm:$0xff]
    %v60 = vld [vmem:[#allocation4 + $0x50] sm:$0xff]
    %v61 = vld [vmem:[#allocation4 + $0x58] sm:$0xff]
    %v62 = vld [vmem:[#allocation4 + $0x60] sm:$0xff]
    %v63 = vld [vmem:[#allocation4 + $0x68] sm:$0xff]
    %v64 = vld [vmem:[#allocation4 + $0x70] sm:$0xff]
    %v65 = vld [vmem:[#allocation4 + $0x78] sm:$0xff]
    %v66 = vld [vmem:[#allocation4 + $0x80] sm:$0xff]
    %v67 = vld [vmem:[#allocation4 + $0x88] sm:$0xff]
    %v68 = vld [vmem:[#allocation4 + $0x90] sm:$0xff]
    %v69 = vld [vmem:[#allocation4 + $0x98] sm:$0xff]
    %v70 = vld [vmem:[#allocation4 + $0xa0] sm:$0xff]
    %v71 = vld [vmem:[#allocation4 + $0xa8] sm:$0xff]
    %v72 = vld [vmem:[#allocation4 + $0xb0] sm:$0xff]
    %v73 = vld [vmem:[#allocation4 + $0xb8] sm:$0xff]
    %v74 = vld [vmem:[#allocation4 + $0xc0] sm:$0xff]
    %v75 = vld [vmem:[#allocation4 + $0xc8] sm:$0xff]
    %v76 = vld [vmem:[#allocation4 + $0xd0] sm:$0xff]
    %v77 = vld [vmem:[#allocation4 + $0xd8] sm:$0xff]
    %v78 = vld [vmem:[#allocation4 + $0xe0] sm:$0xff]
    %v79 = vld [vmem:[#allocation4 + $0xe8] sm:$0xff]
    %v80 = vld [vmem:[#allocation4 + $0xf0] sm:$0xff]
    %v81 = vld [vmem:[#allocation4 + $0xf8] sm:$0xff]
    %v82 = vld [vmem:[%s2] sm:$0x3]
    %v84 = vperm.slane %v82, 0
    %v85 = vperm.slane %v82, 1
    %88 = vmatpush.msra.mxu0 %v80
    %89 = vmatpush.msra.mxu0 %v78
    %90 = vmatpush.msra.mxu0 %v76
    %91 = vmatpush.msra.mxu0 %v74
    %92 = vmatpush.msra.mxu0 %v72
    %93 = vmatpush.msra.mxu0 %v70
    %94 = vmatpush.msra.mxu0 %v68
    %95 = vmatpush.msra.mxu0 %v66
    %96 = vmatpush.msra.mxu0 %v64
    %97 = vmatpush.msra.mxu0 %v62
    %98 = vmatpush.msra.mxu0 %v60
    %99 = vmatpush.msra.mxu0 %v58
    %100 = vmatpush.msra.mxu0 %v56
    %101 = vmatpush.msra.mxu0 %v54
    %102 = vmatpush.msra.mxu0 %v52
    %103 = vmatpush.msra.mxu0 %v50
    %104 = vmatmul.f32.gmra.mxu0 %v46
    %v105 = vpop.f32.mrf.mxu0
    %v106 = vadd.f32 %v84, %v105
    %107 = vmatmul.f32.gmra.mxu0 %v47
    %v108 = vpop.f32.mrf.mxu0
    %v109 = vadd.f32 %v84, %v108
    %110 = vmatmul.f32.gmra.mxu0 %v48
    %v111 = vpop.f32.mrf.mxu0
    %v112 = vadd.f32 %v84, %v111
    %113 = vmatmul.f32.gmra.mxu0 %v49
    %v114 = vpop.f32.mrf.mxu0
    %v115 = vadd.f32 %v84, %v114
    %116 = vdwg.mxu0
    %117 = vmatpush.msra.mxu0 %v81
    %118 = vmatpush.msra.mxu0 %v79
    %119 = vmatpush.msra.mxu0 %v77
    %120 = vmatpush.msra.mxu0 %v75
    %121 = vmatpush.msra.mxu0 %v73
    %122 = vmatpush.msra.mxu0 %v71
    %123 = vmatpush.msra.mxu0 %v69
    %124 = vmatpush.msra.mxu0 %v67
    %125 = vmatpush.msra.mxu0 %v65
    %126 = vmatpush.msra.mxu0 %v63
    %127 = vmatpush.msra.mxu0 %v61
    %128 = vmatpush.msra.mxu0 %v59
    %129 = vmatpush.msra.mxu0 %v57
    %130 = vmatpush.msra.mxu0 %v55
    %131 = vmatpush.msra.mxu0 %v53
    %132 = vmatpush.msra.mxu0 %v51
    %133 = vmatmul.f32.gmra.mxu0 %v46
    %v134 = vpop.f32.mrf.mxu0
    %v135 = vadd.f32 %v85, %v134
    %136 = vmatmul.f32.gmra.mxu0 %v47
    %v137 = vpop.f32.mrf.mxu0
    %v138 = vadd.f32 %v85, %v137
    %139 = vmatmul.f32.gmra.mxu0 %v48
    %v140 = vpop.f32.mrf.mxu0
    %v141 = vadd.f32 %v85, %v140
    %142 = vmatmul.f32.gmra.mxu0 %v49
    %v143 = vpop.f32.mrf.mxu0
    %v144 = vadd.f32 %v85, %v143
    %145 = vdwg.mxu0
    %146 = vst [vmem:[%s3] sm:$0xff] %v106
    %147 = vst [vmem:[%s3 + $0x8] sm:$0xff] %v135
    %148 = vst [vmem:[%s3 + $0x10] sm:$0xff] %v109
    %149 = vst [vmem:[%s3 + $0x18] sm:$0xff] %v138
    %150 = vst [vmem:[%s3 + $0x20] sm:$0xff] %v112
    %151 = vst [vmem:[%s3 + $0x28] sm:$0xff] %v141
    %152 = vst [vmem:[%s3 + $0x30] sm:$0xff] %v115
    %153 = vst [vmem:[%s3 + $0x38] sm:$0xff] %v144
    // Predicated region
    $region22: #{decoder_layer.9} parent=1 // pred_check
      _
    $region23: #{decoder_layer.9} parent=1 // pred_check_branch
      %155 = sbr.rel (0) target = $region25
    $region24: #{decoder_layer.9} parent=1 // pred_region
      _
    $region25: #{decoder_layer.9} parent=1 // pred_fallthru
      _
    // Predicated region
    $region26: #{decoder_layer.9} parent=1 // pred_check
      _
    $region27: #{decoder_layer.9} parent=1 // pred_check_branch
      %157 = sbr.rel (0) target = $region29
    $region28: #{decoder_layer.9} parent=1 // pred_region
      _
    $region29: #{decoder_layer.9} parent=1 // pred_fallthru
      _
    %158 = vsyncpa [#allocation3], 1
    %159 = vsyncpa [#allocation5], 1

// kernel: decoder_layer.7
$region0: #{decoder_layer.7}
  #allocation0 [shape = 'u32[]', space=smem, size = 0x4, offset = 0x4, fixed_abs, tag = 'smem constant byte address 0x4 - core index']
  #allocation1 [shape = 'u32[72,128]{1,0:T(1,128)}', space=vmem, size = 0x9000, scoped, tag = 'internal scratch']
  %s0 = inlined_call_operand.vmem [shape: f32[2,16,384], index: 0, kind: input, shape index: {}]
  %s1 = inlined_call_operand.hbm [shape: f32[2,1,16,16], index: 1, kind: input, shape index: {}]
  %s2 = inlined_call_operand.hbm [shape: f32[2,16,128], index: 2, kind: input, shape index: {}]
  %s3 = inlined_call_operand.hbm [shape: f32[128,128], index: 3, kind: input, shape index: {}]
  %s4 = inlined_call_operand.vmem [shape: f32[1,128], index: 4, kind: input, shape index: {}]
  %s5 = inlined_call_operand.vmem [shape: f32[1,128], index: 5, kind: input, shape index: {}]
  %s6 = inlined_call_operand.vmem [shape: f32[1,128], index: 6, kind: input, shape index: {}]
  %s7 = inlined_call_operand.vmem [shape: f32[2,16,128], index: 7, kind: output, shape index: {}]
  %s8 = sld [smem:[#allocation0]]
  $region73: #{decoder_layer.7} parent=0
    _
  %s10 = ssub.s32 1, %s8
  %s11 = scalar_select 0, %s10, %s8
  $region1: #{decoder_layer.7} parent=0
    #allocation2 [shape = 'u8[16384]{0}', space=vmem, size = 0x4000, scoped, tag = 'input window, operand 1']
    #allocation3 [shape = 's32[2]{0}', space=sflag, size = 0x8, scoped, tag = 'scoped memory for decoder_layer.7']
    #allocation4 [shape = 'u8[16384]{0}', space=vmem, size = 0x4000, scoped, tag = 'input window, operand 2']
    #allocation5 [shape = 's32[2]{0}', space=sflag, size = 0x8, scoped, tag = 'scoped memory for decoder_layer.7']
    #allocation6 [shape = 'u8[65536]{0}', space=vmem, size = 0x10000, scoped, tag = 'input window, operand 3, single buffered']
    %12 = vsyncpa [#allocation3], 0
    %s13 = scalar_lea.sflag [#allocation3], 1
    %14 = vsyncpa %s13, 0
    %15 = vsyncpa [#allocation5], 0
    %s16 = scalar_lea.sflag [#allocation5], 1
    %17 = vsyncpa %s16, 0
    loop: start=0, step=1, limit=4
    $region2: #{decoder_layer.7} parent=1 // loop_pre_header
      _
    $region3: #{decoder_layer.7} parent=1 // loop_header
      %s19 = sphi 0, %s23
      %p20 = scmp.ge.s32.totalorder %s19, 4
      %s29 = sphi 0, %s31
      %s32 = sphi 0, %s29
      %s33 = sphi 0, %s32
      %s49 = sphi 0, %s33
      %s55 = sphi 0, %s57
      %s58 = sphi 0, %s55
      %s59 = sphi 0, %s58
      %s75 = sphi 0, %s59
      %s81 = sphi 0, %s83
      %s84 = sphi 0, %s81
      %s85 = sphi 0, %s84
      %s101 = sphi 0, %s85
      %s105 = sphi 0, %s105
      %s107 = sphi 0, %s105
      %s108 = sphi 0, %s107
      %s122 = sphi 0, %s108
      %s126 = sphi 0, %s126
      %s128 = sphi 0, %s126
      %s129 = sphi 0, %s128
      %s143 = sphi 0, %s129
      %s147 = sphi 0, %s147
      %s149 = sphi 0, %s147
      %s150 = sphi 0, %s149
      %s164 = sphi 0, %s150
      %s168 = sphi 0, %s168
      %s170 = sphi 0, %s168
      %s171 = sphi 0, %s170
      %s185 = sphi 0, %s171
      %s191 = sphi 0, %s193
      %s194 = sphi 0, %s191
      %s195 = sphi 0, %s194
      %s211 = sphi 0, %s195
    $region4: #{decoder_layer.7} parent=1 // loop_header_branch
      %22 = sbr.rel (%p20) target = $region8
    $region5: #{decoder_layer.7} parent=1 // loop_body
      %s24 = ssub.s32 %s19, 1
      %s25 = ssub.s32 %s19, 2
      %s26 = sadd.s32 %s19, 1
      %s27 = ssub.s32 %s19, %s26
      %p28 = scmp.eq.s32.totalorder %s27, 0
      %s30 = sadd.s32 %s29, 1
      %s31 = scalar_select %p28, %s29, %s30
      %p34 = pneg %p28
      %p35 = scmp.eq.s32.totalorder %s19, 1
      %p36 = por %p34, %p35
      %p37 = scmp.ne.s32.totalorder %s29, %s32
      %p38 = scmp.eq.s32.totalorder %s19, 0
      %p39 = por %p37, %p38
      %p40 = scmp.ne.s32.totalorder %s29, %s32
      %p41 = scmp.eq.s32.totalorder %s24, 1
      %p42 = por %p40, %p41
      %p43 = scmp.ne.s32.totalorder %s32, %s33
      %p44 = scmp.eq.s32.totalorder %s24, 0
      %p45 = por %p43, %p44
      %p46 = scmp.ne.s32.totalorder %s32, %s33
      %p47 = scmp.eq.s32.totalorder %s25, 1
      %p48 = por %p46, %p47
      %p50 = scmp.ne.s32.totalorder %s33, %s49
      %p51 = scmp.eq.s32.totalorder %s25, 0
      %p52 = por %p50, %p51
      %s53 = ssub.s32 %s19, %s26
      %p54 = scmp.eq.s32.totalorder %s53, 0
      %s56 = sadd.s32 %s55, 1
      %s57 = scalar_select %p54, %s55, %s56
      %p60 = pneg %p54
      %p61 = scmp.eq.s32.totalorder %s19, 1
      %p62 = por %p60, %p61
      %p63 = scmp.ne.s32.totalorder %s55, %s58
      %p64 = scmp.eq.s32.totalorder %s19, 0
      %p65 = por %p63, %p64
      %p66 = scmp.ne.s32.totalorder %s55, %s58
      %p67 = scmp.eq.s32.totalorder %s24, 1
      %p68 = por %p66, %p67
      %p69 = scmp.ne.s32.totalorder %s58, %s59
      %p70 = scmp.eq.s32.totalorder %s24, 0
      %p71 = por %p69, %p70
      %p72 = scmp.ne.s32.totalorder %s58, %s59
      %p73 = scmp.eq.s32.totalorder %s25, 1
      %p74 = por %p72, %p73
      %p76 = scmp.ne.s32.totalorder %s59, %s75
      %p77 = scmp.eq.s32.totalorder %s25, 0
      %p78 = por %p76, %p77
      %s79 = ssub.s32 %s19, %s26
      %p80 = scmp.eq.s32.totalorder %s79, 0
      %s82 = sadd.s32 %s81, 1
      %s83 = scalar_select %p80, %s81, %s82
      %p86 = pneg %p80
      %p87 = scmp.eq.s32.totalorder %s19, 1
      %p88 = por %p86, %p87
      %p89 = scmp.ne.s32.totalorder %s81, %s84
      %p90 = scmp.eq.s32.totalorder %s19, 0
      %p91 = por %p89, %p90
      %p92 = scmp.ne.s32.totalorder %s81, %s84
      %p93 = scmp.eq.s32.totalorder %s24, 1
      %p94 = por %p92, %p93
      %p95 = scmp.ne.s32.totalorder %s84, %s85
      %p96 = scmp.eq.s32.totalorder %s24, 0
      %p97 = por %p95, %p96
      %p98 = scmp.ne.s32.totalorder %s84, %s85
      %p99 = scmp.eq.s32.totalorder %s25, 1
      %p100 = por %p98, %p99
      %p102 = scmp.ne.s32.totalorder %s85, %s101
      %p103 = scmp.eq.s32.totalorder %s25, 0
      %p104 = por %p102, %p103
      %s106 = sadd.s32 %s105, 1
      %p109 = scmp.eq.s32.totalorder %s19, 1
      %p110 = scmp.ne.s32.totalorder %s105, %s107
      %p111 = scmp.eq.s32.totalorder %s19, 0
      %p112 = por %p110, %p111
      %p113 = scmp.ne.s32.totalorder %s105, %s107
      %p114 = scmp.eq.s32.totalorder %s24, 1
      %p115 = por %p113, %p114
      %p116 = scmp.ne.s32.totalorder %s107, %s108
      %p117 = scmp.eq.s32.totalorder %s24, 0
      %p118 = por %p116, %p117
      %p119 = scmp.ne.s32.totalorder %s107, %s108
      %p120 = scmp.eq.s32.totalorder %s25, 1
      %p121 = por %p119, %p120
      %p123 = scmp.ne.s32.totalorder %s108, %s122
      %p124 = scmp.eq.s32.totalorder %s25, 0
      %p125 = por %p123, %p124
      %s127 = sadd.s32 %s126, 1
      %p130 = scmp.eq.s32.totalorder %s19, 1
      %p131 = scmp.ne.s32.totalorder %s126, %s128
      %p132 = scmp.eq.s32.totalorder %s19, 0
      %p133 = por %p131, %p132
      %p134 = scmp.ne.s32.totalorder %s126, %s128
      %p135 = scmp.eq.s32.totalorder %s24, 1
      %p136 = por %p134, %p135
      %p137 = scmp.ne.s32.totalorder %s128, %s129
      %p138 = scmp.eq.s32.totalorder %s24, 0
      %p139 = por %p137, %p138
      %p140 = scmp.ne.s32.totalorder %s128, %s129
      %p141 = scmp.eq.s32.totalorder %s25, 1
      %p142 = por %p140, %p141
      %p144 = scmp.ne.s32.totalorder %s129, %s143
      %p145 = scmp.eq.s32.totalorder %s25, 0
      %p146 = por %p144, %p145
      %s148 = sadd.s32 %s147, 1
      %p151 = scmp.eq.s32.totalorder %s19, 1
      %p152 = scmp.ne.s32.totalorder %s147, %s149
      %p153 = scmp.eq.s32.totalorder %s19, 0
      %p154 = por %p152, %p153
      %p155 = scmp.ne.s32.totalorder %s147, %s149
      %p156 = scmp.eq.s32.totalorder %s24, 1
      %p157 = por %p155, %p156
      %p158 = scmp.ne.s32.totalorder %s149, %s150
      %p159 = scmp.eq.s32.totalorder %s24, 0
      %p160 = por %p158, %p159
      %p161 = scmp.ne.s32.totalorder %s149, %s150
      %p162 = scmp.eq.s32.totalorder %s25, 1
      %p163 = por %p161, %p162
      %p165 = scmp.ne.s32.totalorder %s150, %s164
      %p166 = scmp.eq.s32.totalorder %s25, 0
      %p167 = por %p165, %p166
      %s169 = sadd.s32 %s168, 1
      %p172 = scmp.eq.s32.totalorder %s19, 1
      %p173 = scmp.ne.s32.totalorder %s168, %s170
      %p174 = scmp.eq.s32.totalorder %s19, 0
      %p175 = por %p173, %p174
      %p176 = scmp.ne.s32.totalorder %s168, %s170
      %p177 = scmp.eq.s32.totalorder %s24, 1
      %p178 = por %p176, %p177
      %p179 = scmp.ne.s32.totalorder %s170, %s171
      %p180 = scmp.eq.s32.totalorder %s24, 0
      %p181 = por %p179, %p180
      %p182 = scmp.ne.s32.totalorder %s170, %s171
      %p183 = scmp.eq.s32.totalorder %s25, 1
      %p184 = por %p182, %p183
      %p186 = scmp.ne.s32.totalorder %s171, %s185
      %p187 = scmp.eq.s32.totalorder %s25, 0
      %p188 = por %p186, %p187
      %s189 = ssub.s32 %s19, %s26
      %p190 = scmp.eq.s32.totalorder %s189, 0
      %s192 = sadd.s32 %s191, 1
      %s193 = scalar_select %p190, %s191, %s192
      %p196 = pneg %p190
      %p197 = scmp.eq.s32.totalorder %s19, 1
      %p198 = por %p196, %p197
      %p199 = scmp.ne.s32.totalorder %s191, %s194
      %p200 = scmp.eq.s32.totalorder %s19, 0
      %p201 = por %p199, %p200
      %p202 = scmp.ne.s32.totalorder %s191, %s194
      %p203 = scmp.eq.s32.totalorder %s24, 1
      %p204 = por %p202, %p203
      %p205 = scmp.ne.s32.totalorder %s194, %s195
      %p206 = scmp.eq.s32.totalorder %s24, 0
      %p207 = por %p205, %p206
      %p208 = scmp.ne.s32.totalorder %s194, %s195
      %p209 = scmp.eq.s32.totalorder %s25, 1
      %p210 = por %p208, %p209
      %p212 = scmp.ne.s32.totalorder %s195, %s211
      %p213 = scmp.eq.s32.totalorder %s25, 0
      %p214 = por %p212, %p213
      %p215 = scmp.le.s32.totalorder 1, %s19
      %p216 = scmp.lt.s32.totalorder %s19, 3
      %p217 = pnand %p215, %p216
      %p218 = pneg %p217
      // Predicated region
      $region9: #{decoder_layer.7} parent=5 // pred_check
        _
      $region10: #{decoder_layer.7} parent=5 // pred_check_branch
        %220 = sbr.rel (%p217) target = $region12
      $region11: #{decoder_layer.7} parent=5 // pred_region
        %s221 = ssub.s32 %s19, 1
        // Predicated region
        $region13: #{decoder_layer.7} parent=11 // pred_check
          %p222 = pneg %p118
        $region14: #{decoder_layer.7} parent=11 // pred_check_branch
          %224 = sbr.rel (%p222) target = $region16
        $region15: #{decoder_layer.7} parent=11 // pred_region
          %226 = vsyncadd [#allocation5], 0
          %s227 = sshll.u32 %s3, 4
          %s228 = int_to_ptr.hbm [resolvable:$true] %s227
          %s229 = sshll.u32 [#allocation6], 4
          %s230 = int_to_ptr.vmem [resolvable:$true] %s229
          %235 = dma.hbm_to_vmem [thread:$0]  %s228, 2048, %s230, [#allocation5], 128, 128, 8
        $region16: #{decoder_layer.7} parent=11 // pred_fallthru
          _
        // Predicated region
        $region17: #{decoder_layer.7} parent=11 // pred_check
          %p236 = pneg %p139
        $region18: #{decoder_layer.7} parent=11 // pred_check_branch
          %238 = sbr.rel (%p236) target = $region20
        $region19: #{decoder_layer.7} parent=11 // pred_region
          _
        $region20: #{decoder_layer.7} parent=11 // pred_fallthru
          _
        // Predicated region
        $region21: #{decoder_layer.7} parent=11 // pred_check
          %p239 = pneg %p160
        $region22: #{decoder_layer.7} parent=11 // pred_check_branch
          %241 = sbr.rel (%p239) target = $region24
        $region23: #{decoder_layer.7} parent=11 // pred_region
          _
        $region24: #{decoder_layer.7} parent=11 // pred_fallthru
          _
        // Predicated region
        $region25: #{decoder_layer.7} parent=11 // pred_check
          %p242 = pneg %p181
        $region26: #{decoder_layer.7} parent=11 // pred_check_branch
          %244 = sbr.rel (%p242) target = $region28
        $region27: #{decoder_layer.7} parent=11 // pred_region
          _
        $region28: #{decoder_layer.7} parent=11 // pred_fallthru
          _
      $region12: #{decoder_layer.7} parent=5 // pred_fallthru
        _
      %p245 = scmp.lt.s32.totalorder %s19, 2
      // Predicated region
      $region29: #{decoder_layer.7} parent=5 // pred_check
        %p246 = pneg %p245
      $region30: #{decoder_layer.7} parent=5 // pred_check_branch
        %248 = sbr.rel (%p246) target = $region32
      $region31: #{decoder_layer.7} parent=5 // pred_region
        // Predicated region
        $region33: #{decoder_layer.7} parent=31 // pred_check
          %p249 = pneg %p39
        $region34: #{decoder_layer.7} parent=31 // pred_check_branch
          %251 = sbr.rel (%p249) target = $region36
        $region35: #{decoder_layer.7} parent=31 // pred_region
          %p252 = scmp.lt.s32.totalorder %s19, 1
          %s253 = scalar_select %p252, %s19, 1
          %s254 = smul.addr %s253, 6
          %s255 = smul.addr %s254, 8
          %s256 = scalar_lea.vmem %s0, %s255
        $region36: #{decoder_layer.7} parent=31 // pred_fallthru
          _
        // Predicated region
        $region37: #{decoder_layer.7} parent=31 // pred_check
          %p257 = pneg %p65
        $region38: #{decoder_layer.7} parent=31 // pred_check_branch
          %259 = sbr.rel (%p257) target = $region40
        $region39: #{decoder_layer.7} parent=31 // pred_region
          %s260 = sand.u32 %s55, 1
          %s261 = scalar_lea.sflag [#allocation3], %s260
          %s262 = sand.u32 %s55, 1
          %s263 = smul.addr %s262, 16
          %s264 = scalar_lea.vmem [#allocation2], %s263
          %266 = vsyncadd %s261, 0
          %s267 = smul.addr %s19, 2
          %s268 = smul.addr %s267, 8
          %s269 = scalar_lea.hbm %s1, %s268
          %s270 = sshll.u32 %s269, 4
          %s271 = int_to_ptr.hbm [resolvable:$true] %s270
          %s272 = sshll.u32 %s264, 4
          %s273 = int_to_ptr.vmem [resolvable:$true] %s272
          %278 = dma.hbm_to_vmem [thread:$0]  %s271, 256, %s273, %s261, 128, 128, 8
        $region40: #{decoder_layer.7} parent=31 // pred_fallthru
          _
        // Predicated region
        $region41: #{decoder_layer.7} parent=31 // pred_check
          %p279 = pneg %p91
        $region42: #{decoder_layer.7} parent=31 // pred_check_branch
          %281 = sbr.rel (%p279) target = $region44
        $region43: #{decoder_layer.7} parent=31 // pred_region
          %s282 = sand.u32 %s19, 1
          %s283 = scalar_lea.sflag [#allocation5], %s282
          %s284 = sand.u32 %s81, 1
          %s285 = smul.addr %s284, 16
          %s286 = scalar_lea.vmem [#allocation4], %s285
          %288 = vsyncadd %s283, 0
          %s289 = smul.addr %s19, 2
          %s290 = smul.addr %s289, 8
          %s291 = scalar_lea.hbm %s2, %s290
          %s292 = sshll.u32 %s291, 4
          %s293 = int_to_ptr.hbm [resolvable:$true] %s292
          %s294 = sshll.u32 %s286, 4
          %s295 = int_to_ptr.vmem [resolvable:$true] %s294
          %300 = dma.hbm_to_vmem [thread:$0]  %s293, 256, %s295, %s283, 128, 128, 8
        $region44: #{decoder_layer.7} parent=31 // pred_fallthru
          _
      $region32: #{decoder_layer.7} parent=5 // pred_fallthru
        _
      %p301 = scmp.le.s32.totalorder 1, %s19
      %p302 = scmp.lt.s32.totalorder %s19, 3
      %p303 = pnand %p301, %p302
      %p304 = pneg %p303
      // Predicated region
      $region45: #{decoder_layer.7} parent=5 // pred_check
        _
      $region46: #{decoder_layer.7} parent=5 // pred_check_branch
        %306 = sbr.rel (%p303) target = $region48
      $region47: #{decoder_layer.7} parent=5 // pred_region
        %s307 = ssub.s32 %s19, 1
        %s308 = sand.u32 %s58, 1
        %s309 = scalar_lea.sflag [#allocation3], %s308
        %s310 = sand.u32 %s58, 1
        %s311 = smul.addr %s310, 16
        %s312 = scalar_lea.vmem [#allocation2], %s311
        // Predicated region
        $region49: #{decoder_layer.7} parent=47 // pred_check
          %p313 = pneg %p71
        $region50: #{decoder_layer.7} parent=47 // pred_check_branch
          %315 = sbr.rel (%p313) target = $region52
        $region51: #{decoder_layer.7} parent=47 // pred_region
          %317 = dma.done %s309, 256
        $region52: #{decoder_layer.7} parent=47 // pred_fallthru
          _
        %s318 = sand.u32 %s24, 1
        %s319 = scalar_lea.sflag [#allocation5], %s318
        %s320 = sand.u32 %s84, 1
        %s321 = smul.addr %s320, 16
        %s322 = scalar_lea.vmem [#allocation4], %s321
        // Predicated region
        $region53: #{decoder_layer.7} parent=47 // pred_check
          %p323 = pneg %p97
        $region54: #{decoder_layer.7} parent=47 // pred_check_branch
          %325 = sbr.rel (%p323) target = $region56
        $region55: #{decoder_layer.7} parent=47 // pred_region
          %327 = dma.done %s319, 256
        $region56: #{decoder_layer.7} parent=47 // pred_fallthru
          _
        // Predicated region
        $region57: #{decoder_layer.7} parent=47 // pred_check
          %p328 = pneg %p118
        $region58: #{decoder_layer.7} parent=47 // pred_check_branch
          %330 = sbr.rel (%p328) target = $region60
        $region59: #{decoder_layer.7} parent=47 // pred_region
          %332 = dma.done [#allocation5], 2048
        $region60: #{decoder_layer.7} parent=47 // pred_fallthru
          _
        %p333 = scmp.lt.s32.totalorder %s24, 1
        %s334 = scalar_select %p333, %s24, 1
        %s335 = smul.addr %s334, 6
        %s336 = smul.addr %s335, 8
        %s337 = scalar_lea.vmem %s0, %s336
        %p338 = pneg %p45
        %p339 = pneg %p42
        %s340 = sand.u32 %s58, 1
        %s341 = scalar_lea.sflag [#allocation3], %s340
        %s342 = sand.u32 %s58, 1
        %s343 = smul.addr %s342, 16
        %s344 = scalar_lea.vmem [#allocation2], %s343
        %p345 = pneg %p71
        %p346 = pneg %p68
        %s347 = sand.u32 %s24, 1
        %s348 = scalar_lea.sflag [#allocation5], %s347
        %s349 = sand.u32 %s84, 1
        %s350 = smul.addr %s349, 16
        %s351 = scalar_lea.vmem [#allocation4], %s350
        %p352 = pneg %p97
        %p353 = pneg %p94
        %p354 = pneg %p118
        %p355 = pneg %p115
        %p356 = pneg %p139
        %p357 = pneg %p136
        %p358 = pneg %p160
        %p359 = pneg %p157
        %p360 = pneg %p181
        %p361 = pneg %p178
        %p362 = pneg %p207
        %p363 = pneg %p204
        %p364 = scmp.lt.s32.totalorder %s24, 1
        %s365 = scalar_select %p364, %s24, 1
        %s366 = smul.addr %s365, 2
        %s367 = smul.addr %s366, 8
        %s368 = scalar_lea.vmem %s7, %s367
        %p369 = scmp.lt.s32.totalorder %s24, 1
        %s370 = scalar_select %p369, %s24, 1
        %s371 = smul.addr %s370, 6
        %s372 = smul.addr %s371, 8
        %s373 = scalar_lea.vmem %s0, %s372
        %p374 = scmp.lt.s32.totalorder %s24, 1
        %s375 = scalar_select %p374, %s24, 1
        %s376 = smul.addr %s375, 2
        %s377 = smul.addr %s376, 8
        %s378 = scalar_lea.vmem %s7, %s377
        %v379 = vld [vmem:[%s373] sm:$0xff]
        %v380 = vld [vmem:[%s373 + $0x18] sm:$0xff]
        %v381 = vld [vmem:[%s373 + $0x8] sm:$0xff]
        %v382 = vld [vmem:[%s373 + $0x20] sm:$0xff]
        %v383 = vld [vmem:[%s373 + $0x10] sm:$0xff]
        %v384 = vld [vmem:[%s373 + $0x28] sm:$0xff]
        %v385 = vld [vmem:[%s312] sm:$0xff]
        %v386 = vld [vmem:[%s312 + $0x8] sm:$0xff]
        %vm387 = vcmp.ne.f32.partialorder %v385, 0.0
        %vm388 = vcmp.ne.f32.partialorder %v386, 0.0
        %v389 = vld [vmem:[%s322] sm:$0xff]
        %v390 = vld [vmem:[%s322 + $0x8] sm:$0xff]
        %v391 = vld [vmem:[%s4] sm:$0x1]
        %v392 = vld [vmem:[%s5] sm:$0x1]
        %v393 = vld [vmem:[%s6] sm:$0x1]
        %v394 = vmul.f32 %v379, 0.25
        %v395 = vmul.f32 %v380, 0.25
        %vm396 = vcmask 130048
        %v398 = vsel %vm396, %v394, 0
        %v401 = vsel %vm396, %v395, 0
        %v404 = vsel %vm396, %v381, 0
        %v407 = vsel %vm396, %v382, 0
        %409 = vmatpush.xpose.msra.mxu0 0.0
        %410 = vmatpush.xpose.msra.mxu0 0.0
        %411 = vmatpush.xpose.msra.mxu0 0.0
        %412 = vmatpush.xpose.msra.mxu0 0.0
        %413 = vmatpush.xpose.msra.mxu0 0.0
        %414 = vmatpush.xpose.msra.mxu0 0.0
        %415 = vmatpush.xpose.msra.mxu0 0.0
        %416 = vmatpush.xpose.msra.mxu0 0.0
        %417 = vmatpush.xpose.msra.mxu0 0.0
        %418 = vmatpush.xpose.msra.mxu0 0.0
        %419 = vmatpush.xpose.msra.mxu0 0.0
        %420 = vmatpush.xpose.msra.mxu0 0.0
        %421 = vmatpush.xpose.msra.mxu0 0.0
        %422 = vmatpush.xpose.msra.mxu0 0.0
        %423 = vmatpush.xpose.msra.mxu0 %v407
        %424 = vmatpush.xpose.msra.mxu0 %v404
        %425 = vmatmul.f32.gmra.mxu0 %v398
        %v426 = vpop.f32.mrf.mxu0
        %v427 = vadd.f32 0.0, %v426
        %428 = vmatmul.f32.gmra.mxu0 %v401
        %v429 = vpop.f32.mrf.mxu0
        %v430 = vadd.f32 0.0, %v429
        %431 = vdwg.mxu0
        %v432 = vsel %vm387, %v427, -1e+09
        %v433 = vsel %vm388, %v430, -1e+09
        %v434 = vsel %vm396, %v432, -inf
        %435 = vmax.xlane.f32.xlu0 %v434
        %v436 = vpop.xlane.xlu0 %435
        %v437 = vsel %vm396, %v433, -inf
        %438 = vmax.xlane.f32.xlu0 %v437
        %v439 = vpop.xlane.xlu0 %438
        %v440 = vsub.f32 %v432, %v436
        %v441 = vsub.f32 %v433, %v439
        %v442 = vmul.f32 %v440, 1.442695
        %v443 = vpow.pop %v442
        %v444 = vmul.f32 %v441, 1.442695
        %v445 = vpow.pop %v444
        %v446 = vsel %vm396, %v443, 0.0
        %447 = vadd.xlane.f32.xlu0 %v446
        %v448 = vpop.xlane.xlu0 %447
        %v449 = vsel %vm396, %v445, 0.0
        %450 = vadd.xlane.f32.xlu0 %v449
        %v451 = vpop.xlane.xlu0 %450
        %v452 = vrcp.pop %v448
        %v453 = vrcp.pop %v451
        %v454 = vmul.f32 %v443, %v452
        %v455 = vmul.f32 %v445, %v453
        %v457 = vsel %vm396, %v454, 0
        %v460 = vsel %vm396, %v455, 0
        %462 = vmatpush.msra.mxu0 0.0
        %463 = vmatpush.msra.mxu0 0.0
        %464 = vmatpush.msra.mxu0 0.0
        %465 = vmatpush.msra.mxu0 0.0
        %466 = vmatpush.msra.mxu0 0.0
        %467 = vmatpush.msra.mxu0 0.0
        %468 = vmatpush.msra.mxu0 0.0
        %469 = vmatpush.msra.mxu0 0.0
        %470 = vmatpush.msra.mxu0 0.0
        %471 = vmatpush.msra.mxu0 0.0
        %472 = vmatpush.msra.mxu0 0.0
        %473 = vmatpush.msra.mxu0 0.0
        %474 = vmatpush.msra.mxu0 0.0
        %475 = vmatpush.msra.mxu0 0.0
        %476 = vmatpush.msra.mxu0 %v384
        %477 = vmatpush.msra.mxu0 %v383
        %478 = vmatmul.f32.gmra.mxu0 %v457
        %v479 = vpop.f32.mrf.mxu0
        %v480 = vadd.f32 0.0, %v479
        %481 = vmatmul.f32.gmra.mxu0 %v460
        %v482 = vpop.f32.mrf.mxu0
        %v483 = vadd.f32 0.0, %v482
        %484 = vdwg.mxu0
        %v485 = vld [vmem:[#allocation6] sm:$0xff]
        %v486 = vld [vmem:[#allocation6 + $0x8] sm:$0xff]
        %487 = vrot.lane.b32.xlu0 %v394, 112
        %v488 = vpop.permute.xlu0 %487
        %489 = vrot.lane.b32.xlu0 %v395, 112
        %v490 = vpop.permute.xlu0 %489
        %491 = vrot.lane.b32.xlu0 %v381, 112
        %v492 = vpop.permute.xlu0 %491
        %493 = vrot.lane.b32.xlu0 %v382, 112
        %v494 = vpop.permute.xlu0 %493
        %v495 = vsel %vm396, %v488, 0
        %v497 = vsel %vm396, %v490, 0
        %v499 = vsel %vm396, %v492, 0
        %v501 = vsel %vm396, %v494, 0
        %503 = vmatpush.xpose.msra.mxu0 0.0
        %504 = vmatpush.xpose.msra.mxu0 0.0
        %505 = vmatpush.xpose.msra.mxu0 0.0
        %506 = vmatpush.xpose.msra.mxu0 0.0
        %507 = vmatpush.xpose.msra.mxu0 0.0
        %508 = vmatpush.xpose.msra.mxu0 0.0
        %509 = vmatpush.xpose.msra.mxu0 0.0
        %510 = vmatpush.xpose.msra.mxu0 0.0
        %511 = vmatpush.xpose.msra.mxu0 0.0
        %512 = vmatpush.xpose.msra.mxu0 0.0
        %513 = vmatpush.xpose.msra.mxu0 0.0
        %514 = vmatpush.xpose.msra.mxu0 0.0
        %515 = vmatpush.xpose.msra.mxu0 0.0
        %516 = vmatpush.xpose.msra.mxu0 0.0
        %517 = vmatpush.xpose.msra.mxu0 %v501
        %518 = vmatpush.xpose.msra.mxu0 %v499
        %519 = vmatmul.f32.gmra.mxu0 %v495
        %v520 = vpop.f32.mrf.mxu0
        %v521 = vadd.f32 0.0, %v520
        %522 = vmatmul.f32.gmra.mxu0 %v497
        %v523 = vpop.f32.mrf.mxu0
        %v524 = vadd.f32 0.0, %v523
        %525 = vdwg.mxu0
        %v526 = vsel %vm387, %v521, -1e+09
        %v527 = vsel %vm388, %v524, -1e+09
        %v528 = vsel %vm396, %v526, -inf
        %529 = vmax.xlane.f32.xlu0 %v528
        %v530 = vpop.xlane.xlu0 %529
        %v531 = vsel %vm396, %v527, -inf
        %532 = vmax.xlane.f32.xlu0 %v531
        %v533 = vpop.xlane.xlu0 %532
        %v534 = vsub.f32 %v526, %v530
        %v535 = vsub.f32 %v527, %v533
        %v536 = vmul.f32 %v534, 1.442695
        %v537 = vpow.pop %v536
        %v538 = vmul.f32 %v535, 1.442695
        %v539 = vpow.pop %v538
        %v540 = vsel %vm396, %v537, 0.0
        %541 = vadd.xlane.f32.xlu0 %v540
        %v542 = vpop.xlane.xlu0 %541
        %v543 = vsel %vm396, %v539, 0.0
        %544 = vadd.xlane.f32.xlu0 %v543
        %v545 = vpop.xlane.xlu0 %544
        %v546 = vrcp.pop %v542
        %v547 = vrcp.pop %v545
        %v548 = vmul.f32 %v537, %v546
        %v549 = vmul.f32 %v539, %v547
        %552 = vrot.lane.b32.xlu0 %v383, 112
        %v553 = vpop.permute.xlu0 %552
        %554 = vrot.lane.b32.xlu0 %v384, 112
        %v555 = vpop.permute.xlu0 %554
        %v559 = vsel %vm396, %v548, 0
        %v562 = vsel %vm396, %v549, 0
        %564 = vmatpush.msra.mxu0 0.0
        %565 = vmatpush.msra.mxu0 0.0
        %566 = vmatpush.msra.mxu0 0.0
        %567 = vmatpush.msra.mxu0 0.0
        %568 = vmatpush.msra.mxu0 0.0
        %569 = vmatpush.msra.mxu0 0.0
        %570 = vmatpush.msra.mxu0 0.0
        %571 = vmatpush.msra.mxu0 0.0
        %572 = vmatpush.msra.mxu0 0.0
        %573 = vmatpush.msra.mxu0 0.0
        %574 = vmatpush.msra.mxu0 0.0
        %575 = vmatpush.msra.mxu0 0.0
        %576 = vmatpush.msra.mxu0 0.0
        %577 = vmatpush.msra.mxu0 0.0
        %578 = vmatpush.msra.mxu0 %v555
        %579 = vmatpush.msra.mxu0 %v553
        %580 = vmatmul.f32.gmra.mxu0 %v559
        %v581 = vpop.f32.mrf.mxu0
        %v582 = vadd.f32 0.0, %v581
        %583 = vmatmul.f32.gmra.mxu0 %v562
        %v584 = vpop.f32.mrf.mxu0
        %v585 = vadd.f32 0.0, %v584
        %586 = vdwg.mxu0
        %v587 = vld [vmem:[#allocation6 + $0x10] sm:$0xff]
        %v588 = vld [vmem:[#allocation6 + $0x18] sm:$0xff]
        %v590 = vsel %vm396, %v582, 0
        %v593 = vsel %vm396, %v585, 0
        %595 = vmatpush.msra.mxu0 0.0
        %596 = vmatpush.msra.mxu0 0.0
        %597 = vmatpush.msra.mxu0 0.0
        %598 = vmatpush.msra.mxu0 0.0
        %599 = vmatpush.msra.mxu0 0.0
        %600 = vmatpush.msra.mxu0 0.0
        %601 = vmatpush.msra.mxu0 0.0
        %602 = vmatpush.msra.mxu0 0.0
        %603 = vmatpush.msra.mxu0 0.0
        %604 = vmatpush.msra.mxu0 0.0
        %605 = vmatpush.msra.mxu0 0.0
        %606 = vmatpush.msra.mxu0 0.0
        %607 = vmatpush.msra.mxu0 0.0
        %608 = vmatpush.msra.mxu0 0.0
        %609 = vmatpush.msra.mxu0 %v588
        %610 = vmatpush.msra.mxu0 %v587
        %611 = vmatmul.f32.gmra.mxu0 %v590
        %v612 = vpop.f32.mrf.mxu0
        %v613 = vadd.f32 0.0, %v612
        %614 = vmatmul.f32.gmra.mxu0 %v593
        %v615 = vpop.f32.mrf.mxu0
        %v616 = vadd.f32 0.0, %v615
        %617 = vdwg.mxu0
        %v619 = vsel %vm396, %v480, 0
        %v622 = vsel %vm396, %v483, 0
        %624 = vmatpush.msra.mxu0 0.0
        %625 = vmatpush.msra.mxu0 0.0
        %626 = vmatpush.msra.mxu0 0.0
        %627 = vmatpush.msra.mxu0 0.0
        %628 = vmatpush.msra.mxu0 0.0
        %629 = vmatpush.msra.mxu0 0.0
        %630 = vmatpush.msra.mxu0 0.0
        %631 = vmatpush.msra.mxu0 0.0
        %632 = vmatpush.msra.mxu0 0.0
        %633 = vmatpush.msra.mxu0 0.0
        %634 = vmatpush.msra.mxu0 0.0
        %635 = vmatpush.msra.mxu0 0.0
        %636 = vmatpush.msra.mxu0 0.0
        %637 = vmatpush.msra.mxu0 0.0
        %638 = vmatpush.msra.mxu0 %v486
        %639 = vmatpush.msra.mxu0 %v485
        %640 = vmatmul.f32.gmra.mxu0 %v619
        %v641 = vpop.f32.mrf.mxu0
        %v642 = vadd.f32 %v613, %v641
        %643 = vmatmul.f32.gmra.mxu0 %v622
        %v644 = vpop.f32.mrf.mxu0
        %v645 = vadd.f32 %v616, %v644
        %646 = vdwg.mxu0
        %647 = vrot.lane.b32.xlu0 %v394, 96
        %v648 = vpop.permute.xlu0 %647
        %649 = vrot.lane.b32.xlu0 %v395, 96
        %v650 = vpop.permute.xlu0 %649
        %651 = vrot.lane.b32.xlu0 %v381, 96
        %v652 = vpop.permute.xlu0 %651
        %653 = vrot.lane.b32.xlu0 %v382, 96
        %v654 = vpop.permute.xlu0 %653
        %v655 = vsel %vm396, %v648, 0
        %v657 = vsel %vm396, %v650, 0
        %v659 = vsel %vm396, %v652, 0
        %v661 = vsel %vm396, %v654, 0
        %663 = vmatpush.xpose.msra.mxu0 0.0
        %664 = vmatpush.xpose.msra.mxu0 0.0
        %665 = vmatpush.xpose.msra.mxu0 0.0
        %666 = vmatpush.xpose.msra.mxu0 0.0
        %667 = vmatpush.xpose.msra.mxu0 0.0
        %668 = vmatpush.xpose.msra.mxu0 0.0
        %669 = vmatpush.xpose.msra.mxu0 0.0
        %670 = vmatpush.xpose.msra.mxu0 0.0
        %671 = vmatpush.xpose.msra.mxu0 0.0
        %672 = vmatpush.xpose.msra.mxu0 0.0
        %673 = vmatpush.xpose.msra.mxu0 0.0
        %674 = vmatpush.xpose.msra.mxu0 0.0
        %675 = vmatpush.xpose.msra.mxu0 0.0
        %676 = vmatpush.xpose.msra.mxu0 0.0
        %677 = vmatpush.xpose.msra.mxu0 %v661
        %678 = vmatpush.xpose.msra.mxu0 %v659
        %679 = vmatmul.f32.gmra.mxu0 %v655
        %v680 = vpop.f32.mrf.mxu0
        %v681 = vadd.f32 0.0, %v680
        %682 = vmatmul.f32.gmra.mxu0 %v657
        %v683 = vpop.f32.mrf.mxu0
        %v684 = vadd.f32 0.0, %v683
        %685 = vdwg.mxu0
        %v686 = vsel %vm387, %v681, -1e+09
        %v687 = vsel %vm388, %v684, -1e+09
        %v688 = vsel %vm396, %v686, -inf
        %689 = vmax.xlane.f32.xlu0 %v688
        %v690 = vpop.xlane.xlu0 %689
        %v691 = vsel %vm396, %v687, -inf
        %692 = vmax.xlane.f32.xlu0 %v691
        %v693 = vpop.xlane.xlu0 %692
        %v694 = vsub.f32 %v686, %v690
        %v695 = vsub.f32 %v687, %v693
        %v696 = vmul.f32 %v694, 1.442695
        %v697 = vpow.pop %v696
        %v698 = vmul.f32 %v695, 1.442695
        %v699 = vpow.pop %v698
        %v700 = vsel %vm396, %v697, 0.0
        %701 = vadd.xlane.f32.xlu0 %v700
        %v702 = vpop.xlane.xlu0 %701
        %v703 = vsel %vm396, %v699, 0.0
        %704 = vadd.xlane.f32.xlu0 %v703
        %v705 = vpop.xlane.xlu0 %704
        %v706 = vrcp.pop %v702
        %v707 = vrcp.pop %v705
        %v708 = vmul.f32 %v697, %v706
        %v709 = vmul.f32 %v699, %v707
        %710 = vrot.lane.b32.xlu0 %v383, 96
        %v711 = vpop.permute.xlu0 %710
        %712 = vrot.lane.b32.xlu0 %v384, 96
        %v713 = vpop.permute.xlu0 %712
        %v717 = vsel %vm396, %v708, 0
        %v720 = vsel %vm396, %v709, 0
        %722 = vmatpush.msra.mxu0 0.0
        %723 = vmatpush.msra.mxu0 0.0
        %724 = vmatpush.msra.mxu0 0.0
        %725 = vmatpush.msra.mxu0 0.0
        %726 = vmatpush.msra.mxu0 0.0
        %727 = vmatpush.msra.mxu0 0.0
        %728 = vmatpush.msra.mxu0 0.0
        %729 = vmatpush.msra.mxu0 0.0
        %730 = vmatpush.msra.mxu0 0.0
        %731 = vmatpush.msra.mxu0 0.0
        %732 = vmatpush.msra.mxu0 0.0
        %733 = vmatpush.msra.mxu0 0.0
        %734 = vmatpush.msra.mxu0 0.0
        %735 = vmatpush.msra.mxu0 0.0
        %736 = vmatpush.msra.mxu0 %v713
        %737 = vmatpush.msra.mxu0 %v711
        %738 = vmatmul.f32.gmra.mxu0 %v717
        %v739 = vpop.f32.mrf.mxu0
        %v740 = vadd.f32 0.0, %v739
        %741 = vmatmul.f32.gmra.mxu0 %v720
        %v742 = vpop.f32.mrf.mxu0
        %v743 = vadd.f32 0.0, %v742
        %744 = vdwg.mxu0
        %v745 = vld [vmem:[#allocation6 + $0x20] sm:$0xff]
        %v746 = vld [vmem:[#allocation6 + $0x28] sm:$0xff]
        %v748 = vsel %vm396, %v740, 0
        %v751 = vsel %vm396, %v743, 0
        %753 = vmatpush.msra.mxu0 0.0
        %754 = vmatpush.msra.mxu0 0.0
        %755 = vmatpush.msra.mxu0 0.0
        %756 = vmatpush.msra.mxu0 0.0
        %757 = vmatpush.msra.mxu0 0.0
        %758 = vmatpush.msra.mxu0 0.0
        %759 = vmatpush.msra.mxu0 0.0
        %760 = vmatpush.msra.mxu0 0.0
        %761 = vmatpush.msra.mxu0 0.0
        %762 = vmatpush.msra.mxu0 0.0
        %763 = vmatpush.msra.mxu0 0.0
        %764 = vmatpush.msra.mxu0 0.0
        %765 = vmatpush.msra.mxu0 0.0
        %766 = vmatpush.msra.mxu0 0.0
        %767 = vmatpush.msra.mxu0 %v746
        %768 = vmatpush.msra.mxu0 %v745
        %769 = vmatmul.f32.gmra.mxu0 %v748
        %v770 = vpop.f32.mrf.mxu0
        %v771 = vadd.f32 0.0, %v770
        %772 = vmatmul.f32.gmra.mxu0 %v751
        %v773 = vpop.f32.mrf.mxu0
        %v774 = vadd.f32 0.0, %v773
        %775 = vdwg.mxu0
        %v776 = vadd.f32 %v642, %v771
        %v777 = vadd.f32 %v645, %v774
        %778 = vrot.lane.b32.xlu0 %v394, 80
        %v779 = vpop.permute.xlu0 %778
        %780 = vrot.lane.b32.xlu0 %v395, 80
        %v781 = vpop.permute.xlu0 %780
        %782 = vrot.lane.b32.xlu0 %v381, 80
        %v783 = vpop.permute.xlu0 %782
        %784 = vrot.lane.b32.xlu0 %v382, 80
        %v785 = vpop.permute.xlu0 %784
        %v786 = vsel %vm396, %v779, 0
        %v788 = vsel %vm396, %v781, 0
        %v790 = vsel %vm396, %v783, 0
        %v792 = vsel %vm396, %v785, 0
        %794 = vmatpush.xpose.msra.mxu0 0.0
        %795 = vmatpush.xpose.msra.mxu0 0.0
        %796 = vmatpush.xpose.msra.mxu0 0.0
        %797 = vmatpush.xpose.msra.mxu0 0.0
        %798 = vmatpush.xpose.msra.mxu0 0.0
        %799 = vmatpush.xpose.msra.mxu0 0.0
        %800 = vmatpush.xpose.msra.mxu0 0.0
        %801 = vmatpush.xpose.msra.mxu0 0.0
        %802 = vmatpush.xpose.msra.mxu0 0.0
        %803 = vmatpush.xpose.msra.mxu0 0.0
        %804 = vmatpush.xpose.msra.mxu0 0.0
        %805 = vmatpush.xpose.msra.mxu0 0.0
        %806 = vmatpush.xpose.msra.mxu0 0.0
        %807 = vmatpush.xpose.msra.mxu0 0.0
        %808 = vmatpush.xpose.msra.mxu0 %v792
        %809 = vmatpush.xpose.msra.mxu0 %v790
        %810 = vmatmul.f32.gmra.mxu0 %v786
        %v811 = vpop.f32.mrf.mxu0
        %v812 = vadd.f32 0.0, %v811
        %813 = vmatmul.f32.gmra.mxu0 %v788
        %v814 = vpop.f32.mrf.mxu0
        %v815 = vadd.f32 0.0, %v814
        %816 = vdwg.mxu0
        %v817 = vsel %vm387, %v812, -1e+09
        %v818 = vsel %vm388, %v815, -1e+09
        %v819 = vsel %vm396, %v817, -inf
        %820 = vmax.xlane.f32.xlu0 %v819
        %v821 = vpop.xlane.xlu0 %820
        %v822 = vsel %vm396, %v818, -inf
        %823 = vmax.xlane.f32.xlu0 %v822
        %v824 = vpop.xlane.xlu0 %823
        %v825 = vsub.f32 %v817, %v821
        %v826 = vsub.f32 %v818, %v824
        %v827 = vmul.f32 %v825, 1.442695
        %v828 = vpow.pop %v827
        %v829 = vmul.f32 %v826, 1.442695
        %v830 = vpow.pop %v829
        %v831 = vsel %vm396, %v828, 0.0
        %832 = vadd.xlane.f32.xlu0 %v831
        %v833 = vpop.xlane.xlu0 %832
        %v834 = vsel %vm396, %v830, 0.0
        %835 = vadd.xlane.f32.xlu0 %v834
        %v836 = vpop.xlane.xlu0 %835
        %v837 = vrcp.pop %v833
        %v838 = vrcp.pop %v836
        %v839 = vmul.f32 %v828, %v837
        %v840 = vmul.f32 %v830, %v838
        %841 = vrot.lane.b32.xlu0 %v383, 80
        %v842 = vpop.permute.xlu0 %841
        %843 = vrot.lane.b32.xlu0 %v384, 80
        %v844 = vpop.permute.xlu0 %843
        %v848 = vsel %vm396, %v839, 0
        %v851 = vsel %vm396, %v840, 0
        %853 = vmatpush.msra.mxu0 0.0
        %854 = vmatpush.msra.mxu0 0.0
        %855 = vmatpush.msra.mxu0 0.0
        %856 = vmatpush.msra.mxu0 0.0
        %857 = vmatpush.msra.mxu0 0.0
        %858 = vmatpush.msra.mxu0 0.0
        %859 = vmatpush.msra.mxu0 0.0
        %860 = vmatpush.msra.mxu0 0.0
        %861 = vmatpush.msra.mxu0 0.0
        %862 = vmatpush.msra.mxu0 0.0
        %863 = vmatpush.msra.mxu0 0.0
        %864 = vmatpush.msra.mxu0 0.0
        %865 = vmatpush.msra.mxu0 0.0
        %866 = vmatpush.msra.mxu0 0.0
        %867 = vmatpush.msra.mxu0 %v844
        %868 = vmatpush.msra.mxu0 %v842
        %869 = vmatmul.f32.gmra.mxu0 %v848
        %v870 = vpop.f32.mrf.mxu0
        %v871 = vadd.f32 0.0, %v870
        %872 = vmatmul.f32.gmra.mxu0 %v851
        %v873 = vpop.f32.mrf.mxu0
        %v874 = vadd.f32 0.0, %v873
        %875 = vdwg.mxu0
        %v876 = vld [vmem:[#allocation6 + $0x30] sm:$0xff]
        %v877 = vld [vmem:[#allocation6 + $0x38] sm:$0xff]
        %v879 = vsel %vm396, %v871, 0
        %v882 = vsel %vm396, %v874, 0
        %884 = vmatpush.msra.mxu0 0.0
        %885 = vmatpush.msra.mxu0 0.0
        %886 = vmatpush.msra.mxu0 0.0
        %887 = vmatpush.msra.mxu0 0.0
        %888 = vmatpush.msra.mxu0 0.0
        %889 = vmatpush.msra.mxu0 0.0
        %890 = vmatpush.msra.mxu0 0.0
        %891 = vmatpush.msra.mxu0 0.0
        %892 = vmatpush.msra.mxu0 0.0
        %893 = vmatpush.msra.mxu0 0.0
        %894 = vmatpush.msra.mxu0 0.0
        %895 = vmatpush.msra.mxu0 0.0
        %896 = vmatpush.msra.mxu0 0.0
        %897 = vmatpush.msra.mxu0 0.0
        %898 = vmatpush.msra.mxu0 %v877
        %899 = vmatpush.msra.mxu0 %v876
        %900 = vmatmul.f32.gmra.mxu0 %v879
        %v901 = vpop.f32.mrf.mxu0
        %v902 = vadd.f32 0.0, %v901
        %903 = vmatmul.f32.gmra.mxu0 %v882
        %v904 = vpop.f32.mrf.mxu0
        %v905 = vadd.f32 0.0, %v904
        %906 = vdwg.mxu0
        %v907 = vadd.f32 %v776, %v902
        %v908 = vadd.f32 %v777, %v905
        %909 = vrot.lane.b32.xlu0 %v394, 64
        %v910 = vpop.permute.xlu0 %909
        %911 = vrot.lane.b32.xlu0 %v395, 64
        %v912 = vpop.permute.xlu0 %911
        %913 = vrot.lane.b32.xlu0 %v381, 64
        %v914 = vpop.permute.xlu0 %913
        %915 = vrot.lane.b32.xlu0 %v382, 64
        %v916 = vpop.permute.xlu0 %915
        %v917 = vsel %vm396, %v910, 0
        %v919 = vsel %vm396, %v912, 0
        %v921 = vsel %vm396, %v914, 0
        %v923 = vsel %vm396, %v916, 0
        %925 = vmatpush.xpose.msra.mxu0 0.0
        %926 = vmatpush.xpose.msra.mxu0 0.0
        %927 = vmatpush.xpose.msra.mxu0 0.0
        %928 = vmatpush.xpose.msra.mxu0 0.0
        %929 = vmatpush.xpose.msra.mxu0 0.0
        %930 = vmatpush.xpose.msra.mxu0 0.0
        %931 = vmatpush.xpose.msra.mxu0 0.0
        %932 = vmatpush.xpose.msra.mxu0 0.0
        %933 = vmatpush.xpose.msra.mxu0 0.0
        %934 = vmatpush.xpose.msra.mxu0 0.0
        %935 = vmatpush.xpose.msra.mxu0 0.0
        %936 = vmatpush.xpose.msra.mxu0 0.0
        %937 = vmatpush.xpose.msra.mxu0 0.0
        %938 = vmatpush.xpose.msra.mxu0 0.0
        %939 = vmatpush.xpose.msra.mxu0 %v923
        %940 = vmatpush.xpose.msra.mxu0 %v921
        %941 = vmatmul.f32.gmra.mxu0 %v917
        %v942 = vpop.f32.mrf.mxu0
        %v943 = vadd.f32 0.0, %v942
        %944 = vmatmul.f32.gmra.mxu0 %v919
        %v945 = vpop.f32.mrf.mxu0
        %v946 = vadd.f32 0.0, %v945
        %947 = vdwg.mxu0
        %v948 = vsel %vm387, %v943, -1e+09
        %v949 = vsel %vm388, %v946, -1e+09
        %v950 = vsel %vm396, %v948, -inf
        %951 = vmax.xlane.f32.xlu0 %v950
        %v952 = vpop.xlane.xlu0 %951
        %v953 = vsel %vm396, %v949, -inf
        %954 = vmax.xlane.f32.xlu0 %v953
        %v955 = vpop.xlane.xlu0 %954
        %v956 = vsub.f32 %v948, %v952
        %v957 = vsub.f32 %v949, %v955
        %v958 = vmul.f32 %v956, 1.442695
        %v959 = vpow.pop %v958
        %v960 = vmul.f32 %v957, 1.442695
        %v961 = vpow.pop %v960
        %v962 = vsel %vm396, %v959, 0.0
        %963 = vadd.xlane.f32.xlu0 %v962
        %v964 = vpop.xlane.xlu0 %963
        %v965 = vsel %vm396, %v961, 0.0
        %966 = vadd.xlane.f32.xlu0 %v965
        %v967 = vpop.xlane.xlu0 %966
        %v968 = vrcp.pop %v964
        %v969 = vrcp.pop %v967
        %v970 = vmul.f32 %v959, %v968
        %v971 = vmul.f32 %v961, %v969
        %972 = vrot.lane.b32.xlu0 %v383, 64
        %v973 = vpop.permute.xlu0 %972
        %974 = vrot.lane.b32.xlu0 %v384, 64
        %v975 = vpop.permute.xlu0 %974
        %v979 = vsel %vm396, %v970, 0
        %v982 = vsel %vm396, %v971, 0
        %984 = vmatpush.msra.mxu0 0.0
        %985 = vmatpush.msra.mxu0 0.0
        %986 = vmatpush.msra.mxu0 0.0
        %987 = vmatpush.msra.mxu0 0.0
        %988 = vmatpush.msra.mxu0 0.0
        %989 = vmatpush.msra.mxu0 0.0
        %990 = vmatpush.msra.mxu0 0.0
        %991 = vmatpush.msra.mxu0 0.0
        %992 = vmatpush.msra.mxu0 0.0
        %993 = vmatpush.msra.mxu0 0.0
        %994 = vmatpush.msra.mxu0 0.0
        %995 = vmatpush.msra.mxu0 0.0
        %996 = vmatpush.msra.mxu0 0.0
        %997 = vmatpush.msra.mxu0 0.0
        %998 = vmatpush.msra.mxu0 %v975
        %999 = vmatpush.msra.mxu0 %v973
        %1000 = vmatmul.f32.gmra.mxu0 %v979
        %v1001 = vpop.f32.mrf.mxu0
        %v1002 = vadd.f32 0.0, %v1001
        %1003 = vmatmul.f32.gmra.mxu0 %v982
        %v1004 = vpop.f32.mrf.mxu0
        %v1005 = vadd.f32 0.0, %v1004
        %1006 = vdwg.mxu0
        %v1007 = vld [vmem:[#allocation6 + $0x40] sm:$0xff]
        %v1008 = vld [vmem:[#allocation6 + $0x48] sm:$0xff]
        %v1010 = vsel %vm396, %v1002, 0
        %v1013 = vsel %vm396, %v1005, 0
        %1015 = vmatpush.msra.mxu0 0.0
        %1016 = vmatpush.msra.mxu0 0.0
        %1017 = vmatpush.msra.mxu0 0.0
        %1018 = vmatpush.msra.mxu0 0.0
        %1019 = vmatpush.msra.mxu0 0.0
        %1020 = vmatpush.msra.mxu0 0.0
        %1021 = vmatpush.msra.mxu0 0.0
        %1022 = vmatpush.msra.mxu0 0.0
        %1023 = vmatpush.msra.mxu0 0.0
        %1024 = vmatpush.msra.mxu0 0.0
        %1025 = vmatpush.msra.mxu0 0.0
        %1026 = vmatpush.msra.mxu0 0.0
        %1027 = vmatpush.msra.mxu0 0.0
        %1028 = vmatpush.msra.mxu0 0.0
        %1029 = vmatpush.msra.mxu0 %v1008
        %1030 = vmatpush.msra.mxu0 %v1007
        %1031 = vmatmul.f32.gmra.mxu0 %v1010
        %v1032 = vpop.f32.mrf.mxu0
        %v1033 = vadd.f32 0.0, %v1032
        %1034 = vmatmul.f32.gmra.mxu0 %v1013
        %v1035 = vpop.f32.mrf.mxu0
        %v1036 = vadd.f32 0.0, %v1035
        %1037 = vdwg.mxu0
        %v1038 = vadd.f32 %v907, %v1033
        %v1039 = vadd.f32 %v908, %v1036
        %1040 = vrot.lane.b32.xlu0 %v394, 48
        %v1041 = vpop.permute.xlu0 %1040
        %1042 = vrot.lane.b32.xlu0 %v395, 48
        %v1043 = vpop.permute.xlu0 %1042
        %1044 = vrot.lane.b32.xlu0 %v381, 48
        %v1045 = vpop.permute.xlu0 %1044
        %1046 = vrot.lane.b32.xlu0 %v382, 48
        %v1047 = vpop.permute.xlu0 %1046
        %v1048 = vsel %vm396, %v1041, 0
        %v1050 = vsel %vm396, %v1043, 0
        %v1052 = vsel %vm396, %v1045, 0
        %v1054 = vsel %vm396, %v1047, 0
        %1056 = vmatpush.xpose.msra.mxu0 0.0
        %1057 = vmatpush.xpose.msra.mxu0 0.0
        %1058 = vmatpush.xpose.msra.mxu0 0.0
        %1059 = vmatpush.xpose.msra.mxu0 0.0
        %1060 = vmatpush.xpose.msra.mxu0 0.0
        %1061 = vmatpush.xpose.msra.mxu0 0.0
        %1062 = vmatpush.xpose.msra.mxu0 0.0
        %1063 = vmatpush.xpose.msra.mxu0 0.0
        %1064 = vmatpush.xpose.msra.mxu0 0.0
        %1065 = vmatpush.xpose.msra.mxu0 0.0
        %1066 = vmatpush.xpose.msra.mxu0 0.0
        %1067 = vmatpush.xpose.msra.mxu0 0.0
        %1068 = vmatpush.xpose.msra.mxu0 0.0
        %1069 = vmatpush.xpose.msra.mxu0 0.0
        %1070 = vmatpush.xpose.msra.mxu0 %v1054
        %1071 = vmatpush.xpose.msra.mxu0 %v1052
        %1072 = vmatmul.f32.gmra.mxu0 %v1048
        %v1073 = vpop.f32.mrf.mxu0
        %v1074 = vadd.f32 0.0, %v1073
        %1075 = vmatmul.f32.gmra.mxu0 %v1050
        %v1076 = vpop.f32.mrf.mxu0
        %v1077 = vadd.f32 0.0, %v1076
        %1078 = vdwg.mxu0
        %v1079 = vsel %vm387, %v1074, -1e+09
        %v1080 = vsel %vm388, %v1077, -1e+09
        %v1081 = vsel %vm396, %v1079, -inf
        %1082 = vmax.xlane.f32.xlu0 %v1081
        %v1083 = vpop.xlane.xlu0 %1082
        %v1084 = vsel %vm396, %v1080, -inf
        %1085 = vmax.xlane.f32.xlu0 %v1084
        %v1086 = vpop.xlane.xlu0 %1085
        %v1087 = vsub.f32 %v1079, %v1083
        %v1088 = vsub.f32 %v1080, %v1086
        %v1089 = vmul.f32 %v1087, 1.442695
        %v1090 = vpow.pop %v1089
        %v1091 = vmul.f32 %v1088, 1.442695
        %v1092 = vpow.pop %v1091
        %v1093 = vsel %vm396, %v1090, 0.0
        %1094 = vadd.xlane.f32.xlu0 %v1093
        %v1095 = vpop.xlane.xlu0 %1094
        %v1096 = vsel %vm396, %v1092, 0.0
        %1097 = vadd.xlane.f32.xlu0 %v1096
        %v1098 = vpop.xlane.xlu0 %1097
        %v1099 = vrcp.pop %v1095
        %v1100 = vrcp.pop %v1098
        %v1101 = vmul.f32 %v1090, %v1099
        %v1102 = vmul.f32 %v1092, %v1100
        %1103 = vrot.lane.b32.xlu0 %v383, 48
        %v1104 = vpop.permute.xlu0 %1103
        %1105 = vrot.lane.b32.xlu0 %v384, 48
        %v1106 = vpop.permute.xlu0 %1105
        %v1110 = vsel %vm396, %v1101, 0
        %v1113 = vsel %vm396, %v1102, 0
        %1115 = vmatpush.msra.mxu0 0.0
        %1116 = vmatpush.msra.mxu0 0.0
        %1117 = vmatpush.msra.mxu0 0.0
        %1118 = vmatpush.msra.mxu0 0.0
        %1119 = vmatpush.msra.mxu0 0.0
        %1120 = vmatpush.msra.mxu0 0.0
        %1121 = vmatpush.msra.mxu0 0.0
        %1122 = vmatpush.msra.mxu0 0.0
        %1123 = vmatpush.msra.mxu0 0.0
        %1124 = vmatpush.msra.mxu0 0.0
        %1125 = vmatpush.msra.mxu0 0.0
        %1126 = vmatpush.msra.mxu0 0.0
        %1127 = vmatpush.msra.mxu0 0.0
        %1128 = vmatpush.msra.mxu0 0.0
        %1129 = vmatpush.msra.mxu0 %v1106
        %1130 = vmatpush.msra.mxu0 %v1104
        %1131 = vmatmul.f32.gmra.mxu0 %v1110
        %v1132 = vpop.f32.mrf.mxu0
        %v1133 = vadd.f32 0.0, %v1132
        %1134 = vmatmul.f32.gmra.mxu0 %v1113
        %v1135 = vpop.f32.mrf.mxu0
        %v1136 = vadd.f32 0.0, %v1135
        %1137 = vdwg.mxu0
        %v1138 = vld [vmem:[#allocation6 + $0x50] sm:$0xff]
        %v1139 = vld [vmem:[#allocation6 + $0x58] sm:$0xff]
        %v1141 = vsel %vm396, %v1133, 0
        %v1144 = vsel %vm396, %v1136, 0
        %1146 = vmatpush.msra.mxu0 0.0
        %1147 = vmatpush.msra.mxu0 0.0
        %1148 = vmatpush.msra.mxu0 0.0
        %1149 = vmatpush.msra.mxu0 0.0
        %1150 = vmatpush.msra.mxu0 0.0
        %1151 = vmatpush.msra.mxu0 0.0
        %1152 = vmatpush.msra.mxu0 0.0
        %1153 = vmatpush.msra.mxu0 0.0
        %1154 = vmatpush.msra.mxu0 0.0
        %1155 = vmatpush.msra.mxu0 0.0
        %1156 = vmatpush.msra.mxu0 0.0
        %1157 = vmatpush.msra.mxu0 0.0
        %1158 = vmatpush.msra.mxu0 0.0
        %1159 = vmatpush.msra.mxu0 0.0
        %1160 = vmatpush.msra.mxu0 %v1139
        %1161 = vmatpush.msra.mxu0 %v1138
        %1162 = vmatmul.f32.gmra.mxu0 %v1141
        %v1163 = vpop.f32.mrf.mxu0
        %v1164 = vadd.f32 0.0, %v1163
        %1165 = vmatmul.f32.gmra.mxu0 %v1144
        %v1166 = vpop.f32.mrf.mxu0
        %v1167 = vadd.f32 0.0, %v1166
        %1168 = vdwg.mxu0
        %v1169 = vadd.f32 %v1038, %v1164
        %v1170 = vadd.f32 %v1039, %v1167
        %1171 = vrot.lane.b32.xlu0 %v394, 32
        %v1172 = vpop.permute.xlu0 %1171
        %1173 = vrot.lane.b32.xlu0 %v395, 32
        %v1174 = vpop.permute.xlu0 %1173
        %1175 = vrot.lane.b32.xlu0 %v381, 32
        %v1176 = vpop.permute.xlu0 %1175
        %1177 = vrot.lane.b32.xlu0 %v382, 32
        %v1178 = vpop.permute.xlu0 %1177
        %v1179 = vsel %vm396, %v1172, 0
        %v1181 = vsel %vm396, %v1174, 0
        %v1183 = vsel %vm396, %v1176, 0
        %v1185 = vsel %vm396, %v1178, 0
        %1187 = vmatpush.xpose.msra.mxu0 0.0
        %1188 = vmatpush.xpose.msra.mxu0 0.0
        %1189 = vmatpush.xpose.msra.mxu0 0.0
        %1190 = vmatpush.xpose.msra.mxu0 0.0
        %1191 = vmatpush.xpose.msra.mxu0 0.0
        %1192 = vmatpush.xpose.msra.mxu0 0.0
        %1193 = vmatpush.xpose.msra.mxu0 0.0
        %1194 = vmatpush.xpose.msra.mxu0 0.0
        %1195 = vmatpush.xpose.msra.mxu0 0.0
        %1196 = vmatpush.xpose.msra.mxu0 0.0
        %1197 = vmatpush.xpose.msra.mxu0 0.0
        %1198 = vmatpush.xpose.msra.mxu0 0.0
        %1199 = vmatpush.xpose.msra.mxu0 0.0
        %1200 = vmatpush.xpose.msra.mxu0 0.0
        %1201 = vmatpush.xpose.msra.mxu0 %v1185
        %1202 = vmatpush.xpose.msra.mxu0 %v1183
        %1203 = vmatmul.f32.gmra.mxu0 %v1179
        %v1204 = vpop.f32.mrf.mxu0
        %v1205 = vadd.f32 0.0, %v1204
        %1206 = vmatmul.f32.gmra.mxu0 %v1181
        %v1207 = vpop.f32.mrf.mxu0
        %v1208 = vadd.f32 0.0, %v1207
        %1209 = vdwg.mxu0
        %v1210 = vsel %vm387, %v1205, -1e+09
        %v1211 = vsel %vm388, %v1208, -1e+09
        %v1212 = vsel %vm396, %v1210, -inf
        %1213 = vmax.xlane.f32.xlu0 %v1212
        %v1214 = vpop.xlane.xlu0 %1213
        %v1215 = vsel %vm396, %v1211, -inf
        %1216 = vmax.xlane.f32.xlu0 %v1215
        %v1217 = vpop.xlane.xlu0 %1216
        %v1218 = vsub.f32 %v1210, %v1214
        %v1219 = vsub.f32 %v1211, %v1217
        %v1220 = vmul.f32 %v1218, 1.442695
        %v1221 = vpow.pop %v1220
        %v1222 = vmul.f32 %v1219, 1.442695
        %v1223 = vpow.pop %v1222
        %v1224 = vsel %vm396, %v1221, 0.0
        %1225 = vadd.xlane.f32.xlu0 %v1224
        %v1226 = vpop.xlane.xlu0 %1225
        %v1227 = vsel %vm396, %v1223, 0.0
        %1228 = vadd.xlane.f32.xlu0 %v1227
        %v1229 = vpop.xlane.xlu0 %1228
        %v1230 = vrcp.pop %v1226
        %v1231 = vrcp.pop %v1229
        %v1232 = vmul.f32 %v1221, %v1230
        %v1233 = vmul.f32 %v1223, %v1231
        %1234 = vrot.lane.b32.xlu0 %v383, 32
        %v1235 = vpop.permute.xlu0 %1234
        %1236 = vrot.lane.b32.xlu0 %v384, 32
        %v1237 = vpop.permute.xlu0 %1236
        %v1241 = vsel %vm396, %v1232, 0
        %v1244 = vsel %vm396, %v1233, 0
        %1246 = vmatpush.msra.mxu0 0.0
        %1247 = vmatpush.msra.mxu0 0.0
        %1248 = vmatpush.msra.mxu0 0.0
        %1249 = vmatpush.msra.mxu0 0.0
        %1250 = vmatpush.msra.mxu0 0.0
        %1251 = vmatpush.msra.mxu0 0.0
        %1252 = vmatpush.msra.mxu0 0.0
        %1253 = vmatpush.msra.mxu0 0.0
        %1254 = vmatpush.msra.mxu0 0.0
        %1255 = vmatpush.msra.mxu0 0.0
        %1256 = vmatpush.msra.mxu0 0.0
        %1257 = vmatpush.msra.mxu0 0.0
        %1258 = vmatpush.msra.mxu0 0.0
        %1259 = vmatpush.msra.mxu0 0.0
        %1260 = vmatpush.msra.mxu0 %v1237
        %1261 = vmatpush.msra.mxu0 %v1235
        %1262 = vmatmul.f32.gmra.mxu0 %v1241
        %v1263 = vpop.f32.mrf.mxu0
        %v1264 = vadd.f32 0.0, %v1263
        %1265 = vmatmul.f32.gmra.mxu0 %v1244
        %v1266 = vpop.f32.mrf.mxu0
        %v1267 = vadd.f32 0.0, %v1266
        %1268 = vdwg.mxu0
        %v1269 = vld [vmem:[#allocation6 + $0x60] sm:$0xff]
        %v1270 = vld [vmem:[#allocation6 + $0x68] sm:$0xff]
        %v1272 = vsel %vm396, %v1264, 0
        %v1275 = vsel %vm396, %v1267, 0
        %1277 = vmatpush.msra.mxu0 0.0
        %1278 = vmatpush.msra.mxu0 0.0
        %1279 = vmatpush.msra.mxu0 0.0
        %1280 = vmatpush.msra.mxu0 0.0
        %1281 = vmatpush.msra.mxu0 0.0
        %1282 = vmatpush.msra.mxu0 0.0
        %1283 = vmatpush.msra.mxu0 0.0
        %1284 = vmatpush.msra.mxu0 0.0
        %1285 = vmatpush.msra.mxu0 0.0
        %1286 = vmatpush.msra.mxu0 0.0
        %1287 = vmatpush.msra.mxu0 0.0
        %1288 = vmatpush.msra.mxu0 0.0
        %1289 = vmatpush.msra.mxu0 0.0
        %1290 = vmatpush.msra.mxu0 0.0
        %1291 = vmatpush.msra.mxu0 %v1270
        %1292 = vmatpush.msra.mxu0 %v1269
        %1293 = vmatmul.f32.gmra.mxu0 %v1272
        %v1294 = vpop.f32.mrf.mxu0
        %v1295 = vadd.f32 0.0, %v1294
        %1296 = vmatmul.f32.gmra.mxu0 %v1275
        %v1297 = vpop.f32.mrf.mxu0
        %v1298 = vadd.f32 0.0, %v1297
        %1299 = vdwg.mxu0
        %v1300 = vadd.f32 %v1169, %v1295
        %v1301 = vadd.f32 %v1170, %v1298
        %1302 = vrot.lane.b32.xlu0 %v394, 16
        %v1303 = vpop.permute.xlu0 %1302
        %1304 = vrot.lane.b32.xlu0 %v395, 16
        %v1305 = vpop.permute.xlu0 %1304
        %1306 = vrot.lane.b32.xlu0 %v381, 16
        %v1307 = vpop.permute.xlu0 %1306
        %1308 = vrot.lane.b32.xlu0 %v382, 16
        %v1309 = vpop.permute.xlu0 %1308
        %v1310 = vsel %vm396, %v1303, 0
        %v1312 = vsel %vm396, %v1305, 0
        %v1314 = vsel %vm396, %v1307, 0
        %v1316 = vsel %vm396, %v1309, 0
        %1318 = vmatpush.xpose.msra.mxu0 0.0
        %1319 = vmatpush.xpose.msra.mxu0 0.0
        %1320 = vmatpush.xpose.msra.mxu0 0.0
        %1321 = vmatpush.xpose.msra.mxu0 0.0
        %1322 = vmatpush.xpose.msra.mxu0 0.0
        %1323 = vmatpush.xpose.msra.mxu0 0.0
        %1324 = vmatpush.xpose.msra.mxu0 0.0
        %1325 = vmatpush.xpose.msra.mxu0 0.0
        %1326 = vmatpush.xpose.msra.mxu0 0.0
        %1327 = vmatpush.xpose.msra.mxu0 0.0
        %1328 = vmatpush.xpose.msra.mxu0 0.0
        %1329 = vmatpush.xpose.msra.mxu0 0.0
        %1330 = vmatpush.xpose.msra.mxu0 0.0
        %1331 = vmatpush.xpose.msra.mxu0 0.0
        %1332 = vmatpush.xpose.msra.mxu0 %v1316
        %1333 = vmatpush.xpose.msra.mxu0 %v1314
        %1334 = vmatmul.f32.gmra.mxu0 %v1310
        %v1335 = vpop.f32.mrf.mxu0
        %v1336 = vadd.f32 0.0, %v1335
        %1337 = vmatmul.f32.gmra.mxu0 %v1312
        %v1338 = vpop.f32.mrf.mxu0
        %v1339 = vadd.f32 0.0, %v1338
        %1340 = vdwg.mxu0
        %v1341 = vsel %vm387, %v1336, -1e+09
        %v1342 = vsel %vm388, %v1339, -1e+09
        %v1343 = vsel %vm396, %v1341, -inf
        %1344 = vmax.xlane.f32.xlu0 %v1343
        %v1345 = vpop.xlane.xlu0 %1344
        %v1346 = vsel %vm396, %v1342, -inf
        %1347 = vmax.xlane.f32.xlu0 %v1346
        %v1348 = vpop.xlane.xlu0 %1347
        %v1349 = vsub.f32 %v1341, %v1345
        %v1350 = vsub.f32 %v1342, %v1348
        %v1351 = vmul.f32 %v1349, 1.442695
        %v1352 = vpow.pop %v1351
        %v1353 = vmul.f32 %v1350, 1.442695
        %v1354 = vpow.pop %v1353
        %v1355 = vsel %vm396, %v1352, 0.0
        %1356 = vadd.xlane.f32.xlu0 %v1355
        %v1357 = vpop.xlane.xlu0 %1356
        %v1358 = vsel %vm396, %v1354, 0.0
        %1359 = vadd.xlane.f32.xlu0 %v1358
        %v1360 = vpop.xlane.xlu0 %1359
        %v1361 = vrcp.pop %v1357
        %v1362 = vrcp.pop %v1360
        %v1363 = vmul.f32 %v1352, %v1361
        %v1364 = vmul.f32 %v1354, %v1362
        %1365 = vrot.lane.b32.xlu0 %v383, 16
        %v1366 = vpop.permute.xlu0 %1365
        %1367 = vrot.lane.b32.xlu0 %v384, 16
        %v1368 = vpop.permute.xlu0 %1367
        %v1372 = vsel %vm396, %v1363, 0
        %v1375 = vsel %vm396, %v1364, 0
        %1377 = vmatpush.msra.mxu0 0.0
        %1378 = vmatpush.msra.mxu0 0.0
        %1379 = vmatpush.msra.mxu0 0.0
        %1380 = vmatpush.msra.mxu0 0.0
        %1381 = vmatpush.msra.mxu0 0.0
        %1382 = vmatpush.msra.mxu0 0.0
        %1383 = vmatpush.msra.mxu0 0.0
        %1384 = vmatpush.msra.mxu0 0.0
        %1385 = vmatpush.msra.mxu0 0.0
        %1386 = vmatpush.msra.mxu0 0.0
        %1387 = vmatpush.msra.mxu0 0.0
        %1388 = vmatpush.msra.mxu0 0.0
        %1389 = vmatpush.msra.mxu0 0.0
        %1390 = vmatpush.msra.mxu0 0.0
        %1391 = vmatpush.msra.mxu0 %v1368
        %1392 = vmatpush.msra.mxu0 %v1366
        %1393 = vmatmul.f32.gmra.mxu0 %v1372
        %v1394 = vpop.f32.mrf.mxu0
        %v1395 = vadd.f32 0.0, %v1394
        %1396 = vmatmul.f32.gmra.mxu0 %v1375
        %v1397 = vpop.f32.mrf.mxu0
        %v1398 = vadd.f32 0.0, %v1397
        %1399 = vdwg.mxu0
        %v1400 = vld [vmem:[#allocation6 + $0x70] sm:$0xff]
        %v1401 = vld [vmem:[#allocation6 + $0x78] sm:$0xff]
        %v1403 = vsel %vm396, %v1395, 0
        %v1406 = vsel %vm396, %v1398, 0
        %1408 = vmatpush.msra.mxu0 0.0
        %1409 = vmatpush.msra.mxu0 0.0
        %1410 = vmatpush.msra.mxu0 0.0
        %1411 = vmatpush.msra.mxu0 0.0
        %1412 = vmatpush.msra.mxu0 0.0
        %1413 = vmatpush.msra.mxu0 0.0
        %1414 = vmatpush.msra.mxu0 0.0
        %1415 = vmatpush.msra.mxu0 0.0
        %1416 = vmatpush.msra.mxu0 0.0
        %1417 = vmatpush.msra.mxu0 0.0
        %1418 = vmatpush.msra.mxu0 0.0
        %1419 = vmatpush.msra.mxu0 0.0
        %1420 = vmatpush.msra.mxu0 0.0
        %1421 = vmatpush.msra.mxu0 0.0
        %1422 = vmatpush.msra.mxu0 %v1401
        %1423 = vmatpush.msra.mxu0 %v1400
        %1424 = vmatmul.f32.gmra.mxu0 %v1403
        %v1425 = vpop.f32.mrf.mxu0
        %v1426 = vadd.f32 0.0, %v1425
        %1427 = vmatmul.f32.gmra.mxu0 %v1406
        %v1428 = vpop.f32.mrf.mxu0
        %v1429 = vadd.f32 0.0, %v1428
        %1430 = vdwg.mxu0
        %v1431 = vadd.f32 %v1300, %v1426
        %v1432 = vadd.f32 %v1301, %v1429
        %v1433 = vadd.f32 %v389, %v1431
        %v1434 = vadd.f32 %v390, %v1432
        %v1436 = vperm.slane %v391, 0
        %v1438 = vadd.f32 %v1433, %v1436
        %v1439 = vadd.f32 %v1434, %v1436
        %1440 = vadd.xlane.f32.xlu0 %v1438
        %v1441 = vpop.xlane.xlu0 %1440
        %1442 = vadd.xlane.f32.xlu0 %v1439
        %v1443 = vpop.xlane.xlu0 %1442
        %v1444 = vrcp.pop 128.0
        %v1445 = vmul.f32 128.0, %v1444
        %v1446 = vsub.f32 1.0, %v1445
        %v1447 = vmul.f32 %v1444, %v1446
        %v1448 = vadd.f32 %v1444, %v1447
        %vm1449 = vweird.f32 %v1444
        %v1450 = vsel %vm1449, %v1444, %v1448
        %v1451 = vmul.f32 %v1441, %v1450
        %v1452 = vmul.f32 %v1443, %v1450
        %v1453 = vsub.f32 %v1438, %v1451
        %v1454 = vsub.f32 %v1439, %v1452
        %v1455 = vmul.f32 %v1453, %v1453
        %v1456 = vmul.f32 %v1454, %v1454
        %1457 = vadd.xlane.f32.xlu0 %v1455
        %v1458 = vpop.xlane.xlu0 %1457
        %1459 = vadd.xlane.f32.xlu0 %v1456
        %v1460 = vpop.xlane.xlu0 %1459
        %v1461 = vmul.f32 %v1458, %v1450
        %v1462 = vmul.f32 %v1460, %v1450
        %v1463 = vadd.f32 %v1461, 1e-05
        %v1464 = vadd.f32 %v1462, 1e-05
        %v1465 = vrsqrt.pop %v1463
        %v1466 = vmul.f32 %v1465, %v1463
        %v1467 = vmul.f32 %v1466, %v1465
        %v1468 = vmul.f32 0.5, %v1467
        %v1469 = vsub.f32 1.5, %v1468
        %v1470 = vmul.f32 %v1465, %v1469
        %vm1471 = vweird.f32 %v1463
        %vm1472 = vweird.f32 %v1465
        %vm1473 = vmor %vm1471, %vm1472
        %v1474 = vsel %vm1473, %v1465, %v1470
        %v1475 = vrsqrt.pop %v1464
        %v1476 = vmul.f32 %v1475, %v1464
        %v1477 = vmul.f32 %v1476, %v1475
        %v1478 = vmul.f32 0.5, %v1477
        %v1479 = vsub.f32 1.5, %v1478
        %v1480 = vmul.f32 %v1475, %v1479
        %vm1481 = vweird.f32 %v1464
        %vm1482 = vweird.f32 %v1475
        %vm1483 = vmor %vm1481, %vm1482
        %v1484 = vsel %vm1483, %v1475, %v1480
        %v1485 = vmul.f32 %v1453, %v1474
        %v1486 = vmul.f32 %v1454, %v1484
        %v1488 = vperm.slane %v392, 0
        %v1490 = vmul.f32 %v1485, %v1488
        %v1491 = vmul.f32 %v1486, %v1488
        %v1493 = vperm.slane %v393, 0
        %v1495 = vadd.f32 %v1490, %v1493
        %v1496 = vadd.f32 %v1491, %v1493
        %1497 = vst [vmem:[%s378] sm:$0xff] %v1495
        %1498 = vst [vmem:[%s378 + $0x8] sm:$0xff] %v1496
        %p1499 = scmp.lt.s32.totalorder %s24, 1
        %s1500 = scalar_select %p1499, %s24, 1
        %s1501 = smul.addr %s1500, 2
        %s1502 = smul.addr %s1501, 8
        %s1503 = scalar_lea.vmem %s7, %s1502
        // Predicated region
        $region61: #{decoder_layer.7} parent=47 // pred_check
          %p1504 = pneg %p204
        $region62: #{decoder_layer.7} parent=47 // pred_check_branch
          %1506 = sbr.rel (%p1504) target = $region64
        $region63: #{decoder_layer.7} parent=47 // pred_region
          _
        $region64: #{decoder_layer.7} parent=47 // pred_fallthru
          _
      $region48: #{decoder_layer.7} parent=5 // pred_fallthru
        _
      %p1507 = scmp.le.s32.totalorder 2, %s19
      // Predicated region
      $region65: #{decoder_layer.7} parent=5 // pred_check
        %p1508 = pneg %p1507
      $region66: #{decoder_layer.7} parent=5 // pred_check_branch
        %1510 = sbr.rel (%p1508) target = $region68
      $region67: #{decoder_layer.7} parent=5 // pred_region
        %s1511 = ssub.s32 %s19, 2
        // Predicated region
        $region69: #{decoder_layer.7} parent=67 // pred_check
          %p1512 = pneg %p210
        $region70: #{decoder_layer.7} parent=67 // pred_check_branch
          %1514 = sbr.rel (%p1512) target = $region72
        $region71: #{decoder_layer.7} parent=67 // pred_region
          %p1515 = scmp.lt.s32.totalorder %s25, 1
          %s1516 = scalar_select %p1515, %s25, 1
          %s1517 = smul.addr %s1516, 2
          %s1518 = smul.addr %s1517, 8
          %s1519 = scalar_lea.vmem %s7, %s1518
        $region72: #{decoder_layer.7} parent=67 // pred_fallthru
          _
      $region68: #{decoder_layer.7} parent=5 // pred_fallthru
        _
    $region6: #{decoder_layer.7} parent=1 // loop_footer
      %s23 = sadd.s32 1, %s19
    $region7: #{decoder_layer.7} parent=1 // loop_footer_branch
      %18 = sbr.rel target = $region3
    $region8: #{decoder_layer.7} parent=1 // loop_exit
      _
    %1520 = vsyncpa [#allocation3], 1
    %s1521 = scalar_lea.sflag [#allocation3], 1
    %1522 = vsyncpa %s1521, 1
    %1523 = vsyncpa [#allocation5], 1
    %s1524 = scalar_lea.sflag [#allocation5], 1
    %1525 = vsyncpa %s1524, 1

// kernel: decoder_layer.11
$region0: #{decoder_layer.11}
  #allocation0 [shape = 'u32[]', space=smem, size = 0x4, offset = 0x4, fixed_abs, tag = 'smem constant byte address 0x4 - core index']
  #allocation1 [shape = 'u32[72,128]{1,0:T(1,128)}', space=vmem, size = 0x9000, scoped, tag = 'internal scratch']
  %s0 = inlined_call_operand.vmem [shape: f32[32,128], index: 0, kind: input, shape index: {}]
  %s1 = inlined_call_operand.hbm [shape: f32[128,256], index: 1, kind: input, shape index: {}]
  %s2 = inlined_call_operand.vmem [shape: f32[1,256], index: 2, kind: input, shape index: {}]
  %s3 = inlined_call_operand.hbm [shape: f32[256,128], index: 3, kind: input, shape index: {}]
  %s4 = inlined_call_operand.vmem [shape: f32[1,128], index: 4, kind: input, shape index: {}]
  %s5 = inlined_call_operand.vmem [shape: f32[1,128], index: 5, kind: input, shape index: {}]
  %s6 = inlined_call_operand.vmem [shape: f32[1,128], index: 6, kind: input, shape index: {}]
  %s7 = inlined_call_operand.hbm [shape: f32[32,128], index: 7, kind: output, shape index: {}]
  %s8 = sld [smem:[#allocation0]]
  $region46: #{decoder_layer.11} parent=0
    _
  %s10 = ssub.s32 1, %s8
  %s11 = scalar_select 0, %s10, %s8
  $region1: #{decoder_layer.11} parent=0
    #allocation2 [shape = 'u8[131072]{0}', space=vmem, size = 0x20000, scoped, tag = 'input window, operand 1, single buffered']
    #allocation3 [shape = 's32[1]{0}', space=sflag, size = 0x4, scoped, tag = 'scoped memory for decoder_layer.11']
    #allocation4 [shape = 's32[1]{0}', space=sflag, size = 0x4, scoped, tag = 'scoped memory for decoder_layer.11']
    #allocation5 [shape = 'u8[131072]{0}', space=vmem, size = 0x20000, scoped, tag = 'input window, operand 3, single buffered']
    #allocation6 [shape = 's32[1]{0}', space=sflag, size = 0x4, scoped, tag = 'scoped memory for decoder_layer.11']
    #allocation7 [shape = 'u8[16384]{0}', space=vmem, size = 0x4000, scoped, tag = 'output window, operand 0, single buffered']
    %12 = vsyncpa [#allocation3], 0
    %13 = vsyncpa [#allocation6], 0
    %14 = vsyncpa [#allocation4], 0
    // Predicated region
    $region2: #{decoder_layer.11} parent=1 // pred_check
      _
    $region3: #{decoder_layer.11} parent=1 // pred_check_branch
      %16 = sbr.rel (0) target = $region5
    $region4: #{decoder_layer.11} parent=1 // pred_region
      _
    $region5: #{decoder_layer.11} parent=1 // pred_fallthru
      _
    // Predicated region
    $region6: #{decoder_layer.11} parent=1 // pred_check
      _
    $region7: #{decoder_layer.11} parent=1 // pred_check_branch
      %18 = sbr.rel (0) target = $region9
    $region8: #{decoder_layer.11} parent=1 // pred_region
      %20 = vsyncadd [#allocation3], 0
      %s21 = sshll.u32 %s1, 4
      %s22 = int_to_ptr.hbm [resolvable:$true] %s21
      %s23 = sshll.u32 [#allocation2], 4
      %s24 = int_to_ptr.vmem [resolvable:$true] %s23
      %29 = dma.hbm_to_vmem [thread:$0]  %s22, 4096, %s24, [#allocation3], 256, 256, 16
    $region9: #{decoder_layer.11} parent=1 // pred_fallthru
      _
    // Predicated region
    $region10: #{decoder_layer.11} parent=1 // pred_check
      _
    $region11: #{decoder_layer.11} parent=1 // pred_check_branch
      %31 = sbr.rel (0) target = $region13
    $region12: #{decoder_layer.11} parent=1 // pred_region
      _
    $region13: #{decoder_layer.11} parent=1 // pred_fallthru
      _
    // Predicated region
    $region14: #{decoder_layer.11} parent=1 // pred_check
      _
    $region15: #{decoder_layer.11} parent=1 // pred_check_branch
      %33 = sbr.rel (0) target = $region17
    $region16: #{decoder_layer.11} parent=1 // pred_region
      %35 = vsyncadd [#allocation6], 0
      %s36 = sshll.u32 %s3, 4
      %s37 = int_to_ptr.hbm [resolvable:$true] %s36
      %s38 = sshll.u32 [#allocation5], 4
      %s39 = int_to_ptr.vmem [resolvable:$true] %s38
      %44 = dma.hbm_to_vmem [thread:$0]  %s37, 4096, %s39, [#allocation6], 128, 128, 8
    $region17: #{decoder_layer.11} parent=1 // pred_fallthru
      _
    // Predicated region
    $region18: #{decoder_layer.11} parent=1 // pred_check
      _
    $region19: #{decoder_layer.11} parent=1 // pred_check_branch
      %46 = sbr.rel (0) target = $region21
    $region20: #{decoder_layer.11} parent=1 // pred_region
      _
    $region21: #{decoder_layer.11} parent=1 // pred_fallthru
      _
    // Predicated region
    $region22: #{decoder_layer.11} parent=1 // pred_check
      _
    $region23: #{decoder_layer.11} parent=1 // pred_check_branch
      %48 = sbr.rel (0) target = $region25
    $region24: #{decoder_layer.11} parent=1 // pred_region
      _
    $region25: #{decoder_layer.11} parent=1 // pred_fallthru
      _
    // Predicated region
    $region26: #{decoder_layer.11} parent=1 // pred_check
      _
    $region27: #{decoder_layer.11} parent=1 // pred_check_branch
      %50 = sbr.rel (0) target = $region29
    $region28: #{decoder_layer.11} parent=1 // pred_region
      _
    $region29: #{decoder_layer.11} parent=1 // pred_fallthru
      _
    // Predicated region
    $region30: #{decoder_layer.11} parent=1 // pred_check
      _
    $region31: #{decoder_layer.11} parent=1 // pred_check_branch
      %52 = sbr.rel (0) target = $region33
    $region32: #{decoder_layer.11} parent=1 // pred_region
      %54 = dma.done [#allocation3], 4096
    $region33: #{decoder_layer.11} parent=1 // pred_fallthru
      _
    // Predicated region
    $region34: #{decoder_layer.11} parent=1 // pred_check
      _
    $region35: #{decoder_layer.11} parent=1 // pred_check_branch
      %56 = sbr.rel (0) target = $region37
    $region36: #{decoder_layer.11} parent=1 // pred_region
      %58 = dma.done [#allocation6], 4096
    $region37: #{decoder_layer.11} parent=1 // pred_fallthru
      _
    %v59 = vld [vmem:[%s0] sm:$0xff]
    %v60 = vld [vmem:[%s0 + $0x8] sm:$0xff]
    %v61 = vld [vmem:[%s0 + $0x10] sm:$0xff]
    %v62 = vld [vmem:[%s0 + $0x18] sm:$0xff]
    %v63 = vld [vmem:[#allocation2] sm:$0xff]
    %v64 = vld [vmem:[#allocation2 + $0x8] sm:$0xff]
    %v65 = vld [vmem:[#allocation2 + $0x10] sm:$0xff]
    %v66 = vld [vmem:[#allocation2 + $0x18] sm:$0xff]
    %v67 = vld [vmem:[#allocation2 + $0x20] sm:$0xff]
    %v68 = vld [vmem:[#allocation2 + $0x28] sm:$0xff]
    %v69 = vld [vmem:[#allocation2 + $0x30] sm:$0xff]
    %v70 = vld [vmem:[#allocation2 + $0x38] sm:$0xff]
    %v71 = vld [vmem:[#allocation2 + $0x40] sm:$0xff]
    %v72 = vld [vmem:[#allocation2 + $0x48] sm:$0xff]
    %v73 = vld [vmem:[#allocation2 + $0x50] sm:$0xff]
    %v74 = vld [vmem:[#allocation2 + $0x58] sm:$0xff]
    %v75 = vld [vmem:[#allocation2 + $0x60] sm:$0xff]
    %v76 = vld [vmem:[#allocation2 + $0x68] sm:$0xff]
    %v77 = vld [vmem:[#allocation2 + $0x70] sm:$0xff]
    %v78 = vld [vmem:[#allocation2 + $0x78] sm:$0xff]
    %v79 = vld [vmem:[#allocation2 + $0x80] sm:$0xff]
    %v80 = vld [vmem:[#allocation2 + $0x88] sm:$0xff]
    %v81 = vld [vmem:[#allocation2 + $0x90] sm:$0xff]
    %v82 = vld [vmem:[#allocation2 + $0x98] sm:$0xff]
    %v83 = vld [vmem:[#allocation2 + $0xa0] sm:$0xff]
    %v84 = vld [vmem:[#allocation2 + $0xa8] sm:$0xff]
    %v85 = vld [vmem:[#allocation2 + $0xb0] sm:$0xff]
    %v86 = vld [vmem:[#allocation2 + $0xb8] sm:$0xff]
    %v87 = vld [vmem:[#allocation2 + $0xc0] sm:$0xff]
    %v88 = vld [vmem:[#allocation2 + $0xc8] sm:$0xff]
    %v89 = vld [vmem:[#allocation2 + $0xd0] sm:$0xff]
    %v90 = vld [vmem:[#allocation2 + $0xd8] sm:$0xff]
    %v91 = vld [vmem:[#allocation2 + $0xe0] sm:$0xff]
    %v92 = vld [vmem:[#allocation2 + $0xe8] sm:$0xff]
    %v93 = vld [vmem:[#allocation2 + $0xf0] sm:$0xff]
    %v94 = vld [vmem:[#allocation2 + $0xf8] sm:$0xff]
    %v95 = vld [vmem:[%s2] sm:$0x3]
    %v97 = vperm.slane %v95, 0
    %v98 = vperm.slane %v95, 1
    %101 = vmatpush.msra.mxu0 %v93
    %102 = vmatpush.msra.mxu0 %v91
    %103 = vmatpush.msra.mxu0 %v89
    %104 = vmatpush.msra.mxu0 %v87
    %105 = vmatpush.msra.mxu0 %v85
    %106 = vmatpush.msra.mxu0 %v83
    %107 = vmatpush.msra.mxu0 %v81
    %108 = vmatpush.msra.mxu0 %v79
    %109 = vmatpush.msra.mxu0 %v77
    %110 = vmatpush.msra.mxu0 %v75
    %111 = vmatpush.msra.mxu0 %v73
    %112 = vmatpush.msra.mxu0 %v71
    %113 = vmatpush.msra.mxu0 %v69
    %114 = vmatpush.msra.mxu0 %v67
    %115 = vmatpush.msra.mxu0 %v65
    %116 = vmatpush.msra.mxu0 %v63
    %117 = vmatmul.f32.gmra.mxu0 %v59
    %v118 = vpop.f32.mrf.mxu0
    %v119 = vadd.f32 %v97, %v118
    %120 = vmatmul.f32.gmra.mxu0 %v60
    %v121 = vpop.f32.mrf.mxu0
    %v122 = vadd.f32 %v97, %v121
    %123 = vmatmul.f32.gmra.mxu0 %v61
    %v124 = vpop.f32.mrf.mxu0
    %v125 = vadd.f32 %v97, %v124
    %126 = vmatmul.f32.gmra.mxu0 %v62
    %v127 = vpop.f32.mrf.mxu0
    %v128 = vadd.f32 %v97, %v127
    %129 = vdwg.mxu0
    %130 = vmatpush.msra.mxu0 %v94
    %131 = vmatpush.msra.mxu0 %v92
    %132 = vmatpush.msra.mxu0 %v90
    %133 = vmatpush.msra.mxu0 %v88
    %134 = vmatpush.msra.mxu0 %v86
    %135 = vmatpush.msra.mxu0 %v84
    %136 = vmatpush.msra.mxu0 %v82
    %137 = vmatpush.msra.mxu0 %v80
    %138 = vmatpush.msra.mxu0 %v78
    %139 = vmatpush.msra.mxu0 %v76
    %140 = vmatpush.msra.mxu0 %v74
    %141 = vmatpush.msra.mxu0 %v72
    %142 = vmatpush.msra.mxu0 %v70
    %143 = vmatpush.msra.mxu0 %v68
    %144 = vmatpush.msra.mxu0 %v66
    %145 = vmatpush.msra.mxu0 %v64
    %146 = vmatmul.f32.gmra.mxu0 %v59
    %v147 = vpop.f32.mrf.mxu0
    %v148 = vadd.f32 %v98, %v147
    %149 = vmatmul.f32.gmra.mxu0 %v60
    %v150 = vpop.f32.mrf.mxu0
    %v151 = vadd.f32 %v98, %v150
    %152 = vmatmul.f32.gmra.mxu0 %v61
    %v153 = vpop.f32.mrf.mxu0
    %v154 = vadd.f32 %v98, %v153
    %155 = vmatmul.f32.gmra.mxu0 %v62
    %v156 = vpop.f32.mrf.mxu0
    %v157 = vadd.f32 %v98, %v156
    %158 = vdwg.mxu0
    %v159 = vmax.f32 %v119, 0.0
    %v160 = vmax.f32 %v148, 0.0
    %v161 = vmax.f32 %v122, 0.0
    %v162 = vmax.f32 %v151, 0.0
    %v163 = vmax.f32 %v125, 0.0
    %v164 = vmax.f32 %v154, 0.0
    %v165 = vmax.f32 %v128, 0.0
    %v166 = vmax.f32 %v157, 0.0
    %v167 = vld [vmem:[#allocation5] sm:$0xff]
    %v168 = vld [vmem:[#allocation5 + $0x8] sm:$0xff]
    %v169 = vld [vmem:[#allocation5 + $0x10] sm:$0xff]
    %v170 = vld [vmem:[#allocation5 + $0x18] sm:$0xff]
    %v171 = vld [vmem:[#allocation5 + $0x20] sm:$0xff]
    %v172 = vld [vmem:[#allocation5 + $0x28] sm:$0xff]
    %v173 = vld [vmem:[#allocation5 + $0x30] sm:$0xff]
    %v174 = vld [vmem:[#allocation5 + $0x38] sm:$0xff]
    %v175 = vld [vmem:[#allocation5 + $0x40] sm:$0xff]
    %v176 = vld [vmem:[#allocation5 + $0x48] sm:$0xff]
    %v177 = vld [vmem:[#allocation5 + $0x50] sm:$0xff]
    %v178 = vld [vmem:[#allocation5 + $0x58] sm:$0xff]
    %v179 = vld [vmem:[#allocation5 + $0x60] sm:$0xff]
    %v180 = vld [vmem:[#allocation5 + $0x68] sm:$0xff]
    %v181 = vld [vmem:[#allocation5 + $0x70] sm:$0xff]
    %v182 = vld [vmem:[#allocation5 + $0x78] sm:$0xff]
    %v183 = vld [vmem:[#allocation5 + $0x80] sm:$0xff]
    %v184 = vld [vmem:[#allocation5 + $0x88] sm:$0xff]
    %v185 = vld [vmem:[#allocation5 + $0x90] sm:$0xff]
    %v186 = vld [vmem:[#allocation5 + $0x98] sm:$0xff]
    %v187 = vld [vmem:[#allocation5 + $0xa0] sm:$0xff]
    %v188 = vld [vmem:[#allocation5 + $0xa8] sm:$0xff]
    %v189 = vld [vmem:[#allocation5 + $0xb0] sm:$0xff]
    %v190 = vld [vmem:[#allocation5 + $0xb8] sm:$0xff]
    %v191 = vld [vmem:[#allocation5 + $0xc0] sm:$0xff]
    %v192 = vld [vmem:[#allocation5 + $0xc8] sm:$0xff]
    %v193 = vld [vmem:[#allocation5 + $0xd0] sm:$0xff]
    %v194 = vld [vmem:[#allocation5 + $0xd8] sm:$0xff]
    %v195 = vld [vmem:[#allocation5 + $0xe0] sm:$0xff]
    %v196 = vld [vmem:[#allocation5 + $0xe8] sm:$0xff]
    %v197 = vld [vmem:[#allocation5 + $0xf0] sm:$0xff]
    %v198 = vld [vmem:[#allocation5 + $0xf8] sm:$0xff]
    %v199 = vld [vmem:[%s4] sm:$0x1]
    %v201 = vperm.slane %v199, 0
    %203 = vmatpush.msra.mxu0 %v182
    %204 = vmatpush.msra.mxu0 %v181
    %205 = vmatpush.msra.mxu0 %v180
    %206 = vmatpush.msra.mxu0 %v179
    %207 = vmatpush.msra.mxu0 %v178
    %208 = vmatpush.msra.mxu0 %v177
    %209 = vmatpush.msra.mxu0 %v176
    %210 = vmatpush.msra.mxu0 %v175
    %211 = vmatpush.msra.mxu0 %v174
    %212 = vmatpush.msra.mxu0 %v173
    %213 = vmatpush.msra.mxu0 %v172
    %214 = vmatpush.msra.mxu0 %v171
    %215 = vmatpush.msra.mxu0 %v170
    %216 = vmatpush.msra.mxu0 %v169
    %217 = vmatpush.msra.mxu0 %v168
    %218 = vmatpush.msra.mxu0 %v167
    %219 = vmatmul.f32.gmra.mxu0 %v159
    %v220 = vpop.f32.mrf.mxu0
    %v221 = vadd.f32 %v201, %v220
    %222 = vmatmul.f32.gmra.mxu0 %v161
    %v223 = vpop.f32.mrf.mxu0
    %v224 = vadd.f32 %v201, %v223
    %225 = vmatmul.f32.gmra.mxu0 %v163
    %v226 = vpop.f32.mrf.mxu0
    %v227 = vadd.f32 %v201, %v226
    %228 = vmatmul.f32.gmra.mxu0 %v165
    %v229 = vpop.f32.mrf.mxu0
    %v230 = vadd.f32 %v201, %v229
    %231 = vdwg.mxu0
    %232 = vmatpush.msra.mxu0 %v198
    %233 = vmatpush.msra.mxu0 %v197
    %234 = vmatpush.msra.mxu0 %v196
    %235 = vmatpush.msra.mxu0 %v195
    %236 = vmatpush.msra.mxu0 %v194
    %237 = vmatpush.msra.mxu0 %v193
    %238 = vmatpush.msra.mxu0 %v192
    %239 = vmatpush.msra.mxu0 %v191
    %240 = vmatpush.msra.mxu0 %v190
    %241 = vmatpush.msra.mxu0 %v189
    %242 = vmatpush.msra.mxu0 %v188
    %243 = vmatpush.msra.mxu0 %v187
    %244 = vmatpush.msra.mxu0 %v186
    %245 = vmatpush.msra.mxu0 %v185
    %246 = vmatpush.msra.mxu0 %v184
    %247 = vmatpush.msra.mxu0 %v183
    %248 = vmatmul.f32.gmra.mxu0 %v160
    %v249 = vpop.f32.mrf.mxu0
    %v250 = vadd.f32 %v221, %v249
    %251 = vmatmul.f32.gmra.mxu0 %v162
    %v252 = vpop.f32.mrf.mxu0
    %v253 = vadd.f32 %v224, %v252
    %254 = vmatmul.f32.gmra.mxu0 %v164
    %v255 = vpop.f32.mrf.mxu0
    %v256 = vadd.f32 %v227, %v255
    %257 = vmatmul.f32.gmra.mxu0 %v166
    %v258 = vpop.f32.mrf.mxu0
    %v259 = vadd.f32 %v230, %v258
    %260 = vdwg.mxu0
    %v261 = vadd.f32 %v59, %v250
    %v262 = vadd.f32 %v60, %v253
    %v263 = vadd.f32 %v61, %v256
    %v264 = vadd.f32 %v62, %v259
    %265 = vadd.xlane.f32.xlu0 %v261
    %v266 = vpop.xlane.xlu0 %265
    %267 = vadd.xlane.f32.xlu0 %v262
    %v268 = vpop.xlane.xlu0 %267
    %269 = vadd.xlane.f32.xlu0 %v263
    %v270 = vpop.xlane.xlu0 %269
    %271 = vadd.xlane.f32.xlu0 %v264
    %v272 = vpop.xlane.xlu0 %271
    %v273 = vrcp.pop 128.0
    %v274 = vmul.f32 128.0, %v273
    %v275 = vsub.f32 1.0, %v274
    %v276 = vmul.f32 %v273, %v275
    %v277 = vadd.f32 %v273, %v276
    %vm278 = vweird.f32 %v273
    %v279 = vsel %vm278, %v273, %v277
    %v280 = vmul.f32 %v266, %v279
    %v281 = vmul.f32 %v268, %v279
    %v282 = vmul.f32 %v270, %v279
    %v283 = vmul.f32 %v272, %v279
    %v284 = vsub.f32 %v261, %v280
    %v285 = vsub.f32 %v262, %v281
    %v286 = vsub.f32 %v263, %v282
    %v287 = vsub.f32 %v264, %v283
    %v288 = vmul.f32 %v284, %v284
    %v289 = vmul.f32 %v285, %v285
    %v290 = vmul.f32 %v286, %v286
    %v291 = vmul.f32 %v287, %v287
    %292 = vadd.xlane.f32.xlu0 %v288
    %v293 = vpop.xlane.xlu0 %292
    %294 = vadd.xlane.f32.xlu0 %v289
    %v295 = vpop.xlane.xlu0 %294
    %296 = vadd.xlane.f32.xlu0 %v290
    %v297 = vpop.xlane.xlu0 %296
    %298 = vadd.xlane.f32.xlu0 %v291
    %v299 = vpop.xlane.xlu0 %298
    %v300 = vmul.f32 %v293, %v279
    %v301 = vmul.f32 %v295, %v279
    %v302 = vmul.f32 %v297, %v279
    %v303 = vmul.f32 %v299, %v279
    %v304 = vadd.f32 %v300, 1e-05
    %v305 = vadd.f32 %v301, 1e-05
    %v306 = vadd.f32 %v302, 1e-05
    %v307 = vadd.f32 %v303, 1e-05
    %v308 = vrsqrt.pop %v304
    %v309 = vmul.f32 %v308, %v304
    %v310 = vmul.f32 %v309, %v308
    %v311 = vmul.f32 0.5, %v310
    %v312 = vsub.f32 1.5, %v311
    %v313 = vmul.f32 %v308, %v312
    %vm314 = vweird.f32 %v304
    %vm315 = vweird.f32 %v308
    %vm316 = vmor %vm314, %vm315
    %v317 = vsel %vm316, %v308, %v313
    %v318 = vrsqrt.pop %v305
    %v319 = vmul.f32 %v318, %v305
    %v320 = vmul.f32 %v319, %v318
    %v321 = vmul.f32 0.5, %v320
    %v322 = vsub.f32 1.5, %v321
    %v323 = vmul.f32 %v318, %v322
    %vm324 = vweird.f32 %v305
    %vm325 = vweird.f32 %v318
    %vm326 = vmor %vm324, %vm325
    %v327 = vsel %vm326, %v318, %v323
    %v328 = vrsqrt.pop %v306
    %v329 = vmul.f32 %v328, %v306
    %v330 = vmul.f32 %v329, %v328
    %v331 = vmul.f32 0.5, %v330
    %v332 = vsub.f32 1.5, %v331
    %v333 = vmul.f32 %v328, %v332
    %vm334 = vweird.f32 %v306
    %vm335 = vweird.f32 %v328
    %vm336 = vmor %vm334, %vm335
    %v337 = vsel %vm336, %v328, %v333
    %v338 = vrsqrt.pop %v307
    %v339 = vmul.f32 %v338, %v307
    %v340 = vmul.f32 %v339, %v338
    %v341 = vmul.f32 0.5, %v340
    %v342 = vsub.f32 1.5, %v341
    %v343 = vmul.f32 %v338, %v342
    %vm344 = vweird.f32 %v307
    %vm345 = vweird.f32 %v338
    %vm346 = vmor %vm344, %vm345
    %v347 = vsel %vm346, %v338, %v343
    %v348 = vmul.f32 %v284, %v317
    %v349 = vmul.f32 %v285, %v327
    %v350 = vmul.f32 %v286, %v337
    %v351 = vmul.f32 %v287, %v347
    %v352 = vld [vmem:[%s5] sm:$0x1]
    %v354 = vperm.slane %v352, 0
    %v356 = vmul.f32 %v348, %v354
    %v357 = vmul.f32 %v349, %v354
    %v358 = vmul.f32 %v350, %v354
    %v359 = vmul.f32 %v351, %v354
    %v360 = vld [vmem:[%s6] sm:$0x1]
    %v362 = vperm.slane %v360, 0
    %v364 = vadd.f32 %v356, %v362
    %v365 = vadd.f32 %v357, %v362
    %v366 = vadd.f32 %v358, %v362
    %v367 = vadd.f32 %v359, %v362
    %368 = vst [vmem:[#allocation7] sm:$0xff] %v364
    %369 = vst [vmem:[#allocation7 + $0x8] sm:$0xff] %v365
    %370 = vst [vmem:[#allocation7 + $0x10] sm:$0xff] %v366
    %371 = vst [vmem:[#allocation7 + $0x18] sm:$0xff] %v367
    // Predicated region
    $region38: #{decoder_layer.11} parent=1 // pred_check
      _
    $region39: #{decoder_layer.11} parent=1 // pred_check_branch
      %373 = sbr.rel (0) target = $region41
    $region40: #{decoder_layer.11} parent=1 // pred_region
      %375 = vsyncadd [#allocation4], 0
      %s376 = sshll.u32 [#allocation7], 4
      %s377 = int_to_ptr.vmem [resolvable:$true] %s376
      %s378 = sshll.u32 %s7, 4
      %s379 = int_to_ptr.hbm [resolvable:$true] %s378
      %384 = dma.vmem_to_hbm [thread:$0]  %s377, 512, %s379, [#allocation4], 128, 128, 8
    $region41: #{decoder_layer.11} parent=1 // pred_fallthru
      _
    // Predicated region
    $region42: #{decoder_layer.11} parent=1 // pred_check
      _
    $region43: #{decoder_layer.11} parent=1 // pred_check_branch
      %386 = sbr.rel (0) target = $region45
    $region44: #{decoder_layer.11} parent=1 // pred_region
      %388 = dma.done [#allocation4], 512
    $region45: #{decoder_layer.11} parent=1 // pred_fallthru
      _
    %389 = vsyncpa [#allocation3], 1
    %390 = vsyncpa [#allocation6], 1
    %391 = vsyncpa [#allocation4], 1

// kernel: decoder_layer.10
$region0: #{decoder_layer.10}
  #allocation0 [shape = 'u32[]', space=smem, size = 0x4, offset = 0x4, fixed_abs, tag = 'smem constant byte address 0x4 - core index']
  #allocation1 [shape = 'u32[72,128]{1,0:T(1,128)}', space=vmem, size = 0x9000, scoped, tag = 'internal scratch']
  %s0 = inlined_call_operand.vmem [shape: f32[2,16,128], index: 0, kind: input, shape index: {}]
  %s1 = inlined_call_operand.vmem [shape: f32[2,16,256], index: 1, kind: input, shape index: {}]
  %s2 = inlined_call_operand.hbm [shape: f32[2,1,16,16], index: 2, kind: input, shape index: {}]
  %s3 = inlined_call_operand.vmem [shape: f32[2,16,128], index: 3, kind: input, shape index: {}]
  %s4 = inlined_call_operand.hbm [shape: f32[128,128], index: 4, kind: input, shape index: {}]
  %s5 = inlined_call_operand.vmem [shape: f32[1,128], index: 5, kind: input, shape index: {}]
  %s6 = inlined_call_operand.vmem [shape: f32[1,128], index: 6, kind: input, shape index: {}]
  %s7 = inlined_call_operand.vmem [shape: f32[1,128], index: 7, kind: input, shape index: {}]
  %s8 = inlined_call_operand.vmem [shape: f32[2,16,128], index: 8, kind: output, shape index: {}]
  %s9 = sld [smem:[#allocation0]]
  $region73: #{decoder_layer.10} parent=0
    _
  %s11 = ssub.s32 1, %s9
  %s12 = scalar_select 0, %s11, %s9
  $region1: #{decoder_layer.10} parent=0
    #allocation2 [shape = 'u8[16384]{0}', space=vmem, size = 0x4000, scoped, tag = 'input window, operand 2']
    #allocation3 [shape = 's32[2]{0}', space=sflag, size = 0x8, scoped, tag = 'scoped memory for decoder_layer.10']
    #allocation4 [shape = 'u8[65536]{0}', space=vmem, size = 0x10000, scoped, tag = 'input window, operand 4, single buffered']
    #allocation5 [shape = 's32[1]{0}', space=sflag, size = 0x4, scoped, tag = 'scoped memory for decoder_layer.10']
    %13 = vsyncpa [#allocation3], 0
    %s14 = scalar_lea.sflag [#allocation3], 1
    %15 = vsyncpa %s14, 0
    %16 = vsyncpa [#allocation5], 0
    loop: start=0, step=1, limit=4
    $region2: #{decoder_layer.10} parent=1 // loop_pre_header
      _
    $region3: #{decoder_layer.10} parent=1 // loop_header
      %s18 = sphi 0, %s22
      %p19 = scmp.ge.s32.totalorder %s18, 4
      %s28 = sphi 0, %s30
      %s31 = sphi 0, %s28
      %s32 = sphi 0, %s31
      %s48 = sphi 0, %s32
      %s54 = sphi 0, %s56
      %s57 = sphi 0, %s54
      %s58 = sphi 0, %s57
      %s74 = sphi 0, %s58
      %s80 = sphi 0, %s82
      %s83 = sphi 0, %s80
      %s84 = sphi 0, %s83
      %s100 = sphi 0, %s84
      %s106 = sphi 0, %s108
      %s109 = sphi 0, %s106
      %s110 = sphi 0, %s109
      %s126 = sphi 0, %s110
      %s130 = sphi 0, %s130
      %s132 = sphi 0, %s130
      %s133 = sphi 0, %s132
      %s147 = sphi 0, %s133
      %s151 = sphi 0, %s151
      %s153 = sphi 0, %s151
      %s154 = sphi 0, %s153
      %s168 = sphi 0, %s154
      %s172 = sphi 0, %s172
      %s174 = sphi 0, %s172
      %s175 = sphi 0, %s174
      %s189 = sphi 0, %s175
      %s193 = sphi 0, %s193
      %s195 = sphi 0, %s193
      %s196 = sphi 0, %s195
      %s210 = sphi 0, %s196
      %s216 = sphi 0, %s218
      %s219 = sphi 0, %s216
      %s220 = sphi 0, %s219
      %s236 = sphi 0, %s220
    $region4: #{decoder_layer.10} parent=1 // loop_header_branch
      %21 = sbr.rel (%p19) target = $region8
    $region5: #{decoder_layer.10} parent=1 // loop_body
      %s23 = ssub.s32 %s18, 1
      %s24 = ssub.s32 %s18, 2
      %s25 = sadd.s32 %s18, 1
      %s26 = ssub.s32 %s18, %s25
      %p27 = scmp.eq.s32.totalorder %s26, 0
      %s29 = sadd.s32 %s28, 1
      %s30 = scalar_select %p27, %s28, %s29
      %p33 = pneg %p27
      %p34 = scmp.eq.s32.totalorder %s18, 1
      %p35 = por %p33, %p34
      %p36 = scmp.ne.s32.totalorder %s28, %s31
      %p37 = scmp.eq.s32.totalorder %s18, 0
      %p38 = por %p36, %p37
      %p39 = scmp.ne.s32.totalorder %s28, %s31
      %p40 = scmp.eq.s32.totalorder %s23, 1
      %p41 = por %p39, %p40
      %p42 = scmp.ne.s32.totalorder %s31, %s32
      %p43 = scmp.eq.s32.totalorder %s23, 0
      %p44 = por %p42, %p43
      %p45 = scmp.ne.s32.totalorder %s31, %s32
      %p46 = scmp.eq.s32.totalorder %s24, 1
      %p47 = por %p45, %p46
      %p49 = scmp.ne.s32.totalorder %s32, %s48
      %p50 = scmp.eq.s32.totalorder %s24, 0
      %p51 = por %p49, %p50
      %s52 = ssub.s32 %s18, %s25
      %p53 = scmp.eq.s32.totalorder %s52, 0
      %s55 = sadd.s32 %s54, 1
      %s56 = scalar_select %p53, %s54, %s55
      %p59 = pneg %p53
      %p60 = scmp.eq.s32.totalorder %s18, 1
      %p61 = por %p59, %p60
      %p62 = scmp.ne.s32.totalorder %s54, %s57
      %p63 = scmp.eq.s32.totalorder %s18, 0
      %p64 = por %p62, %p63
      %p65 = scmp.ne.s32.totalorder %s54, %s57
      %p66 = scmp.eq.s32.totalorder %s23, 1
      %p67 = por %p65, %p66
      %p68 = scmp.ne.s32.totalorder %s57, %s58
      %p69 = scmp.eq.s32.totalorder %s23, 0
      %p70 = por %p68, %p69
      %p71 = scmp.ne.s32.totalorder %s57, %s58
      %p72 = scmp.eq.s32.totalorder %s24, 1
      %p73 = por %p71, %p72
      %p75 = scmp.ne.s32.totalorder %s58, %s74
      %p76 = scmp.eq.s32.totalorder %s24, 0
      %p77 = por %p75, %p76
      %s78 = ssub.s32 %s18, %s25
      %p79 = scmp.eq.s32.totalorder %s78, 0
      %s81 = sadd.s32 %s80, 1
      %s82 = scalar_select %p79, %s80, %s81
      %p85 = pneg %p79
      %p86 = scmp.eq.s32.totalorder %s18, 1
      %p87 = por %p85, %p86
      %p88 = scmp.ne.s32.totalorder %s80, %s83
      %p89 = scmp.eq.s32.totalorder %s18, 0
      %p90 = por %p88, %p89
      %p91 = scmp.ne.s32.totalorder %s80, %s83
      %p92 = scmp.eq.s32.totalorder %s23, 1
      %p93 = por %p91, %p92
      %p94 = scmp.ne.s32.totalorder %s83, %s84
      %p95 = scmp.eq.s32.totalorder %s23, 0
      %p96 = por %p94, %p95
      %p97 = scmp.ne.s32.totalorder %s83, %s84
      %p98 = scmp.eq.s32.totalorder %s24, 1
      %p99 = por %p97, %p98
      %p101 = scmp.ne.s32.totalorder %s84, %s100
      %p102 = scmp.eq.s32.totalorder %s24, 0
      %p103 = por %p101, %p102
      %s104 = ssub.s32 %s18, %s25
      %p105 = scmp.eq.s32.totalorder %s104, 0
      %s107 = sadd.s32 %s106, 1
      %s108 = scalar_select %p105, %s106, %s107
      %p111 = pneg %p105
      %p112 = scmp.eq.s32.totalorder %s18, 1
      %p113 = por %p111, %p112
      %p114 = scmp.ne.s32.totalorder %s106, %s109
      %p115 = scmp.eq.s32.totalorder %s18, 0
      %p116 = por %p114, %p115
      %p117 = scmp.ne.s32.totalorder %s106, %s109
      %p118 = scmp.eq.s32.totalorder %s23, 1
      %p119 = por %p117, %p118
      %p120 = scmp.ne.s32.totalorder %s109, %s110
      %p121 = scmp.eq.s32.totalorder %s23, 0
      %p122 = por %p120, %p121
      %p123 = scmp.ne.s32.totalorder %s109, %s110
      %p124 = scmp.eq.s32.totalorder %s24, 1
      %p125 = por %p123, %p124
      %p127 = scmp.ne.s32.totalorder %s110, %s126
      %p128 = scmp.eq.s32.totalorder %s24, 0
      %p129 = por %p127, %p128
      %s131 = sadd.s32 %s130, 1
      %p134 = scmp.eq.s32.totalorder %s18, 1
      %p135 = scmp.ne.s32.totalorder %s130, %s132
      %p136 = scmp.eq.s32.totalorder %s18, 0
      %p137 = por %p135, %p136
      %p138 = scmp.ne.s32.totalorder %s130, %s132
      %p139 = scmp.eq.s32.totalorder %s23, 1
      %p140 = por %p138, %p139
      %p141 = scmp.ne.s32.totalorder %s132, %s133
      %p142 = scmp.eq.s32.totalorder %s23, 0
      %p143 = por %p141, %p142
      %p144 = scmp.ne.s32.totalorder %s132, %s133
      %p145 = scmp.eq.s32.totalorder %s24, 1
      %p146 = por %p144, %p145
      %p148 = scmp.ne.s32.totalorder %s133, %s147
      %p149 = scmp.eq.s32.totalorder %s24, 0
      %p150 = por %p148, %p149
      %s152 = sadd.s32 %s151, 1
      %p155 = scmp.eq.s32.totalorder %s18, 1
      %p156 = scmp.ne.s32.totalorder %s151, %s153
      %p157 = scmp.eq.s32.totalorder %s18, 0
      %p158 = por %p156, %p157
      %p159 = scmp.ne.s32.totalorder %s151, %s153
      %p160 = scmp.eq.s32.totalorder %s23, 1
      %p161 = por %p159, %p160
      %p162 = scmp.ne.s32.totalorder %s153, %s154
      %p163 = scmp.eq.s32.totalorder %s23, 0
      %p164 = por %p162, %p163
      %p165 = scmp.ne.s32.totalorder %s153, %s154
      %p166 = scmp.eq.s32.totalorder %s24, 1
      %p167 = por %p165, %p166
      %p169 = scmp.ne.s32.totalorder %s154, %s168
      %p170 = scmp.eq.s32.totalorder %s24, 0
      %p171 = por %p169, %p170
      %s173 = sadd.s32 %s172, 1
      %p176 = scmp.eq.s32.totalorder %s18, 1
      %p177 = scmp.ne.s32.totalorder %s172, %s174
      %p178 = scmp.eq.s32.totalorder %s18, 0
      %p179 = por %p177, %p178
      %p180 = scmp.ne.s32.totalorder %s172, %s174
      %p181 = scmp.eq.s32.totalorder %s23, 1
      %p182 = por %p180, %p181
      %p183 = scmp.ne.s32.totalorder %s174, %s175
      %p184 = scmp.eq.s32.totalorder %s23, 0
      %p185 = por %p183, %p184
      %p186 = scmp.ne.s32.totalorder %s174, %s175
      %p187 = scmp.eq.s32.totalorder %s24, 1
      %p188 = por %p186, %p187
      %p190 = scmp.ne.s32.totalorder %s175, %s189
      %p191 = scmp.eq.s32.totalorder %s24, 0
      %p192 = por %p190, %p191
      %s194 = sadd.s32 %s193, 1
      %p197 = scmp.eq.s32.totalorder %s18, 1
      %p198 = scmp.ne.s32.totalorder %s193, %s195
      %p199 = scmp.eq.s32.totalorder %s18, 0
      %p200 = por %p198, %p199
      %p201 = scmp.ne.s32.totalorder %s193, %s195
      %p202 = scmp.eq.s32.totalorder %s23, 1
      %p203 = por %p201, %p202
      %p204 = scmp.ne.s32.totalorder %s195, %s196
      %p205 = scmp.eq.s32.totalorder %s23, 0
      %p206 = por %p204, %p205
      %p207 = scmp.ne.s32.totalorder %s195, %s196
      %p208 = scmp.eq.s32.totalorder %s24, 1
      %p209 = por %p207, %p208
      %p211 = scmp.ne.s32.totalorder %s196, %s210
      %p212 = scmp.eq.s32.totalorder %s24, 0
      %p213 = por %p211, %p212
      %s214 = ssub.s32 %s18, %s25
      %p215 = scmp.eq.s32.totalorder %s214, 0
      %s217 = sadd.s32 %s216, 1
      %s218 = scalar_select %p215, %s216, %s217
      %p221 = pneg %p215
      %p222 = scmp.eq.s32.totalorder %s18, 1
      %p223 = por %p221, %p222
      %p224 = scmp.ne.s32.totalorder %s216, %s219
      %p225 = scmp.eq.s32.totalorder %s18, 0
      %p226 = por %p224, %p225
      %p227 = scmp.ne.s32.totalorder %s216, %s219
      %p228 = scmp.eq.s32.totalorder %s23, 1
      %p229 = por %p227, %p228
      %p230 = scmp.ne.s32.totalorder %s219, %s220
      %p231 = scmp.eq.s32.totalorder %s23, 0
      %p232 = por %p230, %p231
      %p233 = scmp.ne.s32.totalorder %s219, %s220
      %p234 = scmp.eq.s32.totalorder %s24, 1
      %p235 = por %p233, %p234
      %p237 = scmp.ne.s32.totalorder %s220, %s236
      %p238 = scmp.eq.s32.totalorder %s24, 0
      %p239 = por %p237, %p238
      %p240 = scmp.le.s32.totalorder 1, %s18
      %p241 = scmp.lt.s32.totalorder %s18, 3
      %p242 = pnand %p240, %p241
      %p243 = pneg %p242
      // Predicated region
      $region9: #{decoder_layer.10} parent=5 // pred_check
        _
      $region10: #{decoder_layer.10} parent=5 // pred_check_branch
        %245 = sbr.rel (%p242) target = $region12
      $region11: #{decoder_layer.10} parent=5 // pred_region
        %s246 = ssub.s32 %s18, 1
        // Predicated region
        $region13: #{decoder_layer.10} parent=11 // pred_check
          %p247 = pneg %p143
        $region14: #{decoder_layer.10} parent=11 // pred_check_branch
          %249 = sbr.rel (%p247) target = $region16
        $region15: #{decoder_layer.10} parent=11 // pred_region
          %251 = vsyncadd [#allocation5], 0
          %s252 = sshll.u32 %s4, 4
          %s253 = int_to_ptr.hbm [resolvable:$true] %s252
          %s254 = sshll.u32 [#allocation4], 4
          %s255 = int_to_ptr.vmem [resolvable:$true] %s254
          %260 = dma.hbm_to_vmem [thread:$0]  %s253, 2048, %s255, [#allocation5], 128, 128, 8
        $region16: #{decoder_layer.10} parent=11 // pred_fallthru
          _
        // Predicated region
        $region17: #{decoder_layer.10} parent=11 // pred_check
          %p261 = pneg %p164
        $region18: #{decoder_layer.10} parent=11 // pred_check_branch
          %263 = sbr.rel (%p261) target = $region20
        $region19: #{decoder_layer.10} parent=11 // pred_region
          _
        $region20: #{decoder_layer.10} parent=11 // pred_fallthru
          _
        // Predicated region
        $region21: #{decoder_layer.10} parent=11 // pred_check
          %p264 = pneg %p185
        $region22: #{decoder_layer.10} parent=11 // pred_check_branch
          %266 = sbr.rel (%p264) target = $region24
        $region23: #{decoder_layer.10} parent=11 // pred_region
          _
        $region24: #{decoder_layer.10} parent=11 // pred_fallthru
          _
        // Predicated region
        $region25: #{decoder_layer.10} parent=11 // pred_check
          %p267 = pneg %p206
        $region26: #{decoder_layer.10} parent=11 // pred_check_branch
          %269 = sbr.rel (%p267) target = $region28
        $region27: #{decoder_layer.10} parent=11 // pred_region
          _
        $region28: #{decoder_layer.10} parent=11 // pred_fallthru
          _
      $region12: #{decoder_layer.10} parent=5 // pred_fallthru
        _
      %p270 = scmp.lt.s32.totalorder %s18, 2
      // Predicated region
      $region29: #{decoder_layer.10} parent=5 // pred_check
        %p271 = pneg %p270
      $region30: #{decoder_layer.10} parent=5 // pred_check_branch
        %273 = sbr.rel (%p271) target = $region32
      $region31: #{decoder_layer.10} parent=5 // pred_region
        // Predicated region
        $region33: #{decoder_layer.10} parent=31 // pred_check
          %p274 = pneg %p38
        $region34: #{decoder_layer.10} parent=31 // pred_check_branch
          %276 = sbr.rel (%p274) target = $region36
        $region35: #{decoder_layer.10} parent=31 // pred_region
          %p277 = scmp.lt.s32.totalorder %s18, 1
          %s278 = scalar_select %p277, %s18, 1
          %s279 = smul.addr %s278, 2
          %s280 = smul.addr %s279, 8
          %s281 = scalar_lea.vmem %s0, %s280
        $region36: #{decoder_layer.10} parent=31 // pred_fallthru
          _
        // Predicated region
        $region37: #{decoder_layer.10} parent=31 // pred_check
          %p282 = pneg %p64
        $region38: #{decoder_layer.10} parent=31 // pred_check_branch
          %284 = sbr.rel (%p282) target = $region40
        $region39: #{decoder_layer.10} parent=31 // pred_region
          %p285 = scmp.lt.s32.totalorder %s18, 1
          %s286 = scalar_select %p285, %s18, 1
          %s287 = smul.addr %s286, 4
          %s288 = smul.addr %s287, 8
          %s289 = scalar_lea.vmem %s1, %s288
        $region40: #{decoder_layer.10} parent=31 // pred_fallthru
          _
        // Predicated region
        $region41: #{decoder_layer.10} parent=31 // pred_check
          %p290 = pneg %p90
        $region42: #{decoder_layer.10} parent=31 // pred_check_branch
          %292 = sbr.rel (%p290) target = $region44
        $region43: #{decoder_layer.10} parent=31 // pred_region
          %s293 = sand.u32 %s80, 1
          %s294 = scalar_lea.sflag [#allocation3], %s293
          %s295 = sand.u32 %s80, 1
          %s296 = smul.addr %s295, 16
          %s297 = scalar_lea.vmem [#allocation2], %s296
          %299 = vsyncadd %s294, 0
          %s300 = smul.addr %s18, 2
          %s301 = smul.addr %s300, 8
          %s302 = scalar_lea.hbm %s2, %s301
          %s303 = sshll.u32 %s302, 4
          %s304 = int_to_ptr.hbm [resolvable:$true] %s303
          %s305 = sshll.u32 %s297, 4
          %s306 = int_to_ptr.vmem [resolvable:$true] %s305
          %311 = dma.hbm_to_vmem [thread:$0]  %s304, 256, %s306, %s294, 128, 128, 8
        $region44: #{decoder_layer.10} parent=31 // pred_fallthru
          _
        // Predicated region
        $region45: #{decoder_layer.10} parent=31 // pred_check
          %p312 = pneg %p116
        $region46: #{decoder_layer.10} parent=31 // pred_check_branch
          %314 = sbr.rel (%p312) target = $region48
        $region47: #{decoder_layer.10} parent=31 // pred_region
          %p315 = scmp.lt.s32.totalorder %s18, 1
          %s316 = scalar_select %p315, %s18, 1
          %s317 = smul.addr %s316, 2
          %s318 = smul.addr %s317, 8
          %s319 = scalar_lea.vmem %s3, %s318
        $region48: #{decoder_layer.10} parent=31 // pred_fallthru
          _
      $region32: #{decoder_layer.10} parent=5 // pred_fallthru
        _
      %p320 = scmp.le.s32.totalorder 1, %s18
      %p321 = scmp.lt.s32.totalorder %s18, 3
      %p322 = pnand %p320, %p321
      %p323 = pneg %p322
      // Predicated region
      $region49: #{decoder_layer.10} parent=5 // pred_check
        _
      $region50: #{decoder_layer.10} parent=5 // pred_check_branch
        %325 = sbr.rel (%p322) target = $region52
      $region51: #{decoder_layer.10} parent=5 // pred_region
        %s326 = ssub.s32 %s18, 1
        %s327 = sand.u32 %s83, 1
        %s328 = scalar_lea.sflag [#allocation3], %s327
        %s329 = sand.u32 %s83, 1
        %s330 = smul.addr %s329, 16
        %s331 = scalar_lea.vmem [#allocation2], %s330
        // Predicated region
        $region53: #{decoder_layer.10} parent=51 // pred_check
          %p332 = pneg %p96
        $region54: #{decoder_layer.10} parent=51 // pred_check_branch
          %334 = sbr.rel (%p332) target = $region56
        $region55: #{decoder_layer.10} parent=51 // pred_region
          %336 = dma.done %s328, 256
        $region56: #{decoder_layer.10} parent=51 // pred_fallthru
          _
        // Predicated region
        $region57: #{decoder_layer.10} parent=51 // pred_check
          %p337 = pneg %p143
        $region58: #{decoder_layer.10} parent=51 // pred_check_branch
          %339 = sbr.rel (%p337) target = $region60
        $region59: #{decoder_layer.10} parent=51 // pred_region
          %341 = dma.done [#allocation5], 2048
        $region60: #{decoder_layer.10} parent=51 // pred_fallthru
          _
        %p342 = scmp.lt.s32.totalorder %s23, 1
        %s343 = scalar_select %p342, %s23, 1
        %s344 = smul.addr %s343, 2
        %s345 = smul.addr %s344, 8
        %s346 = scalar_lea.vmem %s0, %s345
        %p347 = pneg %p44
        %p348 = pneg %p41
        %p349 = scmp.lt.s32.totalorder %s23, 1
        %s350 = scalar_select %p349, %s23, 1
        %s351 = smul.addr %s350, 4
        %s352 = smul.addr %s351, 8
        %s353 = scalar_lea.vmem %s1, %s352
        %p354 = pneg %p70
        %p355 = pneg %p67
        %s356 = sand.u32 %s83, 1
        %s357 = scalar_lea.sflag [#allocation3], %s356
        %s358 = sand.u32 %s83, 1
        %s359 = smul.addr %s358, 16
        %s360 = scalar_lea.vmem [#allocation2], %s359
        %p361 = pneg %p96
        %p362 = pneg %p93
        %p363 = scmp.lt.s32.totalorder %s23, 1
        %s364 = scalar_select %p363, %s23, 1
        %s365 = smul.addr %s364, 2
        %s366 = smul.addr %s365, 8
        %s367 = scalar_lea.vmem %s3, %s366
        %p368 = pneg %p122
        %p369 = pneg %p119
        %p370 = pneg %p143
        %p371 = pneg %p140
        %p372 = pneg %p164
        %p373 = pneg %p161
        %p374 = pneg %p185
        %p375 = pneg %p182
        %p376 = pneg %p206
        %p377 = pneg %p203
        %p378 = pneg %p232
        %p379 = pneg %p229
        %p380 = scmp.lt.s32.totalorder %s23, 1
        %s381 = scalar_select %p380, %s23, 1
        %s382 = smul.addr %s381, 2
        %s383 = smul.addr %s382, 8
        %s384 = scalar_lea.vmem %s8, %s383
        %p385 = scmp.lt.s32.totalorder %s23, 1
        %s386 = scalar_select %p385, %s23, 1
        %s387 = smul.addr %s386, 2
        %s388 = smul.addr %s387, 8
        %s389 = scalar_lea.vmem %s0, %s388
        %p390 = scmp.lt.s32.totalorder %s23, 1
        %s391 = scalar_select %p390, %s23, 1
        %s392 = smul.addr %s391, 4
        %s393 = smul.addr %s392, 8
        %s394 = scalar_lea.vmem %s1, %s393
        %p395 = scmp.lt.s32.totalorder %s23, 1
        %s396 = scalar_select %p395, %s23, 1
        %s397 = smul.addr %s396, 2
        %s398 = smul.addr %s397, 8
        %s399 = scalar_lea.vmem %s3, %s398
        %p400 = scmp.lt.s32.totalorder %s23, 1
        %s401 = scalar_select %p400, %s23, 1
        %s402 = smul.addr %s401, 2
        %s403 = smul.addr %s402, 8
        %s404 = scalar_lea.vmem %s8, %s403
        %v405 = vld [vmem:[%s389] sm:$0xff]
        %v406 = vld [vmem:[%s389 + $0x8] sm:$0xff]
        %v407 = vld [vmem:[%s394] sm:$0xff]
        %v408 = vld [vmem:[%s394 + $0x10] sm:$0xff]
        %v409 = vld [vmem:[%s394 + $0x8] sm:$0xff]
        %v410 = vld [vmem:[%s394 + $0x18] sm:$0xff]
        %v411 = vld [vmem:[%s331] sm:$0xff]
        %v412 = vld [vmem:[%s331 + $0x8] sm:$0xff]
        %vm413 = vcmp.ne.f32.partialorder %v411, 0.0
        %vm414 = vcmp.ne.f32.partialorder %v412, 0.0
        %v415 = vld [vmem:[%s399] sm:$0xff]
        %v416 = vld [vmem:[%s399 + $0x8] sm:$0xff]
        %v417 = vld [vmem:[%s5] sm:$0x1]
        %v418 = vld [vmem:[%s6] sm:$0x1]
        %v419 = vld [vmem:[%s7] sm:$0x1]
        %v420 = vmul.f32 %v405, 0.25
        %v421 = vmul.f32 %v406, 0.25
        %vm422 = vcmask 130048
        %v424 = vsel %vm422, %v420, 0
        %v427 = vsel %vm422, %v421, 0
        %v430 = vsel %vm422, %v407, 0
        %v433 = vsel %vm422, %v408, 0
        %435 = vmatpush.xpose.msra.mxu0 0.0
        %436 = vmatpush.xpose.msra.mxu0 0.0
        %437 = vmatpush.xpose.msra.mxu0 0.0
        %438 = vmatpush.xpose.msra.mxu0 0.0
        %439 = vmatpush.xpose.msra.mxu0 0.0
        %440 = vmatpush.xpose.msra.mxu0 0.0
        %441 = vmatpush.xpose.msra.mxu0 0.0
        %442 = vmatpush.xpose.msra.mxu0 0.0
        %443 = vmatpush.xpose.msra.mxu0 0.0
        %444 = vmatpush.xpose.msra.mxu0 0.0
        %445 = vmatpush.xpose.msra.mxu0 0.0
        %446 = vmatpush.xpose.msra.mxu0 0.0
        %447 = vmatpush.xpose.msra.mxu0 0.0
        %448 = vmatpush.xpose.msra.mxu0 0.0
        %449 = vmatpush.xpose.msra.mxu0 %v433
        %450 = vmatpush.xpose.msra.mxu0 %v430
        %451 = vmatmul.f32.gmra.mxu0 %v424
        %v452 = vpop.f32.mrf.mxu0
        %v453 = vadd.f32 0.0, %v452
        %454 = vmatmul.f32.gmra.mxu0 %v427
        %v455 = vpop.f32.mrf.mxu0
        %v456 = vadd.f32 0.0, %v455
        %457 = vdwg.mxu0
        %v458 = vsel %vm413, %v453, -1e+09
        %v459 = vsel %vm414, %v456, -1e+09
        %v460 = vsel %vm422, %v458, -inf
        %461 = vmax.xlane.f32.xlu0 %v460
        %v462 = vpop.xlane.xlu0 %461
        %v463 = vsel %vm422, %v459, -inf
        %464 = vmax.xlane.f32.xlu0 %v463
        %v465 = vpop.xlane.xlu0 %464
        %v466 = vsub.f32 %v458, %v462
        %v467 = vsub.f32 %v459, %v465
        %v468 = vmul.f32 %v466, 1.442695
        %v469 = vpow.pop %v468
        %v470 = vmul.f32 %v467, 1.442695
        %v471 = vpow.pop %v470
        %v472 = vsel %vm422, %v469, 0.0
        %473 = vadd.xlane.f32.xlu0 %v472
        %v474 = vpop.xlane.xlu0 %473
        %v475 = vsel %vm422, %v471, 0.0
        %476 = vadd.xlane.f32.xlu0 %v475
        %v477 = vpop.xlane.xlu0 %476
        %v478 = vrcp.pop %v474
        %v479 = vrcp.pop %v477
        %v480 = vmul.f32 %v469, %v478
        %v481 = vmul.f32 %v471, %v479
        %v483 = vsel %vm422, %v480, 0
        %v486 = vsel %vm422, %v481, 0
        %488 = vmatpush.msra.mxu0 0.0
        %489 = vmatpush.msra.mxu0 0.0
        %490 = vmatpush.msra.mxu0 0.0
        %491 = vmatpush.msra.mxu0 0.0
        %492 = vmatpush.msra.mxu0 0.0
        %493 = vmatpush.msra.mxu0 0.0
        %494 = vmatpush.msra.mxu0 0.0
        %495 = vmatpush.msra.mxu0 0.0
        %496 = vmatpush.msra.mxu0 0.0
        %497 = vmatpush.msra.mxu0 0.0
        %498 = vmatpush.msra.mxu0 0.0
        %499 = vmatpush.msra.mxu0 0.0
        %500 = vmatpush.msra.mxu0 0.0
        %501 = vmatpush.msra.mxu0 0.0
        %502 = vmatpush.msra.mxu0 %v410
        %503 = vmatpush.msra.mxu0 %v409
        %504 = vmatmul.f32.gmra.mxu0 %v483
        %v505 = vpop.f32.mrf.mxu0
        %v506 = vadd.f32 0.0, %v505
        %507 = vmatmul.f32.gmra.mxu0 %v486
        %v508 = vpop.f32.mrf.mxu0
        %v509 = vadd.f32 0.0, %v508
        %510 = vdwg.mxu0
        %v511 = vld [vmem:[#allocation4] sm:$0xff]
        %v512 = vld [vmem:[#allocation4 + $0x8] sm:$0xff]
        %513 = vrot.lane.b32.xlu0 %v420, 112
        %v514 = vpop.permute.xlu0 %513
        %515 = vrot.lane.b32.xlu0 %v421, 112
        %v516 = vpop.permute.xlu0 %515
        %517 = vrot.lane.b32.xlu0 %v407, 112
        %v518 = vpop.permute.xlu0 %517
        %519 = vrot.lane.b32.xlu0 %v408, 112
        %v520 = vpop.permute.xlu0 %519
        %v521 = vsel %vm422, %v514, 0
        %v523 = vsel %vm422, %v516, 0
        %v525 = vsel %vm422, %v518, 0
        %v527 = vsel %vm422, %v520, 0
        %529 = vmatpush.xpose.msra.mxu0 0.0
        %530 = vmatpush.xpose.msra.mxu0 0.0
        %531 = vmatpush.xpose.msra.mxu0 0.0
        %532 = vmatpush.xpose.msra.mxu0 0.0
        %533 = vmatpush.xpose.msra.mxu0 0.0
        %534 = vmatpush.xpose.msra.mxu0 0.0
        %535 = vmatpush.xpose.msra.mxu0 0.0
        %536 = vmatpush.xpose.msra.mxu0 0.0
        %537 = vmatpush.xpose.msra.mxu0 0.0
        %538 = vmatpush.xpose.msra.mxu0 0.0
        %539 = vmatpush.xpose.msra.mxu0 0.0
        %540 = vmatpush.xpose.msra.mxu0 0.0
        %541 = vmatpush.xpose.msra.mxu0 0.0
        %542 = vmatpush.xpose.msra.mxu0 0.0
        %543 = vmatpush.xpose.msra.mxu0 %v527
        %544 = vmatpush.xpose.msra.mxu0 %v525
        %545 = vmatmul.f32.gmra.mxu0 %v521
        %v546 = vpop.f32.mrf.mxu0
        %v547 = vadd.f32 0.0, %v546
        %548 = vmatmul.f32.gmra.mxu0 %v523
        %v549 = vpop.f32.mrf.mxu0
        %v550 = vadd.f32 0.0, %v549
        %551 = vdwg.mxu0
        %v552 = vsel %vm413, %v547, -1e+09
        %v553 = vsel %vm414, %v550, -1e+09
        %v554 = vsel %vm422, %v552, -inf
        %555 = vmax.xlane.f32.xlu0 %v554
        %v556 = vpop.xlane.xlu0 %555
        %v557 = vsel %vm422, %v553, -inf
        %558 = vmax.xlane.f32.xlu0 %v557
        %v559 = vpop.xlane.xlu0 %558
        %v560 = vsub.f32 %v552, %v556
        %v561 = vsub.f32 %v553, %v559
        %v562 = vmul.f32 %v560, 1.442695
        %v563 = vpow.pop %v562
        %v564 = vmul.f32 %v561, 1.442695
        %v565 = vpow.pop %v564
        %v566 = vsel %vm422, %v563, 0.0
        %567 = vadd.xlane.f32.xlu0 %v566
        %v568 = vpop.xlane.xlu0 %567
        %v569 = vsel %vm422, %v565, 0.0
        %570 = vadd.xlane.f32.xlu0 %v569
        %v571 = vpop.xlane.xlu0 %570
        %v572 = vrcp.pop %v568
        %v573 = vrcp.pop %v571
        %v574 = vmul.f32 %v563, %v572
        %v575 = vmul.f32 %v565, %v573
        %578 = vrot.lane.b32.xlu0 %v409, 112
        %v579 = vpop.permute.xlu0 %578
        %580 = vrot.lane.b32.xlu0 %v410, 112
        %v581 = vpop.permute.xlu0 %580
        %v585 = vsel %vm422, %v574, 0
        %v588 = vsel %vm422, %v575, 0
        %590 = vmatpush.msra.mxu0 0.0
        %591 = vmatpush.msra.mxu0 0.0
        %592 = vmatpush.msra.mxu0 0.0
        %593 = vmatpush.msra.mxu0 0.0
        %594 = vmatpush.msra.mxu0 0.0
        %595 = vmatpush.msra.mxu0 0.0
        %596 = vmatpush.msra.mxu0 0.0
        %597 = vmatpush.msra.mxu0 0.0
        %598 = vmatpush.msra.mxu0 0.0
        %599 = vmatpush.msra.mxu0 0.0
        %600 = vmatpush.msra.mxu0 0.0
        %601 = vmatpush.msra.mxu0 0.0
        %602 = vmatpush.msra.mxu0 0.0
        %603 = vmatpush.msra.mxu0 0.0
        %604 = vmatpush.msra.mxu0 %v581
        %605 = vmatpush.msra.mxu0 %v579
        %606 = vmatmul.f32.gmra.mxu0 %v585
        %v607 = vpop.f32.mrf.mxu0
        %v608 = vadd.f32 0.0, %v607
        %609 = vmatmul.f32.gmra.mxu0 %v588
        %v610 = vpop.f32.mrf.mxu0
        %v611 = vadd.f32 0.0, %v610
        %612 = vdwg.mxu0
        %v613 = vld [vmem:[#allocation4 + $0x10] sm:$0xff]
        %v614 = vld [vmem:[#allocation4 + $0x18] sm:$0xff]
        %v616 = vsel %vm422, %v608, 0
        %v619 = vsel %vm422, %v611, 0
        %621 = vmatpush.msra.mxu0 0.0
        %622 = vmatpush.msra.mxu0 0.0
        %623 = vmatpush.msra.mxu0 0.0
        %624 = vmatpush.msra.mxu0 0.0
        %625 = vmatpush.msra.mxu0 0.0
        %626 = vmatpush.msra.mxu0 0.0
        %627 = vmatpush.msra.mxu0 0.0
        %628 = vmatpush.msra.mxu0 0.0
        %629 = vmatpush.msra.mxu0 0.0
        %630 = vmatpush.msra.mxu0 0.0
        %631 = vmatpush.msra.mxu0 0.0
        %632 = vmatpush.msra.mxu0 0.0
        %633 = vmatpush.msra.mxu0 0.0
        %634 = vmatpush.msra.mxu0 0.0
        %635 = vmatpush.msra.mxu0 %v614
        %636 = vmatpush.msra.mxu0 %v613
        %637 = vmatmul.f32.gmra.mxu0 %v616
        %v638 = vpop.f32.mrf.mxu0
        %v639 = vadd.f32 0.0, %v638
        %640 = vmatmul.f32.gmra.mxu0 %v619
        %v641 = vpop.f32.mrf.mxu0
        %v642 = vadd.f32 0.0, %v641
        %643 = vdwg.mxu0
        %v645 = vsel %vm422, %v506, 0
        %v648 = vsel %vm422, %v509, 0
        %650 = vmatpush.msra.mxu0 0.0
        %651 = vmatpush.msra.mxu0 0.0
        %652 = vmatpush.msra.mxu0 0.0
        %653 = vmatpush.msra.mxu0 0.0
        %654 = vmatpush.msra.mxu0 0.0
        %655 = vmatpush.msra.mxu0 0.0
        %656 = vmatpush.msra.mxu0 0.0
        %657 = vmatpush.msra.mxu0 0.0
        %658 = vmatpush.msra.mxu0 0.0
        %659 = vmatpush.msra.mxu0 0.0
        %660 = vmatpush.msra.mxu0 0.0
        %661 = vmatpush.msra.mxu0 0.0
        %662 = vmatpush.msra.mxu0 0.0
        %663 = vmatpush.msra.mxu0 0.0
        %664 = vmatpush.msra.mxu0 %v512
        %665 = vmatpush.msra.mxu0 %v511
        %666 = vmatmul.f32.gmra.mxu0 %v645
        %v667 = vpop.f32.mrf.mxu0
        %v668 = vadd.f32 %v639, %v667
        %669 = vmatmul.f32.gmra.mxu0 %v648
        %v670 = vpop.f32.mrf.mxu0
        %v671 = vadd.f32 %v642, %v670
        %672 = vdwg.mxu0
        %673 = vrot.lane.b32.xlu0 %v420, 96
        %v674 = vpop.permute.xlu0 %673
        %675 = vrot.lane.b32.xlu0 %v421, 96
        %v676 = vpop.permute.xlu0 %675
        %677 = vrot.lane.b32.xlu0 %v407, 96
        %v678 = vpop.permute.xlu0 %677
        %679 = vrot.lane.b32.xlu0 %v408, 96
        %v680 = vpop.permute.xlu0 %679
        %v681 = vsel %vm422, %v674, 0
        %v683 = vsel %vm422, %v676, 0
        %v685 = vsel %vm422, %v678, 0
        %v687 = vsel %vm422, %v680, 0
        %689 = vmatpush.xpose.msra.mxu0 0.0
        %690 = vmatpush.xpose.msra.mxu0 0.0
        %691 = vmatpush.xpose.msra.mxu0 0.0
        %692 = vmatpush.xpose.msra.mxu0 0.0
        %693 = vmatpush.xpose.msra.mxu0 0.0
        %694 = vmatpush.xpose.msra.mxu0 0.0
        %695 = vmatpush.xpose.msra.mxu0 0.0
        %696 = vmatpush.xpose.msra.mxu0 0.0
        %697 = vmatpush.xpose.msra.mxu0 0.0
        %698 = vmatpush.xpose.msra.mxu0 0.0
        %699 = vmatpush.xpose.msra.mxu0 0.0
        %700 = vmatpush.xpose.msra.mxu0 0.0
        %701 = vmatpush.xpose.msra.mxu0 0.0
        %702 = vmatpush.xpose.msra.mxu0 0.0
        %703 = vmatpush.xpose.msra.mxu0 %v687
        %704 = vmatpush.xpose.msra.mxu0 %v685
        %705 = vmatmul.f32.gmra.mxu0 %v681
        %v706 = vpop.f32.mrf.mxu0
        %v707 = vadd.f32 0.0, %v706
        %708 = vmatmul.f32.gmra.mxu0 %v683
        %v709 = vpop.f32.mrf.mxu0
        %v710 = vadd.f32 0.0, %v709
        %711 = vdwg.mxu0
        %v712 = vsel %vm413, %v707, -1e+09
        %v713 = vsel %vm414, %v710, -1e+09
        %v714 = vsel %vm422, %v712, -inf
        %715 = vmax.xlane.f32.xlu0 %v714
        %v716 = vpop.xlane.xlu0 %715
        %v717 = vsel %vm422, %v713, -inf
        %718 = vmax.xlane.f32.xlu0 %v717
        %v719 = vpop.xlane.xlu0 %718
        %v720 = vsub.f32 %v712, %v716
        %v721 = vsub.f32 %v713, %v719
        %v722 = vmul.f32 %v720, 1.442695
        %v723 = vpow.pop %v722
        %v724 = vmul.f32 %v721, 1.442695
        %v725 = vpow.pop %v724
        %v726 = vsel %vm422, %v723, 0.0
        %727 = vadd.xlane.f32.xlu0 %v726
        %v728 = vpop.xlane.xlu0 %727
        %v729 = vsel %vm422, %v725, 0.0
        %730 = vadd.xlane.f32.xlu0 %v729
        %v731 = vpop.xlane.xlu0 %730
        %v732 = vrcp.pop %v728
        %v733 = vrcp.pop %v731
        %v734 = vmul.f32 %v723, %v732
        %v735 = vmul.f32 %v725, %v733
        %736 = vrot.lane.b32.xlu0 %v409, 96
        %v737 = vpop.permute.xlu0 %736
        %738 = vrot.lane.b32.xlu0 %v410, 96
        %v739 = vpop.permute.xlu0 %738
        %v743 = vsel %vm422, %v734, 0
        %v746 = vsel %vm422, %v735, 0
        %748 = vmatpush.msra.mxu0 0.0
        %749 = vmatpush.msra.mxu0 0.0
        %750 = vmatpush.msra.mxu0 0.0
        %751 = vmatpush.msra.mxu0 0.0
        %752 = vmatpush.msra.mxu0 0.0
        %753 = vmatpush.msra.mxu0 0.0
        %754 = vmatpush.msra.mxu0 0.0
        %755 = vmatpush.msra.mxu0 0.0
        %756 = vmatpush.msra.mxu0 0.0
        %757 = vmatpush.msra.mxu0 0.0
        %758 = vmatpush.msra.mxu0 0.0
        %759 = vmatpush.msra.mxu0 0.0
        %760 = vmatpush.msra.mxu0 0.0
        %761 = vmatpush.msra.mxu0 0.0
        %762 = vmatpush.msra.mxu0 %v739
        %763 = vmatpush.msra.mxu0 %v737
        %764 = vmatmul.f32.gmra.mxu0 %v743
        %v765 = vpop.f32.mrf.mxu0
        %v766 = vadd.f32 0.0, %v765
        %767 = vmatmul.f32.gmra.mxu0 %v746
        %v768 = vpop.f32.mrf.mxu0
        %v769 = vadd.f32 0.0, %v768
        %770 = vdwg.mxu0
        %v771 = vld [vmem:[#allocation4 + $0x20] sm:$0xff]
        %v772 = vld [vmem:[#allocation4 + $0x28] sm:$0xff]
        %v774 = vsel %vm422, %v766, 0
        %v777 = vsel %vm422, %v769, 0
        %779 = vmatpush.msra.mxu0 0.0
        %780 = vmatpush.msra.mxu0 0.0
        %781 = vmatpush.msra.mxu0 0.0
        %782 = vmatpush.msra.mxu0 0.0
        %783 = vmatpush.msra.mxu0 0.0
        %784 = vmatpush.msra.mxu0 0.0
        %785 = vmatpush.msra.mxu0 0.0
        %786 = vmatpush.msra.mxu0 0.0
        %787 = vmatpush.msra.mxu0 0.0
        %788 = vmatpush.msra.mxu0 0.0
        %789 = vmatpush.msra.mxu0 0.0
        %790 = vmatpush.msra.mxu0 0.0
        %791 = vmatpush.msra.mxu0 0.0
        %792 = vmatpush.msra.mxu0 0.0
        %793 = vmatpush.msra.mxu0 %v772
        %794 = vmatpush.msra.mxu0 %v771
        %795 = vmatmul.f32.gmra.mxu0 %v774
        %v796 = vpop.f32.mrf.mxu0
        %v797 = vadd.f32 0.0, %v796
        %798 = vmatmul.f32.gmra.mxu0 %v777
        %v799 = vpop.f32.mrf.mxu0
        %v800 = vadd.f32 0.0, %v799
        %801 = vdwg.mxu0
        %v802 = vadd.f32 %v668, %v797
        %v803 = vadd.f32 %v671, %v800
        %804 = vrot.lane.b32.xlu0 %v420, 80
        %v805 = vpop.permute.xlu0 %804
        %806 = vrot.lane.b32.xlu0 %v421, 80
        %v807 = vpop.permute.xlu0 %806
        %808 = vrot.lane.b32.xlu0 %v407, 80
        %v809 = vpop.permute.xlu0 %808
        %810 = vrot.lane.b32.xlu0 %v408, 80
        %v811 = vpop.permute.xlu0 %810
        %v812 = vsel %vm422, %v805, 0
        %v814 = vsel %vm422, %v807, 0
        %v816 = vsel %vm422, %v809, 0
        %v818 = vsel %vm422, %v811, 0
        %820 = vmatpush.xpose.msra.mxu0 0.0
        %821 = vmatpush.xpose.msra.mxu0 0.0
        %822 = vmatpush.xpose.msra.mxu0 0.0
        %823 = vmatpush.xpose.msra.mxu0 0.0
        %824 = vmatpush.xpose.msra.mxu0 0.0
        %825 = vmatpush.xpose.msra.mxu0 0.0
        %826 = vmatpush.xpose.msra.mxu0 0.0
        %827 = vmatpush.xpose.msra.mxu0 0.0
        %828 = vmatpush.xpose.msra.mxu0 0.0
        %829 = vmatpush.xpose.msra.mxu0 0.0
        %830 = vmatpush.xpose.msra.mxu0 0.0
        %831 = vmatpush.xpose.msra.mxu0 0.0
        %832 = vmatpush.xpose.msra.mxu0 0.0
        %833 = vmatpush.xpose.msra.mxu0 0.0
        %834 = vmatpush.xpose.msra.mxu0 %v818
        %835 = vmatpush.xpose.msra.mxu0 %v816
        %836 = vmatmul.f32.gmra.mxu0 %v812
        %v837 = vpop.f32.mrf.mxu0
        %v838 = vadd.f32 0.0, %v837
        %839 = vmatmul.f32.gmra.mxu0 %v814
        %v840 = vpop.f32.mrf.mxu0
        %v841 = vadd.f32 0.0, %v840
        %842 = vdwg.mxu0
        %v843 = vsel %vm413, %v838, -1e+09
        %v844 = vsel %vm414, %v841, -1e+09
        %v845 = vsel %vm422, %v843, -inf
        %846 = vmax.xlane.f32.xlu0 %v845
        %v847 = vpop.xlane.xlu0 %846
        %v848 = vsel %vm422, %v844, -inf
        %849 = vmax.xlane.f32.xlu0 %v848
        %v850 = vpop.xlane.xlu0 %849
        %v851 = vsub.f32 %v843, %v847
        %v852 = vsub.f32 %v844, %v850
        %v853 = vmul.f32 %v851, 1.442695
        %v854 = vpow.pop %v853
        %v855 = vmul.f32 %v852, 1.442695
        %v856 = vpow.pop %v855
        %v857 = vsel %vm422, %v854, 0.0
        %858 = vadd.xlane.f32.xlu0 %v857
        %v859 = vpop.xlane.xlu0 %858
        %v860 = vsel %vm422, %v856, 0.0
        %861 = vadd.xlane.f32.xlu0 %v860
        %v862 = vpop.xlane.xlu0 %861
        %v863 = vrcp.pop %v859
        %v864 = vrcp.pop %v862
        %v865 = vmul.f32 %v854, %v863
        %v866 = vmul.f32 %v856, %v864
        %867 = vrot.lane.b32.xlu0 %v409, 80
        %v868 = vpop.permute.xlu0 %867
        %869 = vrot.lane.b32.xlu0 %v410, 80
        %v870 = vpop.permute.xlu0 %869
        %v874 = vsel %vm422, %v865, 0
        %v877 = vsel %vm422, %v866, 0
        %879 = vmatpush.msra.mxu0 0.0
        %880 = vmatpush.msra.mxu0 0.0
        %881 = vmatpush.msra.mxu0 0.0
        %882 = vmatpush.msra.mxu0 0.0
        %883 = vmatpush.msra.mxu0 0.0
        %884 = vmatpush.msra.mxu0 0.0
        %885 = vmatpush.msra.mxu0 0.0
        %886 = vmatpush.msra.mxu0 0.0
        %887 = vmatpush.msra.mxu0 0.0
        %888 = vmatpush.msra.mxu0 0.0
        %889 = vmatpush.msra.mxu0 0.0
        %890 = vmatpush.msra.mxu0 0.0
        %891 = vmatpush.msra.mxu0 0.0
        %892 = vmatpush.msra.mxu0 0.0
        %893 = vmatpush.msra.mxu0 %v870
        %894 = vmatpush.msra.mxu0 %v868
        %895 = vmatmul.f32.gmra.mxu0 %v874
        %v896 = vpop.f32.mrf.mxu0
        %v897 = vadd.f32 0.0, %v896
        %898 = vmatmul.f32.gmra.mxu0 %v877
        %v899 = vpop.f32.mrf.mxu0
        %v900 = vadd.f32 0.0, %v899
        %901 = vdwg.mxu0
        %v902 = vld [vmem:[#allocation4 + $0x30] sm:$0xff]
        %v903 = vld [vmem:[#allocation4 + $0x38] sm:$0xff]
        %v905 = vsel %vm422, %v897, 0
        %v908 = vsel %vm422, %v900, 0
        %910 = vmatpush.msra.mxu0 0.0
        %911 = vmatpush.msra.mxu0 0.0
        %912 = vmatpush.msra.mxu0 0.0
        %913 = vmatpush.msra.mxu0 0.0
        %914 = vmatpush.msra.mxu0 0.0
        %915 = vmatpush.msra.mxu0 0.0
        %916 = vmatpush.msra.mxu0 0.0
        %917 = vmatpush.msra.mxu0 0.0
        %918 = vmatpush.msra.mxu0 0.0
        %919 = vmatpush.msra.mxu0 0.0
        %920 = vmatpush.msra.mxu0 0.0
        %921 = vmatpush.msra.mxu0 0.0
        %922 = vmatpush.msra.mxu0 0.0
        %923 = vmatpush.msra.mxu0 0.0
        %924 = vmatpush.msra.mxu0 %v903
        %925 = vmatpush.msra.mxu0 %v902
        %926 = vmatmul.f32.gmra.mxu0 %v905
        %v927 = vpop.f32.mrf.mxu0
        %v928 = vadd.f32 0.0, %v927
        %929 = vmatmul.f32.gmra.mxu0 %v908
        %v930 = vpop.f32.mrf.mxu0
        %v931 = vadd.f32 0.0, %v930
        %932 = vdwg.mxu0
        %v933 = vadd.f32 %v802, %v928
        %v934 = vadd.f32 %v803, %v931
        %935 = vrot.lane.b32.xlu0 %v420, 64
        %v936 = vpop.permute.xlu0 %935
        %937 = vrot.lane.b32.xlu0 %v421, 64
        %v938 = vpop.permute.xlu0 %937
        %939 = vrot.lane.b32.xlu0 %v407, 64
        %v940 = vpop.permute.xlu0 %939
        %941 = vrot.lane.b32.xlu0 %v408, 64
        %v942 = vpop.permute.xlu0 %941
        %v943 = vsel %vm422, %v936, 0
        %v945 = vsel %vm422, %v938, 0
        %v947 = vsel %vm422, %v940, 0
        %v949 = vsel %vm422, %v942, 0
        %951 = vmatpush.xpose.msra.mxu0 0.0
        %952 = vmatpush.xpose.msra.mxu0 0.0
        %953 = vmatpush.xpose.msra.mxu0 0.0
        %954 = vmatpush.xpose.msra.mxu0 0.0
        %955 = vmatpush.xpose.msra.mxu0 0.0
        %956 = vmatpush.xpose.msra.mxu0 0.0
        %957 = vmatpush.xpose.msra.mxu0 0.0
        %958 = vmatpush.xpose.msra.mxu0 0.0
        %959 = vmatpush.xpose.msra.mxu0 0.0
        %960 = vmatpush.xpose.msra.mxu0 0.0
        %961 = vmatpush.xpose.msra.mxu0 0.0
        %962 = vmatpush.xpose.msra.mxu0 0.0
        %963 = vmatpush.xpose.msra.mxu0 0.0
        %964 = vmatpush.xpose.msra.mxu0 0.0
        %965 = vmatpush.xpose.msra.mxu0 %v949
        %966 = vmatpush.xpose.msra.mxu0 %v947
        %967 = vmatmul.f32.gmra.mxu0 %v943
        %v968 = vpop.f32.mrf.mxu0
        %v969 = vadd.f32 0.0, %v968
        %970 = vmatmul.f32.gmra.mxu0 %v945
        %v971 = vpop.f32.mrf.mxu0
        %v972 = vadd.f32 0.0, %v971
        %973 = vdwg.mxu0
        %v974 = vsel %vm413, %v969, -1e+09
        %v975 = vsel %vm414, %v972, -1e+09
        %v976 = vsel %vm422, %v974, -inf
        %977 = vmax.xlane.f32.xlu0 %v976
        %v978 = vpop.xlane.xlu0 %977
        %v979 = vsel %vm422, %v975, -inf
        %980 = vmax.xlane.f32.xlu0 %v979
        %v981 = vpop.xlane.xlu0 %980
        %v982 = vsub.f32 %v974, %v978
        %v983 = vsub.f32 %v975, %v981
        %v984 = vmul.f32 %v982, 1.442695
        %v985 = vpow.pop %v984
        %v986 = vmul.f32 %v983, 1.442695
        %v987 = vpow.pop %v986
        %v988 = vsel %vm422, %v985, 0.0
        %989 = vadd.xlane.f32.xlu0 %v988
        %v990 = vpop.xlane.xlu0 %989
        %v991 = vsel %vm422, %v987, 0.0
        %992 = vadd.xlane.f32.xlu0 %v991
        %v993 = vpop.xlane.xlu0 %992
        %v994 = vrcp.pop %v990
        %v995 = vrcp.pop %v993
        %v996 = vmul.f32 %v985, %v994
        %v997 = vmul.f32 %v987, %v995
        %998 = vrot.lane.b32.xlu0 %v409, 64
        %v999 = vpop.permute.xlu0 %998
        %1000 = vrot.lane.b32.xlu0 %v410, 64
        %v1001 = vpop.permute.xlu0 %1000
        %v1005 = vsel %vm422, %v996, 0
        %v1008 = vsel %vm422, %v997, 0
        %1010 = vmatpush.msra.mxu0 0.0
        %1011 = vmatpush.msra.mxu0 0.0
        %1012 = vmatpush.msra.mxu0 0.0
        %1013 = vmatpush.msra.mxu0 0.0
        %1014 = vmatpush.msra.mxu0 0.0
        %1015 = vmatpush.msra.mxu0 0.0
        %1016 = vmatpush.msra.mxu0 0.0
        %1017 = vmatpush.msra.mxu0 0.0
        %1018 = vmatpush.msra.mxu0 0.0
        %1019 = vmatpush.msra.mxu0 0.0
        %1020 = vmatpush.msra.mxu0 0.0
        %1021 = vmatpush.msra.mxu0 0.0
        %1022 = vmatpush.msra.mxu0 0.0
        %1023 = vmatpush.msra.mxu0 0.0
        %1024 = vmatpush.msra.mxu0 %v1001
        %1025 = vmatpush.msra.mxu0 %v999
        %1026 = vmatmul.f32.gmra.mxu0 %v1005
        %v1027 = vpop.f32.mrf.mxu0
        %v1028 = vadd.f32 0.0, %v1027
        %1029 = vmatmul.f32.gmra.mxu0 %v1008
        %v1030 = vpop.f32.mrf.mxu0
        %v1031 = vadd.f32 0.0, %v1030
        %1032 = vdwg.mxu0
        %v1033 = vld [vmem:[#allocation4 + $0x40] sm:$0xff]
        %v1034 = vld [vmem:[#allocation4 + $0x48] sm:$0xff]
        %v1036 = vsel %vm422, %v1028, 0
        %v1039 = vsel %vm422, %v1031, 0
        %1041 = vmatpush.msra.mxu0 0.0
        %1042 = vmatpush.msra.mxu0 0.0
        %1043 = vmatpush.msra.mxu0 0.0
        %1044 = vmatpush.msra.mxu0 0.0
        %1045 = vmatpush.msra.mxu0 0.0
        %1046 = vmatpush.msra.mxu0 0.0
        %1047 = vmatpush.msra.mxu0 0.0
        %1048 = vmatpush.msra.mxu0 0.0
        %1049 = vmatpush.msra.mxu0 0.0
        %1050 = vmatpush.msra.mxu0 0.0
        %1051 = vmatpush.msra.mxu0 0.0
        %1052 = vmatpush.msra.mxu0 0.0
        %1053 = vmatpush.msra.mxu0 0.0
        %1054 = vmatpush.msra.mxu0 0.0
        %1055 = vmatpush.msra.mxu0 %v1034
        %1056 = vmatpush.msra.mxu0 %v1033
        %1057 = vmatmul.f32.gmra.mxu0 %v1036
        %v1058 = vpop.f32.mrf.mxu0
        %v1059 = vadd.f32 0.0, %v1058
        %1060 = vmatmul.f32.gmra.mxu0 %v1039
        %v1061 = vpop.f32.mrf.mxu0
        %v1062 = vadd.f32 0.0, %v1061
        %1063 = vdwg.mxu0
        %v1064 = vadd.f32 %v933, %v1059
        %v1065 = vadd.f32 %v934, %v1062
        %1066 = vrot.lane.b32.xlu0 %v420, 48
        %v1067 = vpop.permute.xlu0 %1066
        %1068 = vrot.lane.b32.xlu0 %v421, 48
        %v1069 = vpop.permute.xlu0 %1068
        %1070 = vrot.lane.b32.xlu0 %v407, 48
        %v1071 = vpop.permute.xlu0 %1070
        %1072 = vrot.lane.b32.xlu0 %v408, 48
        %v1073 = vpop.permute.xlu0 %1072
        %v1074 = vsel %vm422, %v1067, 0
        %v1076 = vsel %vm422, %v1069, 0
        %v1078 = vsel %vm422, %v1071, 0
        %v1080 = vsel %vm422, %v1073, 0
        %1082 = vmatpush.xpose.msra.mxu0 0.0
        %1083 = vmatpush.xpose.msra.mxu0 0.0
        %1084 = vmatpush.xpose.msra.mxu0 0.0
        %1085 = vmatpush.xpose.msra.mxu0 0.0
        %1086 = vmatpush.xpose.msra.mxu0 0.0
        %1087 = vmatpush.xpose.msra.mxu0 0.0
        %1088 = vmatpush.xpose.msra.mxu0 0.0
        %1089 = vmatpush.xpose.msra.mxu0 0.0
        %1090 = vmatpush.xpose.msra.mxu0 0.0
        %1091 = vmatpush.xpose.msra.mxu0 0.0
        %1092 = vmatpush.xpose.msra.mxu0 0.0
        %1093 = vmatpush.xpose.msra.mxu0 0.0
        %1094 = vmatpush.xpose.msra.mxu0 0.0
        %1095 = vmatpush.xpose.msra.mxu0 0.0
        %1096 = vmatpush.xpose.msra.mxu0 %v1080
        %1097 = vmatpush.xpose.msra.mxu0 %v1078
        %1098 = vmatmul.f32.gmra.mxu0 %v1074
        %v1099 = vpop.f32.mrf.mxu0
        %v1100 = vadd.f32 0.0, %v1099
        %1101 = vmatmul.f32.gmra.mxu0 %v1076
        %v1102 = vpop.f32.mrf.mxu0
        %v1103 = vadd.f32 0.0, %v1102
        %1104 = vdwg.mxu0
        %v1105 = vsel %vm413, %v1100, -1e+09
        %v1106 = vsel %vm414, %v1103, -1e+09
        %v1107 = vsel %vm422, %v1105, -inf
        %1108 = vmax.xlane.f32.xlu0 %v1107
        %v1109 = vpop.xlane.xlu0 %1108
        %v1110 = vsel %vm422, %v1106, -inf
        %1111 = vmax.xlane.f32.xlu0 %v1110
        %v1112 = vpop.xlane.xlu0 %1111
        %v1113 = vsub.f32 %v1105, %v1109
        %v1114 = vsub.f32 %v1106, %v1112
        %v1115 = vmul.f32 %v1113, 1.442695
        %v1116 = vpow.pop %v1115
        %v1117 = vmul.f32 %v1114, 1.442695
        %v1118 = vpow.pop %v1117
        %v1119 = vsel %vm422, %v1116, 0.0
        %1120 = vadd.xlane.f32.xlu0 %v1119
        %v1121 = vpop.xlane.xlu0 %1120
        %v1122 = vsel %vm422, %v1118, 0.0
        %1123 = vadd.xlane.f32.xlu0 %v1122
        %v1124 = vpop.xlane.xlu0 %1123
        %v1125 = vrcp.pop %v1121
        %v1126 = vrcp.pop %v1124
        %v1127 = vmul.f32 %v1116, %v1125
        %v1128 = vmul.f32 %v1118, %v1126
        %1129 = vrot.lane.b32.xlu0 %v409, 48
        %v1130 = vpop.permute.xlu0 %1129
        %1131 = vrot.lane.b32.xlu0 %v410, 48
        %v1132 = vpop.permute.xlu0 %1131
        %v1136 = vsel %vm422, %v1127, 0
        %v1139 = vsel %vm422, %v1128, 0
        %1141 = vmatpush.msra.mxu0 0.0
        %1142 = vmatpush.msra.mxu0 0.0
        %1143 = vmatpush.msra.mxu0 0.0
        %1144 = vmatpush.msra.mxu0 0.0
        %1145 = vmatpush.msra.mxu0 0.0
        %1146 = vmatpush.msra.mxu0 0.0
        %1147 = vmatpush.msra.mxu0 0.0
        %1148 = vmatpush.msra.mxu0 0.0
        %1149 = vmatpush.msra.mxu0 0.0
        %1150 = vmatpush.msra.mxu0 0.0
        %1151 = vmatpush.msra.mxu0 0.0
        %1152 = vmatpush.msra.mxu0 0.0
        %1153 = vmatpush.msra.mxu0 0.0
        %1154 = vmatpush.msra.mxu0 0.0
        %1155 = vmatpush.msra.mxu0 %v1132
        %1156 = vmatpush.msra.mxu0 %v1130
        %1157 = vmatmul.f32.gmra.mxu0 %v1136
        %v1158 = vpop.f32.mrf.mxu0
        %v1159 = vadd.f32 0.0, %v1158
        %1160 = vmatmul.f32.gmra.mxu0 %v1139
        %v1161 = vpop.f32.mrf.mxu0
        %v1162 = vadd.f32 0.0, %v1161
        %1163 = vdwg.mxu0
        %v1164 = vld [vmem:[#allocation4 + $0x50] sm:$0xff]
        %v1165 = vld [vmem:[#allocation4 + $0x58] sm:$0xff]
        %v1167 = vsel %vm422, %v1159, 0
        %v1170 = vsel %vm422, %v1162, 0
        %1172 = vmatpush.msra.mxu0 0.0
        %1173 = vmatpush.msra.mxu0 0.0
        %1174 = vmatpush.msra.mxu0 0.0
        %1175 = vmatpush.msra.mxu0 0.0
        %1176 = vmatpush.msra.mxu0 0.0
        %1177 = vmatpush.msra.mxu0 0.0
        %1178 = vmatpush.msra.mxu0 0.0
        %1179 = vmatpush.msra.mxu0 0.0
        %1180 = vmatpush.msra.mxu0 0.0
        %1181 = vmatpush.msra.mxu0 0.0
        %1182 = vmatpush.msra.mxu0 0.0
        %1183 = vmatpush.msra.mxu0 0.0
        %1184 = vmatpush.msra.mxu0 0.0
        %1185 = vmatpush.msra.mxu0 0.0
        %1186 = vmatpush.msra.mxu0 %v1165
        %1187 = vmatpush.msra.mxu0 %v1164
        %1188 = vmatmul.f32.gmra.mxu0 %v1167
        %v1189 = vpop.f32.mrf.mxu0
        %v1190 = vadd.f32 0.0, %v1189
        %1191 = vmatmul.f32.gmra.mxu0 %v1170
        %v1192 = vpop.f32.mrf.mxu0
        %v1193 = vadd.f32 0.0, %v1192
        %1194 = vdwg.mxu0
        %v1195 = vadd.f32 %v1064, %v1190
        %v1196 = vadd.f32 %v1065, %v1193
        %1197 = vrot.lane.b32.xlu0 %v420, 32
        %v1198 = vpop.permute.xlu0 %1197
        %1199 = vrot.lane.b32.xlu0 %v421, 32
        %v1200 = vpop.permute.xlu0 %1199
        %1201 = vrot.lane.b32.xlu0 %v407, 32
        %v1202 = vpop.permute.xlu0 %1201
        %1203 = vrot.lane.b32.xlu0 %v408, 32
        %v1204 = vpop.permute.xlu0 %1203
        %v1205 = vsel %vm422, %v1198, 0
        %v1207 = vsel %vm422, %v1200, 0
        %v1209 = vsel %vm422, %v1202, 0
        %v1211 = vsel %vm422, %v1204, 0
        %1213 = vmatpush.xpose.msra.mxu0 0.0
        %1214 = vmatpush.xpose.msra.mxu0 0.0
        %1215 = vmatpush.xpose.msra.mxu0 0.0
        %1216 = vmatpush.xpose.msra.mxu0 0.0
        %1217 = vmatpush.xpose.msra.mxu0 0.0
        %1218 = vmatpush.xpose.msra.mxu0 0.0
        %1219 = vmatpush.xpose.msra.mxu0 0.0
        %1220 = vmatpush.xpose.msra.mxu0 0.0
        %1221 = vmatpush.xpose.msra.mxu0 0.0
        %1222 = vmatpush.xpose.msra.mxu0 0.0
        %1223 = vmatpush.xpose.msra.mxu0 0.0
        %1224 = vmatpush.xpose.msra.mxu0 0.0
        %1225 = vmatpush.xpose.msra.mxu0 0.0
        %1226 = vmatpush.xpose.msra.mxu0 0.0
        %1227 = vmatpush.xpose.msra.mxu0 %v1211
        %1228 = vmatpush.xpose.msra.mxu0 %v1209
        %1229 = vmatmul.f32.gmra.mxu0 %v1205
        %v1230 = vpop.f32.mrf.mxu0
        %v1231 = vadd.f32 0.0, %v1230
        %1232 = vmatmul.f32.gmra.mxu0 %v1207
        %v1233 = vpop.f32.mrf.mxu0
        %v1234 = vadd.f32 0.0, %v1233
        %1235 = vdwg.mxu0
        %v1236 = vsel %vm413, %v1231, -1e+09
        %v1237 = vsel %vm414, %v1234, -1e+09
        %v1238 = vsel %vm422, %v1236, -inf
        %1239 = vmax.xlane.f32.xlu0 %v1238
        %v1240 = vpop.xlane.xlu0 %1239
        %v1241 = vsel %vm422, %v1237, -inf
        %1242 = vmax.xlane.f32.xlu0 %v1241
        %v1243 = vpop.xlane.xlu0 %1242
        %v1244 = vsub.f32 %v1236, %v1240
        %v1245 = vsub.f32 %v1237, %v1243
        %v1246 = vmul.f32 %v1244, 1.442695
        %v1247 = vpow.pop %v1246
        %v1248 = vmul.f32 %v1245, 1.442695
        %v1249 = vpow.pop %v1248
        %v1250 = vsel %vm422, %v1247, 0.0
        %1251 = vadd.xlane.f32.xlu0 %v1250
        %v1252 = vpop.xlane.xlu0 %1251
        %v1253 = vsel %vm422, %v1249, 0.0
        %1254 = vadd.xlane.f32.xlu0 %v1253
        %v1255 = vpop.xlane.xlu0 %1254
        %v1256 = vrcp.pop %v1252
        %v1257 = vrcp.pop %v1255
        %v1258 = vmul.f32 %v1247, %v1256
        %v1259 = vmul.f32 %v1249, %v1257
        %1260 = vrot.lane.b32.xlu0 %v409, 32
        %v1261 = vpop.permute.xlu0 %1260
        %1262 = vrot.lane.b32.xlu0 %v410, 32
        %v1263 = vpop.permute.xlu0 %1262
        %v1267 = vsel %vm422, %v1258, 0
        %v1270 = vsel %vm422, %v1259, 0
        %1272 = vmatpush.msra.mxu0 0.0
        %1273 = vmatpush.msra.mxu0 0.0
        %1274 = vmatpush.msra.mxu0 0.0
        %1275 = vmatpush.msra.mxu0 0.0
        %1276 = vmatpush.msra.mxu0 0.0
        %1277 = vmatpush.msra.mxu0 0.0
        %1278 = vmatpush.msra.mxu0 0.0
        %1279 = vmatpush.msra.mxu0 0.0
        %1280 = vmatpush.msra.mxu0 0.0
        %1281 = vmatpush.msra.mxu0 0.0
        %1282 = vmatpush.msra.mxu0 0.0
        %1283 = vmatpush.msra.mxu0 0.0
        %1284 = vmatpush.msra.mxu0 0.0
        %1285 = vmatpush.msra.mxu0 0.0
        %1286 = vmatpush.msra.mxu0 %v1263
        %1287 = vmatpush.msra.mxu0 %v1261
        %1288 = vmatmul.f32.gmra.mxu0 %v1267
        %v1289 = vpop.f32.mrf.mxu0
        %v1290 = vadd.f32 0.0, %v1289
        %1291 = vmatmul.f32.gmra.mxu0 %v1270
        %v1292 = vpop.f32.mrf.mxu0
        %v1293 = vadd.f32 0.0, %v1292
        %1294 = vdwg.mxu0
        %v1295 = vld [vmem:[#allocation4 + $0x60] sm:$0xff]
        %v1296 = vld [vmem:[#allocation4 + $0x68] sm:$0xff]
        %v1298 = vsel %vm422, %v1290, 0
        %v1301 = vsel %vm422, %v1293, 0
        %1303 = vmatpush.msra.mxu0 0.0
        %1304 = vmatpush.msra.mxu0 0.0
        %1305 = vmatpush.msra.mxu0 0.0
        %1306 = vmatpush.msra.mxu0 0.0
        %1307 = vmatpush.msra.mxu0 0.0
        %1308 = vmatpush.msra.mxu0 0.0
        %1309 = vmatpush.msra.mxu0 0.0
        %1310 = vmatpush.msra.mxu0 0.0
        %1311 = vmatpush.msra.mxu0 0.0
        %1312 = vmatpush.msra.mxu0 0.0
        %1313 = vmatpush.msra.mxu0 0.0
        %1314 = vmatpush.msra.mxu0 0.0
        %1315 = vmatpush.msra.mxu0 0.0
        %1316 = vmatpush.msra.mxu0 0.0
        %1317 = vmatpush.msra.mxu0 %v1296
        %1318 = vmatpush.msra.mxu0 %v1295
        %1319 = vmatmul.f32.gmra.mxu0 %v1298
        %v1320 = vpop.f32.mrf.mxu0
        %v1321 = vadd.f32 0.0, %v1320
        %1322 = vmatmul.f32.gmra.mxu0 %v1301
        %v1323 = vpop.f32.mrf.mxu0
        %v1324 = vadd.f32 0.0, %v1323
        %1325 = vdwg.mxu0
        %v1326 = vadd.f32 %v1195, %v1321
        %v1327 = vadd.f32 %v1196, %v1324
        %1328 = vrot.lane.b32.xlu0 %v420, 16
        %v1329 = vpop.permute.xlu0 %1328
        %1330 = vrot.lane.b32.xlu0 %v421, 16
        %v1331 = vpop.permute.xlu0 %1330
        %1332 = vrot.lane.b32.xlu0 %v407, 16
        %v1333 = vpop.permute.xlu0 %1332
        %1334 = vrot.lane.b32.xlu0 %v408, 16
        %v1335 = vpop.permute.xlu0 %1334
        %v1336 = vsel %vm422, %v1329, 0
        %v1338 = vsel %vm422, %v1331, 0
        %v1340 = vsel %vm422, %v1333, 0
        %v1342 = vsel %vm422, %v1335, 0
        %1344 = vmatpush.xpose.msra.mxu0 0.0
        %1345 = vmatpush.xpose.msra.mxu0 0.0
        %1346 = vmatpush.xpose.msra.mxu0 0.0
        %1347 = vmatpush.xpose.msra.mxu0 0.0
        %1348 = vmatpush.xpose.msra.mxu0 0.0
        %1349 = vmatpush.xpose.msra.mxu0 0.0
        %1350 = vmatpush.xpose.msra.mxu0 0.0
        %1351 = vmatpush.xpose.msra.mxu0 0.0
        %1352 = vmatpush.xpose.msra.mxu0 0.0
        %1353 = vmatpush.xpose.msra.mxu0 0.0
        %1354 = vmatpush.xpose.msra.mxu0 0.0
        %1355 = vmatpush.xpose.msra.mxu0 0.0
        %1356 = vmatpush.xpose.msra.mxu0 0.0
        %1357 = vmatpush.xpose.msra.mxu0 0.0
        %1358 = vmatpush.xpose.msra.mxu0 %v1342
        %1359 = vmatpush.xpose.msra.mxu0 %v1340
        %1360 = vmatmul.f32.gmra.mxu0 %v1336
        %v1361 = vpop.f32.mrf.mxu0
        %v1362 = vadd.f32 0.0, %v1361
        %1363 = vmatmul.f32.gmra.mxu0 %v1338
        %v1364 = vpop.f32.mrf.mxu0
        %v1365 = vadd.f32 0.0, %v1364
        %1366 = vdwg.mxu0
        %v1367 = vsel %vm413, %v1362, -1e+09
        %v1368 = vsel %vm414, %v1365, -1e+09
        %v1369 = vsel %vm422, %v1367, -inf
        %1370 = vmax.xlane.f32.xlu0 %v1369
        %v1371 = vpop.xlane.xlu0 %1370
        %v1372 = vsel %vm422, %v1368, -inf
        %1373 = vmax.xlane.f32.xlu0 %v1372
        %v1374 = vpop.xlane.xlu0 %1373
        %v1375 = vsub.f32 %v1367, %v1371
        %v1376 = vsub.f32 %v1368, %v1374
        %v1377 = vmul.f32 %v1375, 1.442695
        %v1378 = vpow.pop %v1377
        %v1379 = vmul.f32 %v1376, 1.442695
        %v1380 = vpow.pop %v1379
        %v1381 = vsel %vm422, %v1378, 0.0
        %1382 = vadd.xlane.f32.xlu0 %v1381
        %v1383 = vpop.xlane.xlu0 %1382
        %v1384 = vsel %vm422, %v1380, 0.0
        %1385 = vadd.xlane.f32.xlu0 %v1384
        %v1386 = vpop.xlane.xlu0 %1385
        %v1387 = vrcp.pop %v1383
        %v1388 = vrcp.pop %v1386
        %v1389 = vmul.f32 %v1378, %v1387
        %v1390 = vmul.f32 %v1380, %v1388
        %1391 = vrot.lane.b32.xlu0 %v409, 16
        %v1392 = vpop.permute.xlu0 %1391
        %1393 = vrot.lane.b32.xlu0 %v410, 16
        %v1394 = vpop.permute.xlu0 %1393
        %v1398 = vsel %vm422, %v1389, 0
        %v1401 = vsel %vm422, %v1390, 0
        %1403 = vmatpush.msra.mxu0 0.0
        %1404 = vmatpush.msra.mxu0 0.0
        %1405 = vmatpush.msra.mxu0 0.0
        %1406 = vmatpush.msra.mxu0 0.0
        %1407 = vmatpush.msra.mxu0 0.0
        %1408 = vmatpush.msra.mxu0 0.0
        %1409 = vmatpush.msra.mxu0 0.0
        %1410 = vmatpush.msra.mxu0 0.0
        %1411 = vmatpush.msra.mxu0 0.0
        %1412 = vmatpush.msra.mxu0 0.0
        %1413 = vmatpush.msra.mxu0 0.0
        %1414 = vmatpush.msra.mxu0 0.0
        %1415 = vmatpush.msra.mxu0 0.0
        %1416 = vmatpush.msra.mxu0 0.0
        %1417 = vmatpush.msra.mxu0 %v1394
        %1418 = vmatpush.msra.mxu0 %v1392
        %1419 = vmatmul.f32.gmra.mxu0 %v1398
        %v1420 = vpop.f32.mrf.mxu0
        %v1421 = vadd.f32 0.0, %v1420
        %1422 = vmatmul.f32.gmra.mxu0 %v1401
        %v1423 = vpop.f32.mrf.mxu0
        %v1424 = vadd.f32 0.0, %v1423
        %1425 = vdwg.mxu0
        %v1426 = vld [vmem:[#allocation4 + $0x70] sm:$0xff]
        %v1427 = vld [vmem:[#allocation4 + $0x78] sm:$0xff]
        %v1429 = vsel %vm422, %v1421, 0
        %v1432 = vsel %vm422, %v1424, 0
        %1434 = vmatpush.msra.mxu0 0.0
        %1435 = vmatpush.msra.mxu0 0.0
        %1436 = vmatpush.msra.mxu0 0.0
        %1437 = vmatpush.msra.mxu0 0.0
        %1438 = vmatpush.msra.mxu0 0.0
        %1439 = vmatpush.msra.mxu0 0.0
        %1440 = vmatpush.msra.mxu0 0.0
        %1441 = vmatpush.msra.mxu0 0.0
        %1442 = vmatpush.msra.mxu0 0.0
        %1443 = vmatpush.msra.mxu0 0.0
        %1444 = vmatpush.msra.mxu0 0.0
        %1445 = vmatpush.msra.mxu0 0.0
        %1446 = vmatpush.msra.mxu0 0.0
        %1447 = vmatpush.msra.mxu0 0.0
        %1448 = vmatpush.msra.mxu0 %v1427
        %1449 = vmatpush.msra.mxu0 %v1426
        %1450 = vmatmul.f32.gmra.mxu0 %v1429
        %v1451 = vpop.f32.mrf.mxu0
        %v1452 = vadd.f32 0.0, %v1451
        %1453 = vmatmul.f32.gmra.mxu0 %v1432
        %v1454 = vpop.f32.mrf.mxu0
        %v1455 = vadd.f32 0.0, %v1454
        %1456 = vdwg.mxu0
        %v1457 = vadd.f32 %v1326, %v1452
        %v1458 = vadd.f32 %v1327, %v1455
        %v1459 = vadd.f32 %v415, %v1457
        %v1460 = vadd.f32 %v416, %v1458
        %v1462 = vperm.slane %v417, 0
        %v1464 = vadd.f32 %v1459, %v1462
        %v1465 = vadd.f32 %v1460, %v1462
        %1466 = vadd.xlane.f32.xlu0 %v1464
        %v1467 = vpop.xlane.xlu0 %1466
        %1468 = vadd.xlane.f32.xlu0 %v1465
        %v1469 = vpop.xlane.xlu0 %1468
        %v1470 = vrcp.pop 128.0
        %v1471 = vmul.f32 128.0, %v1470
        %v1472 = vsub.f32 1.0, %v1471
        %v1473 = vmul.f32 %v1470, %v1472
        %v1474 = vadd.f32 %v1470, %v1473
        %vm1475 = vweird.f32 %v1470
        %v1476 = vsel %vm1475, %v1470, %v1474
        %v1477 = vmul.f32 %v1467, %v1476
        %v1478 = vmul.f32 %v1469, %v1476
        %v1479 = vsub.f32 %v1464, %v1477
        %v1480 = vsub.f32 %v1465, %v1478
        %v1481 = vmul.f32 %v1479, %v1479
        %v1482 = vmul.f32 %v1480, %v1480
        %1483 = vadd.xlane.f32.xlu0 %v1481
        %v1484 = vpop.xlane.xlu0 %1483
        %1485 = vadd.xlane.f32.xlu0 %v1482
        %v1486 = vpop.xlane.xlu0 %1485
        %v1487 = vmul.f32 %v1484, %v1476
        %v1488 = vmul.f32 %v1486, %v1476
        %v1489 = vadd.f32 %v1487, 1e-05
        %v1490 = vadd.f32 %v1488, 1e-05
        %v1491 = vrsqrt.pop %v1489
        %v1492 = vmul.f32 %v1491, %v1489
        %v1493 = vmul.f32 %v1492, %v1491
        %v1494 = vmul.f32 0.5, %v1493
        %v1495 = vsub.f32 1.5, %v1494
        %v1496 = vmul.f32 %v1491, %v1495
        %vm1497 = vweird.f32 %v1489
        %vm1498 = vweird.f32 %v1491
        %vm1499 = vmor %vm1497, %vm1498
        %v1500 = vsel %vm1499, %v1491, %v1496
        %v1501 = vrsqrt.pop %v1490
        %v1502 = vmul.f32 %v1501, %v1490
        %v1503 = vmul.f32 %v1502, %v1501
        %v1504 = vmul.f32 0.5, %v1503
        %v1505 = vsub.f32 1.5, %v1504
        %v1506 = vmul.f32 %v1501, %v1505
        %vm1507 = vweird.f32 %v1490
        %vm1508 = vweird.f32 %v1501
        %vm1509 = vmor %vm1507, %vm1508
        %v1510 = vsel %vm1509, %v1501, %v1506
        %v1511 = vmul.f32 %v1479, %v1500
        %v1512 = vmul.f32 %v1480, %v1510
        %v1514 = vperm.slane %v418, 0
        %v1516 = vmul.f32 %v1511, %v1514
        %v1517 = vmul.f32 %v1512, %v1514
        %v1519 = vperm.slane %v419, 0
        %v1521 = vadd.f32 %v1516, %v1519
        %v1522 = vadd.f32 %v1517, %v1519
        %1523 = vst [vmem:[%s404] sm:$0xff] %v1521
        %1524 = vst [vmem:[%s404 + $0x8] sm:$0xff] %v1522
        %p1525 = scmp.lt.s32.totalorder %s23, 1
        %s1526 = scalar_select %p1525, %s23, 1
        %s1527 = smul.addr %s1526, 2
        %s1528 = smul.addr %s1527, 8
        %s1529 = scalar_lea.vmem %s8, %s1528
        // Predicated region
        $region61: #{decoder_layer.10} parent=51 // pred_check
          %p1530 = pneg %p229
        $region62: #{decoder_layer.10} parent=51 // pred_check_branch
          %1532 = sbr.rel (%p1530) target = $region64
        $region63: #{decoder_layer.10} parent=51 // pred_region
          _
        $region64: #{decoder_layer.10} parent=51 // pred_fallthru
          _
      $region52: #{decoder_layer.10} parent=5 // pred_fallthru
        _
      %p1533 = scmp.le.s32.totalorder 2, %s18
      // Predicated region
      $region65: #{decoder_layer.10} parent=5 // pred_check
        %p1534 = pneg %p1533
      $region66: #{decoder_layer.10} parent=5 // pred_check_branch
        %1536 = sbr.rel (%p1534) target = $region68
      $region67: #{decoder_layer.10} parent=5 // pred_region
        %s1537 = ssub.s32 %s18, 2
        // Predicated region
        $region69: #{decoder_layer.10} parent=67 // pred_check
          %p1538 = pneg %p235
        $region70: #{decoder_layer.10} parent=67 // pred_check_branch
          %1540 = sbr.rel (%p1538) target = $region72
        $region71: #{decoder_layer.10} parent=67 // pred_region
          %p1541 = scmp.lt.s32.totalorder %s24, 1
          %s1542 = scalar_select %p1541, %s24, 1
          %s1543 = smul.addr %s1542, 2
          %s1544 = smul.addr %s1543, 8
          %s1545 = scalar_lea.vmem %s8, %s1544
        $region72: #{decoder_layer.10} parent=67 // pred_fallthru
          _
      $region68: #{decoder_layer.10} parent=5 // pred_fallthru
        _
    $region6: #{decoder_layer.10} parent=1 // loop_footer
      %s22 = sadd.s32 1, %s18
    $region7: #{decoder_layer.10} parent=1 // loop_footer_branch
      %17 = sbr.rel target = $region3
    $region8: #{decoder_layer.10} parent=1 // loop_exit
      _
    %1546 = vsyncpa [#allocation3], 1
    %s1547 = scalar_lea.sflag [#allocation3], 1
    %1548 = vsyncpa %s1547, 1
    %1549 = vsyncpa [#allocation5], 1

</llo_original>
